<compile_context>
chip_gen: v7x
topology: tpu7x:2x2x1
jax: 0.10.0
libtpu: 0.0.40
codegen_flags: <defaults>
</compile_context>

<pallas_src>
import numpy as np
import jax
import jax.numpy as jnp
from jax.experimental import pallas as pl
from jax.experimental.pallas import tpu as pltpu

F32 = jnp.float32
BF16 = jnp.bfloat16


def _full(shape):
    zeros = (0,) * len(shape)
    return pl.BlockSpec(shape, lambda *_: zeros)


def gcn_normalize(adj):
    n = adj.shape[0]
    a = adj + jnp.eye(n, dtype=adj.dtype)
    dinv = jax.lax.rsqrt(jnp.sum(a, axis=1))
    return a * dinv[:, None] * dinv[None, :]


def _conv3d_spatial_indicator(nl, nh):
    """sp[kd, kh, n_src, n_dst] = 1 iff n_src is the (kd,kh)-shifted source of n_dst."""
    n = nl * nh
    sp = np.zeros((5, 5, n, n), np.float32)
    for kd in range(5):
        for kh in range(5):
            for d in range(nl):
                for h in range(nh):
                    dd, hh = d + kd - 2, h + kh - 2
                    if 0 <= dd < nl and 0 <= hh < nh:
                        sp[kd, kh, dd * nh + hh, d * nh + h] = 1.0
    return sp


# --------------------------------- forward ---------------------------------

def mp_d_forward(x, adj, params, nl, nh):
    """x: (B, 12, C, N) == torch MP_D input layout. Returns (B, 12, C, N)."""
    B, T, C, N = x.shape
    TN = T * N
    BTN = B * TN
    BT = B * T

    # ----------------------- fused kernel (closure over static dims) -----------------------
    def kernel(x_ref, rows_ref, cols_ref, wtap_ref, wca_ref, wsp_ref,
               anorm_ref, wgcnk_ref, rdn_ref, uup_ref, outw_ref, out_ref):
        inv_bn = 1.0 / float(BTN)   # BatchNorm count: all of (B, T, N) per channel
        inv_pool = 1.0 / float(TN)  # channel-attention avg pool per batch

        def mm(a, b):               # bf16 MXU matmul, f32 accumulation
            return jnp.dot(a.astype(BF16), b.astype(BF16), preferred_element_type=F32)

        rows = rows_ref[...]                       # (10 + B, BTN) packed row params
        mask_l = rows[0:1, :]                      # valid-left-neighbour mask
        mask_r = rows[1:2, :]                      # valid-right-neighbour mask
        gcnb_row = rows[2:3, :]
        ln_aff = ((rows[3:4, :], rows[4:5, :]), (rows[5:6, :], rows[6:7, :]))
        b3_rows = (rows[7:8, :], rows[8:9, :], rows[9:10, :])
        bmask = rows[10:10 + B, :]                 # (B, BTN) per-batch column indicator

        cols = cols_ref[...]                       # (C, 15) packed per-channel params
        rdn = rdn_ref[...]                         # (BTN, BT) block-mean pool
        uup = uup_ref[...]                         # (BT, BTN) block broadcast

        def bn_relu(y, gamma, beta):               # training-mode BatchNorm2d + ReLU (f32 VPU)
            mean = jnp.sum(y, axis=1, keepdims=True) * inv_bn
            d = y - mean
            var = jnp.sum(d * d, axis=1, keepdims=True) * inv_bn   # centered two-pass
            scale = gamma * jax.lax.rsqrt(var + 1e-5)
            return jnp.maximum(d * scale + beta, 0.0)

        def stconv(xin, i):
            conv_b = cols[:, 4 * i + 0:4 * i + 1]
            bn_g = cols[:, 4 * i + 1:4 * i + 2]
            bn_b = cols[:, 4 * i + 2:4 * i + 3]
            ca_b = cols[:, 4 * i + 3:4 * i + 4]

            # Conv2d(kernel (1,3), pad (0,1)) over the node axis: lane shifts + edge masks,
            # 3 taps folded into one (C, 3C) @ (3C, B*TN) matmul covering the whole batch.
            zc = jnp.zeros((C, 1), F32)
            x_lft = jnp.concatenate([zc, xin[:, :BTN - 1]], axis=1) * mask_l   # x[.., n-1]
            x_rgt = jnp.concatenate([xin[:, 1:], zc], axis=1) * mask_r         # x[.., n+1]
            stk = jnp.concatenate([x_lft, xin, x_rgt], axis=0)                 # (3C, BTN)
            y = mm(wtap_ref[i], stk) + conv_b
            x_ca = bn_relu(y, bn_g, bn_b)

            # Channel attention: per-batch avg/max pool over (T, N); the two stacked Linears
            # are pre-folded host-side into one (C, 2C) matrix -> single matmul for all batches.
            zcols = []
            for b in range(B):
                mb = bmask[b:b + 1, :]
                avg_b = jnp.sum(x_ca * mb, axis=1, keepdims=True) * inv_pool   # (C, 1)
                max_b = jnp.max(jnp.where(mb > 0.5, x_ca, -1e30),
                                axis=1, keepdims=True)                          # (C, 1)
                zcols.append(jnp.concatenate([avg_b, max_b], axis=0))           # (2C, 1)
            z = jnp.concatenate(zcols, axis=1)                                   # (2C, B)
            gate_c = jax.nn.sigmoid(mm(wca_ref[i], z) + ca_b)                    # (C, B)
            gate_full = gate_c[:, 0:1] * bmask[0:1, :]
            for b in range(1, B):
                gate_full = gate_full + gate_c[:, b:b + 1] * bmask[b:b + 1, :]
            x_g = x_ca * gate_full

            # Spatial attention: channel mean/max rows; the Conv3d(12,12,(5,5,2)) is folded
            # host-side into one (2TN, TN) map shared by both planes and all batches.
            xm = jnp.mean(x_g, axis=0, keepdims=True)                            # (1, BTN)
            xx = jnp.max(x_g, axis=0, keepdims=True)                             # (1, BTN)
            lhs = jnp.concatenate(
                [jnp.concatenate([xm[:, b * TN:(b + 1) * TN],
                                  xx[:, b * TN:(b + 1) * TN]], axis=1)
                 for b in range(B)], axis=0)                                     # (B, 2TN)
            s = mm(lhs, wsp_ref[i])                                              # (B, TN)
            s_full = jnp.concatenate([s[b:b + 1, :] for b in range(B)], axis=1)  # (1, BTN)
            gate_s = jax.nn.sigmoid(s_full + b3_rows[i])
            return x_g * gate_s + xin                                            # residual

        def sgcn(xin):
            # TODO(synk): dense GCNConv stand-in (symmetric-normalized adjacency).
            t = mm(xin, wgcnk_ref[...])               # per-(b,t)-block feature transform
            y = mm(anorm_ref[...], t) + gcnb_row      # node (channel) mixing, whole batch
            return bn_relu(y, cols[:, 12:13], cols[:, 13:14])

        def layernorm(xin, aff):
            g_row, b_row = aff
            # Centered two-pass stats per (b, c, t) block of N nodes (robust to bf16 operands).
            mu_blk = mm(xin, rdn)                                     # (C, BT)
            mu_full = mm(mu_blk, uup)                                 # (C, BTN)
            d = xin - mu_full
            var_blk = mm(d * d, rdn)                                  # (C, BT)
            rsig_full = mm(jax.lax.rsqrt(var_blk + 1e-5), uup)        # (C, BTN)
            return d * rsig_full * g_row + b_row

        h = x_ref[...]                                                # (C, BTN)
        h = stconv(h, 0)
        h = sgcn(h)
        h = stconv(h, 1)
        h = layernorm(h, ln_aff[0])
        h = stconv(h, 2)
        h = layernorm(h, ln_aff[1])
        out_ref[...] = mm(outw_ref[...], h) + cols[:, 14:15]          # 1x1 Conv2d

    # ----------------------- host-side packing (layout plumbing only) -----------------------
    x_slab = jnp.transpose(x, (2, 0, 1, 3)).reshape(C, BTN).astype(F32)   # columns = (b, t, n)

    col_n = np.arange(BTN) % N
    mask_l = (col_n != 0).astype(np.float32)[None, :]
    mask_r = (col_n != N - 1).astype(np.float32)[None, :]
    bmask = (np.arange(BTN)[None, :] // TN == np.arange(B)[:, None]).astype(np.float32)

    rdn = np.zeros((BTN, BT), np.float32)      # block-mean pool over each (b,t) group of N
    uup = np.zeros((BT, BTN), np.float32)      # block broadcast back
    for g in range(BT):
        rdn[g * N:(g + 1) * N, g] = 1.0 / N
        uup[g, g * N:(g + 1) * N] = 1.0

    sp = jnp.asarray(_conv3d_spatial_indicator(nl, nh))               # (5, 5, N, N)

    def col(v):
        return v.reshape(-1, 1)

    def row_per_n(v):   # (N,) -> (1, BTN), tiled over (b, t)
        return jnp.tile(v, BT).reshape(1, BTN)

    def row_per_t(v):   # (T,) -> (1, BTN): repeat over n, tile over b
        return jnp.tile(jnp.repeat(v, N), B).reshape(1, BTN)

    sg = params["sgcn"]
    names = ("stc1", "stc2", "stc3")

    rows = jnp.concatenate(
        [jnp.asarray(mask_l), jnp.asarray(mask_r), row_per_n(sg["gcn_b"]),
         row_per_n(params["ln1_g"]), row_per_n(params["ln1_b"]),
         row_per_n(params["ln2_g"]), row_per_n(params["ln2_b"])]
        + [row_per_t(params[n]["conv3d_b"]) for n in names]
        + [jnp.asarray(bmask)], axis=0).astype(F32)                   # (10 + B, BTN)

    cols_list, wtap_l, wca_l, wsp_l = [], [], [], []
    for n in names:
        p = params[n]
        # channel-attention affine pair folded: W = W2 @ W1, b = W2 @ b1 + b2 (avg & max paths)
        ca_w = jnp.concatenate([p["aw2"] @ p["aw1"], p["mw2"] @ p["mw1"]], axis=1)   # (C, 2C)
        ca_b = p["aw2"] @ p["ab1"] + p["ab2"] + p["mw2"] @ p["mb1"] + p["mb2"]       # (C,)
        cols_list += [col(p["conv_b"]), col(p["bn_gamma"]), col(p["bn_beta"]), col(ca_b)]
        wtap_l.append(jnp.concatenate([p["conv_w"][0], p["conv_w"][1], p["conv_w"][2]],
                                      axis=1))                                       # (C, 3C)
        wca_l.append(ca_w)
        # TODO(synk): Conv3d->dense folding should be validated numerically vs torch.
        wm = jnp.einsum("tuab,abmn->umtn", p["conv3d_w"][..., 0], sp).reshape(TN, TN)
        wx = jnp.einsum("tuab,abmn->umtn", p["conv3d_w"][..., 1], sp).reshape(TN, TN)
        wsp_l.append(jnp.concatenate([wm, wx], axis=0))                              # (2TN, TN)
    cols_list += [col(sg["bn_gamma"]), col(sg["bn_beta"]), col(params["out_b"])]

    cols = jnp.concatenate(cols_list, axis=1).astype(F32)             # (C, 15)
    wtap = jnp.stack(wtap_l).astype(BF16)                             # (3, C, 3C)
    wca = jnp.stack(wca_l).astype(BF16)                               # (3, C, 2C)
    wsp = jnp.stack(wsp_l).astype(BF16)                               # (3, 2TN, TN)
    anorm = gcn_normalize(adj).astype(BF16)                           # (C, C)
    wgcnk = jnp.kron(jnp.eye(BT, dtype=F32), sg["gcn_w"]).astype(BF16)   # (BTN, BTN)
    outw = params["out_w"].astype(BF16)

    flat = [x_slab, rows, cols, wtap, wca, wsp, anorm, wgcnk,
            jnp.asarray(rdn, BF16), jnp.asarray(uup, BF16), outw]

    out_flat = pl.pallas_call(
        kernel,
        out_shape=jax.ShapeDtypeStruct((C, BTN), F32),
        grid=(1,),
        in_specs=[_full(a.shape) for a in flat],
        out_specs=_full((C, BTN)),
        compiler_params=pltpu.CompilerParams(dimension_semantics=("arbitrary",)),
    )(*flat)

    # TODO(synk): on v7x, shard B across the two TensorCores (parallel grid + cross-core BN
    # partial-sum exchange) for a ~2x chip-level win; kept single-core here.
    return jnp.transpose(out_flat.reshape(C, B, T, N), (1, 2, 0, 3))


# ----------------------------- deterministic init -----------------------------

def _winit(key, shape, fan_in):
    return jax.random.normal(key, shape, F32) * (1.0 / jnp.sqrt(jnp.asarray(fan_in, F32)))


def init_stconv(key, C, nl, T=12):
    ND = C
    ks = jax.random.split(key, 6)
    return {
        "conv_w": _winit(ks[0], (3, C, C), 3 * C),        # (tap, C_out, C_in)
        "conv_b": jnp.zeros((C,), F32),
        "bn_gamma": jnp.ones((C,), F32),
        "bn_beta": jnp.zeros((C,), F32),
        "aw1": _winit(ks[1], (nl, ND), ND),               # torch Linear(ND, NL).weight
        "ab1": jnp.zeros((nl,), F32),
        "aw2": _winit(ks[2], (ND, nl), nl),               # torch Linear(NL, ND).weight
        "ab2": jnp.zeros((ND,), F32),
        "mw1": _winit(ks[3], (nl, ND), ND),
        "mb1": jnp.zeros((nl,), F32),
        "mw2": _winit(ks[4], (ND, nl), nl),
        "mb2": jnp.zeros((ND,), F32),
        "conv3d_w": _winit(ks[5], (T, T, 5, 5, 2), T * 5 * 5 * 2),  # (co, ci, kd, kh, kw)
        "conv3d_b": jnp.zeros((T,), F32),
    }


def init_params(key, C, N, nl, T=12):
    ks = jax.random.split(key, 5)
    return {
        "stc1": init_stconv(ks[0], C, nl, T),
        "stc2": init_stconv(ks[1], C, nl, T),
        "stc3": init_stconv(ks[2], C, nl, T),
        "sgcn": {
            "gcn_w": _winit(ks[3], (N, N), N),
            "gcn_b": jnp.zeros((N,), F32),
            "bn_gamma": jnp.ones((C,), F32),
            "bn_beta": jnp.zeros((C,), F32),
        },
        "ln1_g": jnp.ones((N,), F32),
        "ln1_b": jnp.zeros((N,), F32),
        "ln2_g": jnp.ones((N,), F32),
        "ln2_b": jnp.zeros((N,), F32),
        "out_w": _winit(ks[4], (C, C), C),                # 1x1 Conv2d (C_out, C_in)
        "out_b": jnp.zeros((C,), F32),
    }


if __name__ == "__main__":
    # Small config consistent with the module: T = 12 fixed (pool height / Conv3d channels),
    # C == N == ND == NO, NL * NH == N.
    B, T = 2, 12
    NL, NH = 4, 4
    C = N = NL * NH          # 16

    key = jax.random.PRNGKey(0)
    kx, ka, kp = jax.random.split(key, 3)
    x = jax.random.normal(kx, (B, T, C, N), F32)          # torch MP_D input (B, 12, C_in, NO)
    adj = jnp.abs(jax.random.normal(ka, (C, C), F32))     # dense weighted adjacency stand-in
    params = init_params(kp, C, N, NL, T)

    fwd = jax.jit(mp_d_forward, static_argnames=("nl", "nh"))
    out = fwd(x, adj, params, nl=NL, nh=NH)
    out = jax.block_until_ready(out)
    assert out.shape == (B, T, C, N)
    assert bool(jnp.all(jnp.isfinite(out)))
    print("KERNEL_OK")
</pallas_src>

<mosaic_0001>
module attributes {stable_mosaic.version = 11 : i64} {
  func.func @kernel(%arg0: i32, %arg1: memref<16x384xf32, #tpu.memory_space<vmem>>, %arg2: memref<12x384xf32, #tpu.memory_space<vmem>>, %arg3: memref<16x15xf32, #tpu.memory_space<vmem>>, %arg4: memref<3x16x48xbf16, #tpu.memory_space<vmem>>, %arg5: memref<3x16x32xbf16, #tpu.memory_space<vmem>>, %arg6: memref<3x384x192xbf16, #tpu.memory_space<vmem>>, %arg7: memref<16x16xbf16, #tpu.memory_space<vmem>>, %arg8: memref<384x384xbf16, #tpu.memory_space<vmem>>, %arg9: memref<384x24xbf16, #tpu.memory_space<vmem>>, %arg10: memref<24x384xbf16, #tpu.memory_space<vmem>>, %arg11: memref<16x16xbf16, #tpu.memory_space<vmem>>, %arg12: memref<16x384xf32, #tpu.memory_space<vmem>>) attributes {dimension_semantics = [#tpu.dimension_semantics<arbitrary>], iteration_bounds = array<i64: 1>, scalar_prefetch = 0 : i64, scratch_operands = 0 : i64, tpu.core_type = #tpu.core_type<tc>, window_params = [{pipeline_mode = #tpu.pipeline_mode<synchronous>, transform_indices = @transform_0, window_bounds = array<i64: 16, 384>}, {pipeline_mode = #tpu.pipeline_mode<synchronous>, transform_indices = @transform_1, window_bounds = array<i64: 12, 384>}, {pipeline_mode = #tpu.pipeline_mode<synchronous>, transform_indices = @transform_2, window_bounds = array<i64: 16, 15>}, {pipeline_mode = #tpu.pipeline_mode<synchronous>, transform_indices = @transform_3, window_bounds = array<i64: 3, 16, 48>}, {pipeline_mode = #tpu.pipeline_mode<synchronous>, transform_indices = @transform_4, window_bounds = array<i64: 3, 16, 32>}, {pipeline_mode = #tpu.pipeline_mode<synchronous>, transform_indices = @transform_5, window_bounds = array<i64: 3, 384, 192>}, {pipeline_mode = #tpu.pipeline_mode<synchronous>, transform_indices = @transform_6, window_bounds = array<i64: 16, 16>}, {pipeline_mode = #tpu.pipeline_mode<synchronous>, transform_indices = @transform_7, window_bounds = array<i64: 384, 384>}, {pipeline_mode = #tpu.pipeline_mode<synchronous>, transform_indices = @transform_8, window_bounds = array<i64: 384, 24>}, {pipeline_mode = #tpu.pipeline_mode<synchronous>, transform_indices = @transform_9, window_bounds = array<i64: 24, 384>}, {pipeline_mode = #tpu.pipeline_mode<synchronous>, transform_indices = @transform_10, window_bounds = array<i64: 16, 16>}, {pipeline_mode = #tpu.pipeline_mode<synchronous>, transform_indices = @transform_11, window_bounds = array<i64: 16, 384>}]} {
    %c0 = arith.constant 0 : index
    %c0_0 = arith.constant 0 : index
    %0 = vector.load %arg2[%c0, %c0_0] : memref<12x384xf32, #tpu.memory_space<vmem>>, vector<12x384xf32>
    %1 = vector.extract_strided_slice %0 {offsets = [0, 0], sizes = [1, 384], strides = [1, 1]} : vector<12x384xf32> to vector<1x384xf32>
    %2 = vector.extract_strided_slice %0 {offsets = [1, 0], sizes = [1, 384], strides = [1, 1]} : vector<12x384xf32> to vector<1x384xf32>
    %3 = vector.extract_strided_slice %0 {offsets = [2, 0], sizes = [1, 384], strides = [1, 1]} : vector<12x384xf32> to vector<1x384xf32>
    %4 = vector.extract_strided_slice %0 {offsets = [3, 0], sizes = [1, 384], strides = [1, 1]} : vector<12x384xf32> to vector<1x384xf32>
    %5 = vector.extract_strided_slice %0 {offsets = [4, 0], sizes = [1, 384], strides = [1, 1]} : vector<12x384xf32> to vector<1x384xf32>
    %6 = vector.extract_strided_slice %0 {offsets = [5, 0], sizes = [1, 384], strides = [1, 1]} : vector<12x384xf32> to vector<1x384xf32>
    %7 = vector.extract_strided_slice %0 {offsets = [6, 0], sizes = [1, 384], strides = [1, 1]} : vector<12x384xf32> to vector<1x384xf32>
    %8 = vector.extract_strided_slice %0 {offsets = [7, 0], sizes = [1, 384], strides = [1, 1]} : vector<12x384xf32> to vector<1x384xf32>
    %9 = vector.extract_strided_slice %0 {offsets = [8, 0], sizes = [1, 384], strides = [1, 1]} : vector<12x384xf32> to vector<1x384xf32>
    %10 = vector.extract_strided_slice %0 {offsets = [9, 0], sizes = [1, 384], strides = [1, 1]} : vector<12x384xf32> to vector<1x384xf32>
    %11 = vector.extract_strided_slice %0 {offsets = [10, 0], sizes = [2, 384], strides = [1, 1]} : vector<12x384xf32> to vector<2x384xf32>
    %c0_1 = arith.constant 0 : index
    %c0_2 = arith.constant 0 : index
    %12 = vector.load %arg3[%c0_1, %c0_2] : memref<16x15xf32, #tpu.memory_space<vmem>>, vector<16x15xf32>
    %c0_3 = arith.constant 0 : index
    %c0_4 = arith.constant 0 : index
    %13 = vector.load %arg9[%c0_3, %c0_4] : memref<384x24xbf16, #tpu.memory_space<vmem>>, vector<384x24xbf16>
    %c0_5 = arith.constant 0 : index
    %c0_6 = arith.constant 0 : index
    %14 = vector.load %arg10[%c0_5, %c0_6] : memref<24x384xbf16, #tpu.memory_space<vmem>>, vector<24x384xbf16>
    %c0_7 = arith.constant 0 : index
    %c0_8 = arith.constant 0 : index
    %15 = vector.load %arg1[%c0_7, %c0_8] : memref<16x384xf32, #tpu.memory_space<vmem>>, vector<16x384xf32>
    %16 = vector.extract_strided_slice %12 {offsets = [0, 0], sizes = [16, 1], strides = [1, 1]} : vector<16x15xf32> to vector<16x1xf32>
    %17 = vector.extract_strided_slice %12 {offsets = [0, 1], sizes = [16, 1], strides = [1, 1]} : vector<16x15xf32> to vector<16x1xf32>
    %18 = vector.extract_strided_slice %12 {offsets = [0, 2], sizes = [16, 1], strides = [1, 1]} : vector<16x15xf32> to vector<16x1xf32>
    %19 = vector.extract_strided_slice %12 {offsets = [0, 3], sizes = [16, 1], strides = [1, 1]} : vector<16x15xf32> to vector<16x1xf32>
    %cst = arith.constant 0.000000e+00 : f32
    %20 = vector.broadcast %cst : f32 to vector<16x1xf32>
    %21 = vector.extract_strided_slice %15 {offsets = [0, 0], sizes = [16, 383], strides = [1, 1]} : vector<16x384xf32> to vector<16x383xf32>
    %22 = tpu.concatenate %20, %21 in 1 : vector<16x1xf32>, vector<16x383xf32> -> vector<16x384xf32>
    %23 = vector.broadcast %1 : vector<1x384xf32> to vector<16x384xf32>
    %24 = arith.mulf %22, %23 : vector<16x384xf32>
    %25 = vector.extract_strided_slice %15 {offsets = [0, 1], sizes = [16, 383], strides = [1, 1]} : vector<16x384xf32> to vector<16x383xf32>
    %26 = tpu.concatenate %25, %20 in 1 : vector<16x383xf32>, vector<16x1xf32> -> vector<16x384xf32>
    %27 = vector.broadcast %2 : vector<1x384xf32> to vector<16x384xf32>
    %28 = arith.mulf %26, %27 : vector<16x384xf32>
    %29 = tpu.concatenate %24, %15, %28 in 0 : vector<16x384xf32>, vector<16x384xf32>, vector<16x384xf32> -> vector<48x384xf32>
    %c0_9 = arith.constant 0 : index
    %c0_10 = arith.constant 0 : index
    %c0_11 = arith.constant 0 : index
    %30 = vector.load %arg4[%c0_9, %c0_10, %c0_11] : memref<3x16x48xbf16, #tpu.memory_space<vmem>>, vector<1x16x48xbf16>
    %31 = vector.shape_cast %30 : vector<1x16x48xbf16> to vector<16x48xbf16>
    %32 = arith.truncf %29 : vector<48x384xf32> to vector<48x384xbf16>
    %cst_12 = arith.constant dense<0.000000e+00> : vector<16x384xf32>
    %33 = tpu.matmul %31, %32, %cst_12 {dimension_numbers = #tpu.dot_dimension_numbers<[1], [0], [0], [1], [0, 0, 1, 1], [], []>} : vector<16x48xbf16>, vector<48x384xbf16>, vector<16x384xf32> -> vector<16x384xf32>
    %34 = vector.broadcast %16 : vector<16x1xf32> to vector<16x384xf32>
    %35 = arith.addf %33, %34 : vector<16x384xf32>
    %cst_13 = arith.constant dense<0.000000e+00> : vector<16xf32>
    %36 = vector.multi_reduction <add>, %35, %cst_13 [1] : vector<16x384xf32> to vector<16xf32>
    %37 = vector.shape_cast %36 : vector<16xf32> to vector<16x1xf32>
    %cst_14 = arith.constant 0.00260416674 : f32
    %38 = vector.broadcast %cst_14 : f32 to vector<16x1xf32>
    %39 = arith.mulf %37, %38 : vector<16x1xf32>
    %40 = vector.broadcast %39 : vector<16x1xf32> to vector<16x384xf32>
    %41 = arith.subf %35, %40 : vector<16x384xf32>
    %42 = arith.mulf %41, %41 : vector<16x384xf32>
    %cst_15 = arith.constant dense<0.000000e+00> : vector<16xf32>
    %43 = vector.multi_reduction <add>, %42, %cst_15 [1] : vector<16x384xf32> to vector<16xf32>
    %44 = vector.shape_cast %43 : vector<16xf32> to vector<16x1xf32>
    %cst_16 = arith.constant 0.00260416674 : f32
    %45 = vector.broadcast %cst_16 : f32 to vector<16x1xf32>
    %46 = arith.mulf %44, %45 : vector<16x1xf32>
    %cst_17 = arith.constant 9.99999974E-6 : f32
    %47 = vector.broadcast %cst_17 : f32 to vector<16x1xf32>
    %48 = arith.addf %46, %47 : vector<16x1xf32>
    %49 = math.rsqrt %48 : vector<16x1xf32>
    %50 = arith.mulf %17, %49 : vector<16x1xf32>
    %51 = vector.broadcast %50 : vector<16x1xf32> to vector<16x384xf32>
    %52 = arith.mulf %41, %51 : vector<16x384xf32>
    %53 = vector.broadcast %18 : vector<16x1xf32> to vector<16x384xf32>
    %54 = arith.addf %52, %53 : vector<16x384xf32>
    %cst_18 = arith.constant 0.000000e+00 : f32
    %55 = vector.broadcast %cst_18 : f32 to vector<16x384xf32>
    %56 = arith.maximumf %54, %55 : vector<16x384xf32>
    %57 = vector.extract_strided_slice %11 {offsets = [0, 0], sizes = [1, 384], strides = [1, 1]} : vector<2x384xf32> to vector<1x384xf32>
    %58 = vector.broadcast %57 : vector<1x384xf32> to vector<16x384xf32>
    %59 = arith.mulf %56, %58 : vector<16x384xf32>
    %cst_19 = arith.constant dense<0.000000e+00> : vector<16xf32>
    %60 = vector.multi_reduction <add>, %59, %cst_19 [1] : vector<16x384xf32> to vector<16xf32>
    %61 = vector.shape_cast %60 : vector<16xf32> to vector<16x1xf32>
    %cst_20 = arith.constant 0.00520833349 : f32
    %62 = vector.broadcast %cst_20 : f32 to vector<16x1xf32>
    %63 = arith.mulf %61, %62 : vector<16x1xf32>
    %cst_21 = arith.constant 5.000000e-01 : f32
    %64 = vector.broadcast %cst_21 : f32 to vector<1x384xf32>
    %65 = arith.cmpf ogt, %57, %64 : vector<1x384xf32>
    %cst_22 = arith.constant -1.000000e+30 : f32
    %66 = vector.shape_cast %65 : vector<1x384xi1> to vector<1x384xi1>
    %67 = vector.broadcast %66 : vector<1x384xi1> to vector<16x384xi1>
    %68 = vector.broadcast %cst_22 : f32 to vector<16x384xf32>
    %69 = arith.select %67, %56, %68 : vector<16x384xi1>, vector<16x384xf32>
    %cst_23 = arith.constant dense<0xFF800000> : vector<16xf32>
    %70 = vector.multi_reduction <maximumf>, %69, %cst_23 [1] : vector<16x384xf32> to vector<16xf32>
    %71 = vector.shape_cast %70 : vector<16xf32> to vector<16x1xf32>
    %72 = tpu.concatenate %63, %71 in 0 : vector<16x1xf32>, vector<16x1xf32> -> vector<32x1xf32>
    %73 = vector.extract_strided_slice %11 {offsets = [1, 0], sizes = [1, 384], strides = [1, 1]} : vector<2x384xf32> to vector<1x384xf32>
    %74 = vector.broadcast %73 : vector<1x384xf32> to vector<16x384xf32>
    %75 = arith.mulf %56, %74 : vector<16x384xf32>
    %cst_24 = arith.constant dense<0.000000e+00> : vector<16xf32>
    %76 = vector.multi_reduction <add>, %75, %cst_24 [1] : vector<16x384xf32> to vector<16xf32>
    %77 = vector.shape_cast %76 : vector<16xf32> to vector<16x1xf32>
    %cst_25 = arith.constant 0.00520833349 : f32
    %78 = vector.broadcast %cst_25 : f32 to vector<16x1xf32>
    %79 = arith.mulf %77, %78 : vector<16x1xf32>
    %cst_26 = arith.constant 5.000000e-01 : f32
    %80 = vector.broadcast %cst_26 : f32 to vector<1x384xf32>
    %81 = arith.cmpf ogt, %73, %80 : vector<1x384xf32>
    %cst_27 = arith.constant -1.000000e+30 : f32
    %82 = vector.shape_cast %81 : vector<1x384xi1> to vector<1x384xi1>
    %83 = vector.broadcast %82 : vector<1x384xi1> to vector<16x384xi1>
    %84 = vector.broadcast %cst_27 : f32 to vector<16x384xf32>
    %85 = arith.select %83, %56, %84 : vector<16x384xi1>, vector<16x384xf32>
    %cst_28 = arith.constant dense<0xFF800000> : vector<16xf32>
    %86 = vector.multi_reduction <maximumf>, %85, %cst_28 [1] : vector<16x384xf32> to vector<16xf32>
    %87 = vector.shape_cast %86 : vector<16xf32> to vector<16x1xf32>
    %88 = tpu.concatenate %79, %87 in 0 : vector<16x1xf32>, vector<16x1xf32> -> vector<32x1xf32>
    %89 = tpu.concatenate %72, %88 in 1 : vector<32x1xf32>, vector<32x1xf32> -> vector<32x2xf32>
    %c0_29 = arith.constant 0 : index
    %c0_30 = arith.constant 0 : index
    %c0_31 = arith.constant 0 : index
    %90 = vector.load %arg5[%c0_29, %c0_30, %c0_31] : memref<3x16x32xbf16, #tpu.memory_space<vmem>>, vector<1x16x32xbf16>
    %91 = vector.shape_cast %90 : vector<1x16x32xbf16> to vector<16x32xbf16>
    %92 = arith.truncf %89 : vector<32x2xf32> to vector<32x2xbf16>
    %cst_32 = arith.constant dense<0.000000e+00> : vector<16x2xf32>
    %93 = tpu.matmul %91, %92, %cst_32 {dimension_numbers = #tpu.dot_dimension_numbers<[1], [0], [0], [1], [0, 0, 1, 1], [], []>} : vector<16x32xbf16>, vector<32x2xbf16>, vector<16x2xf32> -> vector<16x2xf32>
    %94 = vector.broadcast %19 : vector<16x1xf32> to vector<16x2xf32>
    %95 = arith.addf %93, %94 : vector<16x2xf32>
    %96 = arith.negf %95 : vector<16x2xf32>
    %97 = math.exp %96 : vector<16x2xf32>
    %cst_33 = arith.constant 1.000000e+00 : f32
    %98 = vector.broadcast %cst_33 : f32 to vector<16x2xf32>
    %99 = arith.addf %98, %97 : vector<16x2xf32>
    %100 = arith.divf %98, %99 : vector<16x2xf32>
    %101 = vector.extract_strided_slice %100 {offsets = [0, 0], sizes = [16, 1], strides = [1, 1]} : vector<16x2xf32> to vector<16x1xf32>
    %102 = vector.extract_strided_slice %11 {offsets = [0, 0], sizes = [1, 384], strides = [1, 1]} : vector<2x384xf32> to vector<1x384xf32>
    %103 = vector.broadcast %101 : vector<16x1xf32> to vector<16x384xf32>
    %104 = vector.broadcast %102 : vector<1x384xf32> to vector<16x384xf32>
    %105 = arith.mulf %103, %104 : vector<16x384xf32>
    %106 = vector.extract_strided_slice %100 {offsets = [0, 1], sizes = [16, 1], strides = [1, 1]} : vector<16x2xf32> to vector<16x1xf32>
    %107 = vector.extract_strided_slice %11 {offsets = [1, 0], sizes = [1, 384], strides = [1, 1]} : vector<2x384xf32> to vector<1x384xf32>
    %108 = vector.broadcast %106 : vector<16x1xf32> to vector<16x384xf32>
    %109 = vector.broadcast %107 : vector<1x384xf32> to vector<16x384xf32>
    %110 = arith.mulf %108, %109 : vector<16x384xf32>
    %111 = arith.addf %105, %110 : vector<16x384xf32>
    %112 = arith.mulf %56, %111 : vector<16x384xf32>
    %cst_34 = arith.constant dense<0.000000e+00> : vector<384xf32>
    %113 = vector.multi_reduction <add>, %112, %cst_34 [0] : vector<16x384xf32> to vector<384xf32>
    %114 = vector.shape_cast %113 : vector<384xf32> to vector<1x384xf32>
    %cst_35 = arith.constant 1.600000e+01 : f32
    %115 = vector.broadcast %cst_35 : f32 to vector<1x384xf32>
    %116 = arith.divf %114, %115 : vector<1x384xf32>
    %cst_36 = arith.constant dense<0xFF800000> : vector<384xf32>
    %117 = vector.multi_reduction <maximumf>, %112, %cst_36 [0] : vector<16x384xf32> to vector<384xf32>
    %118 = vector.shape_cast %117 : vector<384xf32> to vector<1x384xf32>
    %119 = vector.extract_strided_slice %116 {offsets = [0, 0], sizes = [1, 192], strides = [1, 1]} : vector<1x384xf32> to vector<1x192xf32>
    %120 = vector.extract_strided_slice %118 {offsets = [0, 0], sizes = [1, 192], strides = [1, 1]} : vector<1x384xf32> to vector<1x192xf32>
    %121 = tpu.concatenate %119, %120 in 1 : vector<1x192xf32>, vector<1x192xf32> -> vector<1x384xf32>
    %122 = vector.extract_strided_slice %116 {offsets = [0, 192], sizes = [1, 192], strides = [1, 1]} : vector<1x384xf32> to vector<1x192xf32>
    %123 = vector.extract_strided_slice %118 {offsets = [0, 192], sizes = [1, 192], strides = [1, 1]} : vector<1x384xf32> to vector<1x192xf32>
    %124 = tpu.concatenate %122, %123 in 1 : vector<1x192xf32>, vector<1x192xf32> -> vector<1x384xf32>
    %125 = tpu.concatenate %121, %124 in 0 : vector<1x384xf32>, vector<1x384xf32> -> vector<2x384xf32>
    %c0_37 = arith.constant 0 : index
    %c0_38 = arith.constant 0 : index
    %c0_39 = arith.constant 0 : index
    %126 = vector.load %arg6[%c0_37, %c0_38, %c0_39] : memref<3x384x192xbf16, #tpu.memory_space<vmem>>, vector<1x384x192xbf16>
    %127 = vector.shape_cast %126 : vector<1x384x192xbf16> to vector<384x192xbf16>
    %128 = arith.truncf %125 : vector<2x384xf32> to vector<2x384xbf16>
    %cst_40 = arith.constant dense<0.000000e+00> : vector<2x192xf32>
    %129 = tpu.matmul %128, %127, %cst_40 {dimension_numbers = #tpu.dot_dimension_numbers<[1], [0], [0], [1], [0, 0, 1, 1], [], []>} : vector<2x384xbf16>, vector<384x192xbf16>, vector<2x192xf32> -> vector<2x192xf32>
    %130 = vector.extract_strided_slice %129 {offsets = [0, 0], sizes = [1, 192], strides = [1, 1]} : vector<2x192xf32> to vector<1x192xf32>
    %131 = vector.extract_strided_slice %129 {offsets = [1, 0], sizes = [1, 192], strides = [1, 1]} : vector<2x192xf32> to vector<1x192xf32>
    %132 = tpu.concatenate %130, %131 in 1 : vector<1x192xf32>, vector<1x192xf32> -> vector<1x384xf32>
    %133 = arith.addf %132, %8 : vector<1x384xf32>
    %134 = arith.negf %133 : vector<1x384xf32>
    %135 = math.exp %134 : vector<1x384xf32>
    %cst_41 = arith.constant 1.000000e+00 : f32
    %136 = vector.broadcast %cst_41 : f32 to vector<1x384xf32>
    %137 = arith.addf %136, %135 : vector<1x384xf32>
    %138 = arith.divf %136, %137 : vector<1x384xf32>
    %139 = vector.broadcast %138 : vector<1x384xf32> to vector<16x384xf32>
    %140 = arith.mulf %112, %139 : vector<16x384xf32>
    %141 = arith.addf %140, %15 : vector<16x384xf32>
    %c0_42 = arith.constant 0 : index
    %c0_43 = arith.constant 0 : index
    %142 = vector.load %arg8[%c0_42, %c0_43] : memref<384x384xbf16, #tpu.memory_space<vmem>>, vector<384x384xbf16>
    %143 = arith.truncf %141 : vector<16x384xf32> to vector<16x384xbf16>
    %cst_44 = arith.constant dense<0.000000e+00> : vector<16x384xf32>
    %144 = tpu.matmul %143, %142, %cst_44 {dimension_numbers = #tpu.dot_dimension_numbers<[1], [0], [0], [1], [0, 0, 1, 1], [], []>} : vector<16x384xbf16>, vector<384x384xbf16>, vector<16x384xf32> -> vector<16x384xf32>
    %c0_45 = arith.constant 0 : index
    %c0_46 = arith.constant 0 : index
    %145 = vector.load %arg7[%c0_45, %c0_46] : memref<16x16xbf16, #tpu.memory_space<vmem>>, vector<16x16xbf16>
    %146 = arith.truncf %144 : vector<16x384xf32> to vector<16x384xbf16>
    %cst_47 = arith.constant dense<0.000000e+00> : vector<16x384xf32>
    %147 = tpu.matmul %145, %146, %cst_47 {dimension_numbers = #tpu.dot_dimension_numbers<[1], [0], [0], [1], [0, 0, 1, 1], [], []>} : vector<16x16xbf16>, vector<16x384xbf16>, vector<16x384xf32> -> vector<16x384xf32>
    %148 = vector.broadcast %3 : vector<1x384xf32> to vector<16x384xf32>
    %149 = arith.addf %147, %148 : vector<16x384xf32>
    %150 = vector.extract_strided_slice %12 {offsets = [0, 12], sizes = [16, 1], strides = [1, 1]} : vector<16x15xf32> to vector<16x1xf32>
    %151 = vector.extract_strided_slice %12 {offsets = [0, 13], sizes = [16, 1], strides = [1, 1]} : vector<16x15xf32> to vector<16x1xf32>
    %cst_48 = arith.constant dense<0.000000e+00> : vector<16xf32>
    %152 = vector.multi_reduction <add>, %149, %cst_48 [1] : vector<16x384xf32> to vector<16xf32>
    %153 = vector.shape_cast %152 : vector<16xf32> to vector<16x1xf32>
    %cst_49 = arith.constant 0.00260416674 : f32
    %154 = vector.broadcast %cst_49 : f32 to vector<16x1xf32>
    %155 = arith.mulf %153, %154 : vector<16x1xf32>
    %156 = vector.broadcast %155 : vector<16x1xf32> to vector<16x384xf32>
    %157 = arith.subf %149, %156 : vector<16x384xf32>
    %158 = arith.mulf %157, %157 : vector<16x384xf32>
    %cst_50 = arith.constant dense<0.000000e+00> : vector<16xf32>
    %159 = vector.multi_reduction <add>, %158, %cst_50 [1] : vector<16x384xf32> to vector<16xf32>
    %160 = vector.shape_cast %159 : vector<16xf32> to vector<16x1xf32>
    %cst_51 = arith.constant 0.00260416674 : f32
    %161 = vector.broadcast %cst_51 : f32 to vector<16x1xf32>
    %162 = arith.mulf %160, %161 : vector<16x1xf32>
    %cst_52 = arith.constant 9.99999974E-6 : f32
    %163 = vector.broadcast %cst_52 : f32 to vector<16x1xf32>
    %164 = arith.addf %162, %163 : vector<16x1xf32>
    %165 = math.rsqrt %164 : vector<16x1xf32>
    %166 = arith.mulf %150, %165 : vector<16x1xf32>
    %167 = vector.broadcast %166 : vector<16x1xf32> to vector<16x384xf32>
    %168 = arith.mulf %157, %167 : vector<16x384xf32>
    %169 = vector.broadcast %151 : vector<16x1xf32> to vector<16x384xf32>
    %170 = arith.addf %168, %169 : vector<16x384xf32>
    %cst_53 = arith.constant 0.000000e+00 : f32
    %171 = vector.broadcast %cst_53 : f32 to vector<16x384xf32>
    %172 = arith.maximumf %170, %171 : vector<16x384xf32>
    %173 = vector.extract_strided_slice %12 {offsets = [0, 4], sizes = [16, 1], strides = [1, 1]} : vector<16x15xf32> to vector<16x1xf32>
    %174 = vector.extract_strided_slice %12 {offsets = [0, 5], sizes = [16, 1], strides = [1, 1]} : vector<16x15xf32> to vector<16x1xf32>
    %175 = vector.extract_strided_slice %12 {offsets = [0, 6], sizes = [16, 1], strides = [1, 1]} : vector<16x15xf32> to vector<16x1xf32>
    %176 = vector.extract_strided_slice %12 {offsets = [0, 7], sizes = [16, 1], strides = [1, 1]} : vector<16x15xf32> to vector<16x1xf32>
    %cst_54 = arith.constant 0.000000e+00 : f32
    %177 = vector.broadcast %cst_54 : f32 to vector<16x1xf32>
    %178 = vector.extract_strided_slice %172 {offsets = [0, 0], sizes = [16, 383], strides = [1, 1]} : vector<16x384xf32> to vector<16x383xf32>
    %179 = tpu.concatenate %177, %178 in 1 : vector<16x1xf32>, vector<16x383xf32> -> vector<16x384xf32>
    %180 = vector.broadcast %1 : vector<1x384xf32> to vector<16x384xf32>
    %181 = arith.mulf %179, %180 : vector<16x384xf32>
    %182 = vector.extract_strided_slice %172 {offsets = [0, 1], sizes = [16, 383], strides = [1, 1]} : vector<16x384xf32> to vector<16x383xf32>
    %183 = tpu.concatenate %182, %177 in 1 : vector<16x383xf32>, vector<16x1xf32> -> vector<16x384xf32>
    %184 = vector.broadcast %2 : vector<1x384xf32> to vector<16x384xf32>
    %185 = arith.mulf %183, %184 : vector<16x384xf32>
    %186 = tpu.concatenate %181, %172, %185 in 0 : vector<16x384xf32>, vector<16x384xf32>, vector<16x384xf32> -> vector<48x384xf32>
    %c1 = arith.constant 1 : index
    %c0_55 = arith.constant 0 : index
    %c0_56 = arith.constant 0 : index
    %187 = vector.load %arg4[%c1, %c0_55, %c0_56] : memref<3x16x48xbf16, #tpu.memory_space<vmem>>, vector<1x16x48xbf16>
    %188 = vector.shape_cast %187 : vector<1x16x48xbf16> to vector<16x48xbf16>
    %189 = arith.truncf %186 : vector<48x384xf32> to vector<48x384xbf16>
    %cst_57 = arith.constant dense<0.000000e+00> : vector<16x384xf32>
    %190 = tpu.matmul %188, %189, %cst_57 {dimension_numbers = #tpu.dot_dimension_numbers<[1], [0], [0], [1], [0, 0, 1, 1], [], []>} : vector<16x48xbf16>, vector<48x384xbf16>, vector<16x384xf32> -> vector<16x384xf32>
    %191 = vector.broadcast %173 : vector<16x1xf32> to vector<16x384xf32>
    %192 = arith.addf %190, %191 : vector<16x384xf32>
    %cst_58 = arith.constant dense<0.000000e+00> : vector<16xf32>
    %193 = vector.multi_reduction <add>, %192, %cst_58 [1] : vector<16x384xf32> to vector<16xf32>
    %194 = vector.shape_cast %193 : vector<16xf32> to vector<16x1xf32>
    %cst_59 = arith.constant 0.00260416674 : f32
    %195 = vector.broadcast %cst_59 : f32 to vector<16x1xf32>
    %196 = arith.mulf %194, %195 : vector<16x1xf32>
    %197 = vector.broadcast %196 : vector<16x1xf32> to vector<16x384xf32>
    %198 = arith.subf %192, %197 : vector<16x384xf32>
    %199 = arith.mulf %198, %198 : vector<16x384xf32>
    %cst_60 = arith.constant dense<0.000000e+00> : vector<16xf32>
    %200 = vector.multi_reduction <add>, %199, %cst_60 [1] : vector<16x384xf32> to vector<16xf32>
    %201 = vector.shape_cast %200 : vector<16xf32> to vector<16x1xf32>
    %cst_61 = arith.constant 0.00260416674 : f32
    %202 = vector.broadcast %cst_61 : f32 to vector<16x1xf32>
    %203 = arith.mulf %201, %202 : vector<16x1xf32>
    %cst_62 = arith.constant 9.99999974E-6 : f32
    %204 = vector.broadcast %cst_62 : f32 to vector<16x1xf32>
    %205 = arith.addf %203, %204 : vector<16x1xf32>
    %206 = math.rsqrt %205 : vector<16x1xf32>
    %207 = arith.mulf %174, %206 : vector<16x1xf32>
    %208 = vector.broadcast %207 : vector<16x1xf32> to vector<16x384xf32>
    %209 = arith.mulf %198, %208 : vector<16x384xf32>
    %210 = vector.broadcast %175 : vector<16x1xf32> to vector<16x384xf32>
    %211 = arith.addf %209, %210 : vector<16x384xf32>
    %cst_63 = arith.constant 0.000000e+00 : f32
    %212 = vector.broadcast %cst_63 : f32 to vector<16x384xf32>
    %213 = arith.maximumf %211, %212 : vector<16x384xf32>
    %214 = vector.extract_strided_slice %11 {offsets = [0, 0], sizes = [1, 384], strides = [1, 1]} : vector<2x384xf32> to vector<1x384xf32>
    %215 = vector.broadcast %214 : vector<1x384xf32> to vector<16x384xf32>
    %216 = arith.mulf %213, %215 : vector<16x384xf32>
    %cst_64 = arith.constant dense<0.000000e+00> : vector<16xf32>
    %217 = vector.multi_reduction <add>, %216, %cst_64 [1] : vector<16x384xf32> to vector<16xf32>
    %218 = vector.shape_cast %217 : vector<16xf32> to vector<16x1xf32>
    %cst_65 = arith.constant 0.00520833349 : f32
    %219 = vector.broadcast %cst_65 : f32 to vector<16x1xf32>
    %220 = arith.mulf %218, %219 : vector<16x1xf32>
    %cst_66 = arith.constant 5.000000e-01 : f32
    %221 = vector.broadcast %cst_66 : f32 to vector<1x384xf32>
    %222 = arith.cmpf ogt, %214, %221 : vector<1x384xf32>
    %cst_67 = arith.constant -1.000000e+30 : f32
    %223 = vector.shape_cast %222 : vector<1x384xi1> to vector<1x384xi1>
    %224 = vector.broadcast %223 : vector<1x384xi1> to vector<16x384xi1>
    %225 = vector.broadcast %cst_67 : f32 to vector<16x384xf32>
    %226 = arith.select %224, %213, %225 : vector<16x384xi1>, vector<16x384xf32>
    %cst_68 = arith.constant dense<0xFF800000> : vector<16xf32>
    %227 = vector.multi_reduction <maximumf>, %226, %cst_68 [1] : vector<16x384xf32> to vector<16xf32>
    %228 = vector.shape_cast %227 : vector<16xf32> to vector<16x1xf32>
    %229 = tpu.concatenate %220, %228 in 0 : vector<16x1xf32>, vector<16x1xf32> -> vector<32x1xf32>
    %230 = vector.extract_strided_slice %11 {offsets = [1, 0], sizes = [1, 384], strides = [1, 1]} : vector<2x384xf32> to vector<1x384xf32>
    %231 = vector.broadcast %230 : vector<1x384xf32> to vector<16x384xf32>
    %232 = arith.mulf %213, %231 : vector<16x384xf32>
    %cst_69 = arith.constant dense<0.000000e+00> : vector<16xf32>
    %233 = vector.multi_reduction <add>, %232, %cst_69 [1] : vector<16x384xf32> to vector<16xf32>
    %234 = vector.shape_cast %233 : vector<16xf32> to vector<16x1xf32>
    %cst_70 = arith.constant 0.00520833349 : f32
    %235 = vector.broadcast %cst_70 : f32 to vector<16x1xf32>
    %236 = arith.mulf %234, %235 : vector<16x1xf32>
    %cst_71 = arith.constant 5.000000e-01 : f32
    %237 = vector.broadcast %cst_71 : f32 to vector<1x384xf32>
    %238 = arith.cmpf ogt, %230, %237 : vector<1x384xf32>
    %cst_72 = arith.constant -1.000000e+30 : f32
    %239 = vector.shape_cast %238 : vector<1x384xi1> to vector<1x384xi1>
    %240 = vector.broadcast %239 : vector<1x384xi1> to vector<16x384xi1>
    %241 = vector.broadcast %cst_72 : f32 to vector<16x384xf32>
    %242 = arith.select %240, %213, %241 : vector<16x384xi1>, vector<16x384xf32>
    %cst_73 = arith.constant dense<0xFF800000> : vector<16xf32>
    %243 = vector.multi_reduction <maximumf>, %242, %cst_73 [1] : vector<16x384xf32> to vector<16xf32>
    %244 = vector.shape_cast %243 : vector<16xf32> to vector<16x1xf32>
    %245 = tpu.concatenate %236, %244 in 0 : vector<16x1xf32>, vector<16x1xf32> -> vector<32x1xf32>
    %246 = tpu.concatenate %229, %245 in 1 : vector<32x1xf32>, vector<32x1xf32> -> vector<32x2xf32>
    %c1_74 = arith.constant 1 : index
    %c0_75 = arith.constant 0 : index
    %c0_76 = arith.constant 0 : index
    %247 = vector.load %arg5[%c1_74, %c0_75, %c0_76] : memref<3x16x32xbf16, #tpu.memory_space<vmem>>, vector<1x16x32xbf16>
    %248 = vector.shape_cast %247 : vector<1x16x32xbf16> to vector<16x32xbf16>
    %249 = arith.truncf %246 : vector<32x2xf32> to vector<32x2xbf16>
    %cst_77 = arith.constant dense<0.000000e+00> : vector<16x2xf32>
    %250 = tpu.matmul %248, %249, %cst_77 {dimension_numbers = #tpu.dot_dimension_numbers<[1], [0], [0], [1], [0, 0, 1, 1], [], []>} : vector<16x32xbf16>, vector<32x2xbf16>, vector<16x2xf32> -> vector<16x2xf32>
    %251 = vector.broadcast %176 : vector<16x1xf32> to vector<16x2xf32>
    %252 = arith.addf %250, %251 : vector<16x2xf32>
    %253 = arith.negf %252 : vector<16x2xf32>
    %254 = math.exp %253 : vector<16x2xf32>
    %cst_78 = arith.constant 1.000000e+00 : f32
    %255 = vector.broadcast %cst_78 : f32 to vector<16x2xf32>
    %256 = arith.addf %255, %254 : vector<16x2xf32>
    %257 = arith.divf %255, %256 : vector<16x2xf32>
    %258 = vector.extract_strided_slice %257 {offsets = [0, 0], sizes = [16, 1], strides = [1, 1]} : vector<16x2xf32> to vector<16x1xf32>
    %259 = vector.extract_strided_slice %11 {offsets = [0, 0], sizes = [1, 384], strides = [1, 1]} : vector<2x384xf32> to vector<1x384xf32>
    %260 = vector.broadcast %258 : vector<16x1xf32> to vector<16x384xf32>
    %261 = vector.broadcast %259 : vector<1x384xf32> to vector<16x384xf32>
    %262 = arith.mulf %260, %261 : vector<16x384xf32>
    %263 = vector.extract_strided_slice %257 {offsets = [0, 1], sizes = [16, 1], strides = [1, 1]} : vector<16x2xf32> to vector<16x1xf32>
    %264 = vector.extract_strided_slice %11 {offsets = [1, 0], sizes = [1, 384], strides = [1, 1]} : vector<2x384xf32> to vector<1x384xf32>
    %265 = vector.broadcast %263 : vector<16x1xf32> to vector<16x384xf32>
    %266 = vector.broadcast %264 : vector<1x384xf32> to vector<16x384xf32>
    %267 = arith.mulf %265, %266 : vector<16x384xf32>
    %268 = arith.addf %262, %267 : vector<16x384xf32>
    %269 = arith.mulf %213, %268 : vector<16x384xf32>
    %cst_79 = arith.constant dense<0.000000e+00> : vector<384xf32>
    %270 = vector.multi_reduction <add>, %269, %cst_79 [0] : vector<16x384xf32> to vector<384xf32>
    %271 = vector.shape_cast %270 : vector<384xf32> to vector<1x384xf32>
    %cst_80 = arith.constant 1.600000e+01 : f32
    %272 = vector.broadcast %cst_80 : f32 to vector<1x384xf32>
    %273 = arith.divf %271, %272 : vector<1x384xf32>
    %cst_81 = arith.constant dense<0xFF800000> : vector<384xf32>
    %274 = vector.multi_reduction <maximumf>, %269, %cst_81 [0] : vector<16x384xf32> to vector<384xf32>
    %275 = vector.shape_cast %274 : vector<384xf32> to vector<1x384xf32>
    %276 = vector.extract_strided_slice %273 {offsets = [0, 0], sizes = [1, 192], strides = [1, 1]} : vector<1x384xf32> to vector<1x192xf32>
    %277 = vector.extract_strided_slice %275 {offsets = [0, 0], sizes = [1, 192], strides = [1, 1]} : vector<1x384xf32> to vector<1x192xf32>
    %278 = tpu.concatenate %276, %277 in 1 : vector<1x192xf32>, vector<1x192xf32> -> vector<1x384xf32>
    %279 = vector.extract_strided_slice %273 {offsets = [0, 192], sizes = [1, 192], strides = [1, 1]} : vector<1x384xf32> to vector<1x192xf32>
    %280 = vector.extract_strided_slice %275 {offsets = [0, 192], sizes = [1, 192], strides = [1, 1]} : vector<1x384xf32> to vector<1x192xf32>
    %281 = tpu.concatenate %279, %280 in 1 : vector<1x192xf32>, vector<1x192xf32> -> vector<1x384xf32>
    %282 = tpu.concatenate %278, %281 in 0 : vector<1x384xf32>, vector<1x384xf32> -> vector<2x384xf32>
    %c1_82 = arith.constant 1 : index
    %c0_83 = arith.constant 0 : index
    %c0_84 = arith.constant 0 : index
    %283 = vector.load %arg6[%c1_82, %c0_83, %c0_84] : memref<3x384x192xbf16, #tpu.memory_space<vmem>>, vector<1x384x192xbf16>
    %284 = vector.shape_cast %283 : vector<1x384x192xbf16> to vector<384x192xbf16>
    %285 = arith.truncf %282 : vector<2x384xf32> to vector<2x384xbf16>
    %cst_85 = arith.constant dense<0.000000e+00> : vector<2x192xf32>
    %286 = tpu.matmul %285, %284, %cst_85 {dimension_numbers = #tpu.dot_dimension_numbers<[1], [0], [0], [1], [0, 0, 1, 1], [], []>} : vector<2x384xbf16>, vector<384x192xbf16>, vector<2x192xf32> -> vector<2x192xf32>
    %287 = vector.extract_strided_slice %286 {offsets = [0, 0], sizes = [1, 192], strides = [1, 1]} : vector<2x192xf32> to vector<1x192xf32>
    %288 = vector.extract_strided_slice %286 {offsets = [1, 0], sizes = [1, 192], strides = [1, 1]} : vector<2x192xf32> to vector<1x192xf32>
    %289 = tpu.concatenate %287, %288 in 1 : vector<1x192xf32>, vector<1x192xf32> -> vector<1x384xf32>
    %290 = arith.addf %289, %9 : vector<1x384xf32>
    %291 = arith.negf %290 : vector<1x384xf32>
    %292 = math.exp %291 : vector<1x384xf32>
    %cst_86 = arith.constant 1.000000e+00 : f32
    %293 = vector.broadcast %cst_86 : f32 to vector<1x384xf32>
    %294 = arith.addf %293, %292 : vector<1x384xf32>
    %295 = arith.divf %293, %294 : vector<1x384xf32>
    %296 = vector.broadcast %295 : vector<1x384xf32> to vector<16x384xf32>
    %297 = arith.mulf %269, %296 : vector<16x384xf32>
    %298 = arith.addf %297, %172 : vector<16x384xf32>
    %299 = arith.truncf %298 : vector<16x384xf32> to vector<16x384xbf16>
    %cst_87 = arith.constant dense<0.000000e+00> : vector<16x24xf32>
    %300 = tpu.matmul %299, %13, %cst_87 {dimension_numbers = #tpu.dot_dimension_numbers<[1], [0], [0], [1], [0, 0, 1, 1], [], []>} : vector<16x384xbf16>, vector<384x24xbf16>, vector<16x24xf32> -> vector<16x24xf32>
    %301 = arith.truncf %300 : vector<16x24xf32> to vector<16x24xbf16>
    %cst_88 = arith.constant dense<0.000000e+00> : vector<16x384xf32>
    %302 = tpu.matmul %301, %14, %cst_88 {dimension_numbers = #tpu.dot_dimension_numbers<[1], [0], [0], [1], [0, 0, 1, 1], [], []>} : vector<16x24xbf16>, vector<24x384xbf16>, vector<16x384xf32> -> vector<16x384xf32>
    %303 = arith.subf %298, %302 : vector<16x384xf32>
    %304 = arith.mulf %303, %303 : vector<16x384xf32>
    %305 = arith.truncf %304 : vector<16x384xf32> to vector<16x384xbf16>
    %cst_89 = arith.constant dense<0.000000e+00> : vector<16x24xf32>
    %306 = tpu.matmul %305, %13, %cst_89 {dimension_numbers = #tpu.dot_dimension_numbers<[1], [0], [0], [1], [0, 0, 1, 1], [], []>} : vector<16x384xbf16>, vector<384x24xbf16>, vector<16x24xf32> -> vector<16x24xf32>
    %cst_90 = arith.constant 9.99999974E-6 : f32
    %307 = vector.broadcast %cst_90 : f32 to vector<16x24xf32>
    %308 = arith.addf %306, %307 : vector<16x24xf32>
    %309 = math.rsqrt %308 : vector<16x24xf32>
    %310 = arith.truncf %309 : vector<16x24xf32> to vector<16x24xbf16>
    %cst_91 = arith.constant dense<0.000000e+00> : vector<16x384xf32>
    %311 = tpu.matmul %310, %14, %cst_91 {dimension_numbers = #tpu.dot_dimension_numbers<[1], [0], [0], [1], [0, 0, 1, 1], [], []>} : vector<16x24xbf16>, vector<24x384xbf16>, vector<16x384xf32> -> vector<16x384xf32>
    %312 = arith.mulf %303, %311 : vector<16x384xf32>
    %313 = vector.broadcast %4 : vector<1x384xf32> to vector<16x384xf32>
    %314 = arith.mulf %312, %313 : vector<16x384xf32>
    %315 = vector.broadcast %5 : vector<1x384xf32> to vector<16x384xf32>
    %316 = arith.addf %314, %315 : vector<16x384xf32>
    %317 = vector.extract_strided_slice %12 {offsets = [0, 8], sizes = [16, 1], strides = [1, 1]} : vector<16x15xf32> to vector<16x1xf32>
    %318 = vector.extract_strided_slice %12 {offsets = [0, 9], sizes = [16, 1], strides = [1, 1]} : vector<16x15xf32> to vector<16x1xf32>
    %319 = vector.extract_strided_slice %12 {offsets = [0, 10], sizes = [16, 1], strides = [1, 1]} : vector<16x15xf32> to vector<16x1xf32>
    %320 = vector.extract_strided_slice %12 {offsets = [0, 11], sizes = [16, 1], strides = [1, 1]} : vector<16x15xf32> to vector<16x1xf32>
    %cst_92 = arith.constant 0.000000e+00 : f32
    %321 = vector.broadcast %cst_92 : f32 to vector<16x1xf32>
    %322 = vector.extract_strided_slice %316 {offsets = [0, 0], sizes = [16, 383], strides = [1, 1]} : vector<16x384xf32> to vector<16x383xf32>
    %323 = tpu.concatenate %321, %322 in 1 : vector<16x1xf32>, vector<16x383xf32> -> vector<16x384xf32>
    %324 = vector.broadcast %1 : vector<1x384xf32> to vector<16x384xf32>
    %325 = arith.mulf %323, %324 : vector<16x384xf32>
    %326 = vector.extract_strided_slice %316 {offsets = [0, 1], sizes = [16, 383], strides = [1, 1]} : vector<16x384xf32> to vector<16x383xf32>
    %327 = tpu.concatenate %326, %321 in 1 : vector<16x383xf32>, vector<16x1xf32> -> vector<16x384xf32>
    %328 = vector.broadcast %2 : vector<1x384xf32> to vector<16x384xf32>
    %329 = arith.mulf %327, %328 : vector<16x384xf32>
    %330 = tpu.concatenate %325, %316, %329 in 0 : vector<16x384xf32>, vector<16x384xf32>, vector<16x384xf32> -> vector<48x384xf32>
    %c2 = arith.constant 2 : index
    %c0_93 = arith.constant 0 : index
    %c0_94 = arith.constant 0 : index
    %331 = vector.load %arg4[%c2, %c0_93, %c0_94] : memref<3x16x48xbf16, #tpu.memory_space<vmem>>, vector<1x16x48xbf16>
    %332 = vector.shape_cast %331 : vector<1x16x48xbf16> to vector<16x48xbf16>
    %333 = arith.truncf %330 : vector<48x384xf32> to vector<48x384xbf16>
    %cst_95 = arith.constant dense<0.000000e+00> : vector<16x384xf32>
    %334 = tpu.matmul %332, %333, %cst_95 {dimension_numbers = #tpu.dot_dimension_numbers<[1], [0], [0], [1], [0, 0, 1, 1], [], []>} : vector<16x48xbf16>, vector<48x384xbf16>, vector<16x384xf32> -> vector<16x384xf32>
    %335 = vector.broadcast %317 : vector<16x1xf32> to vector<16x384xf32>
    %336 = arith.addf %334, %335 : vector<16x384xf32>
    %cst_96 = arith.constant dense<0.000000e+00> : vector<16xf32>
    %337 = vector.multi_reduction <add>, %336, %cst_96 [1] : vector<16x384xf32> to vector<16xf32>
    %338 = vector.shape_cast %337 : vector<16xf32> to vector<16x1xf32>
    %cst_97 = arith.constant 0.00260416674 : f32
    %339 = vector.broadcast %cst_97 : f32 to vector<16x1xf32>
    %340 = arith.mulf %338, %339 : vector<16x1xf32>
    %341 = vector.broadcast %340 : vector<16x1xf32> to vector<16x384xf32>
    %342 = arith.subf %336, %341 : vector<16x384xf32>
    %343 = arith.mulf %342, %342 : vector<16x384xf32>
    %cst_98 = arith.constant dense<0.000000e+00> : vector<16xf32>
    %344 = vector.multi_reduction <add>, %343, %cst_98 [1] : vector<16x384xf32> to vector<16xf32>
    %345 = vector.shape_cast %344 : vector<16xf32> to vector<16x1xf32>
    %cst_99 = arith.constant 0.00260416674 : f32
    %346 = vector.broadcast %cst_99 : f32 to vector<16x1xf32>
    %347 = arith.mulf %345, %346 : vector<16x1xf32>
    %cst_100 = arith.constant 9.99999974E-6 : f32
    %348 = vector.broadcast %cst_100 : f32 to vector<16x1xf32>
    %349 = arith.addf %347, %348 : vector<16x1xf32>
    %350 = math.rsqrt %349 : vector<16x1xf32>
    %351 = arith.mulf %318, %350 : vector<16x1xf32>
    %352 = vector.broadcast %351 : vector<16x1xf32> to vector<16x384xf32>
    %353 = arith.mulf %342, %352 : vector<16x384xf32>
    %354 = vector.broadcast %319 : vector<16x1xf32> to vector<16x384xf32>
    %355 = arith.addf %353, %354 : vector<16x384xf32>
    %cst_101 = arith.constant 0.000000e+00 : f32
    %356 = vector.broadcast %cst_101 : f32 to vector<16x384xf32>
    %357 = arith.maximumf %355, %356 : vector<16x384xf32>
    %358 = vector.extract_strided_slice %11 {offsets = [0, 0], sizes = [1, 384], strides = [1, 1]} : vector<2x384xf32> to vector<1x384xf32>
    %359 = vector.broadcast %358 : vector<1x384xf32> to vector<16x384xf32>
    %360 = arith.mulf %357, %359 : vector<16x384xf32>
    %cst_102 = arith.constant dense<0.000000e+00> : vector<16xf32>
    %361 = vector.multi_reduction <add>, %360, %cst_102 [1] : vector<16x384xf32> to vector<16xf32>
    %362 = vector.shape_cast %361 : vector<16xf32> to vector<16x1xf32>
    %cst_103 = arith.constant 0.00520833349 : f32
    %363 = vector.broadcast %cst_103 : f32 to vector<16x1xf32>
    %364 = arith.mulf %362, %363 : vector<16x1xf32>
    %cst_104 = arith.constant 5.000000e-01 : f32
    %365 = vector.broadcast %cst_104 : f32 to vector<1x384xf32>
    %366 = arith.cmpf ogt, %358, %365 : vector<1x384xf32>
    %cst_105 = arith.constant -1.000000e+30 : f32
    %367 = vector.shape_cast %366 : vector<1x384xi1> to vector<1x384xi1>
    %368 = vector.broadcast %367 : vector<1x384xi1> to vector<16x384xi1>
    %369 = vector.broadcast %cst_105 : f32 to vector<16x384xf32>
    %370 = arith.select %368, %357, %369 : vector<16x384xi1>, vector<16x384xf32>
    %cst_106 = arith.constant dense<0xFF800000> : vector<16xf32>
    %371 = vector.multi_reduction <maximumf>, %370, %cst_106 [1] : vector<16x384xf32> to vector<16xf32>
    %372 = vector.shape_cast %371 : vector<16xf32> to vector<16x1xf32>
    %373 = tpu.concatenate %364, %372 in 0 : vector<16x1xf32>, vector<16x1xf32> -> vector<32x1xf32>
    %374 = vector.extract_strided_slice %11 {offsets = [1, 0], sizes = [1, 384], strides = [1, 1]} : vector<2x384xf32> to vector<1x384xf32>
    %375 = vector.broadcast %374 : vector<1x384xf32> to vector<16x384xf32>
    %376 = arith.mulf %357, %375 : vector<16x384xf32>
    %cst_107 = arith.constant dense<0.000000e+00> : vector<16xf32>
    %377 = vector.multi_reduction <add>, %376, %cst_107 [1] : vector<16x384xf32> to vector<16xf32>
    %378 = vector.shape_cast %377 : vector<16xf32> to vector<16x1xf32>
    %cst_108 = arith.constant 0.00520833349 : f32
    %379 = vector.broadcast %cst_108 : f32 to vector<16x1xf32>
    %380 = arith.mulf %378, %379 : vector<16x1xf32>
    %cst_109 = arith.constant 5.000000e-01 : f32
    %381 = vector.broadcast %cst_109 : f32 to vector<1x384xf32>
    %382 = arith.cmpf ogt, %374, %381 : vector<1x384xf32>
    %cst_110 = arith.constant -1.000000e+30 : f32
    %383 = vector.shape_cast %382 : vector<1x384xi1> to vector<1x384xi1>
    %384 = vector.broadcast %383 : vector<1x384xi1> to vector<16x384xi1>
    %385 = vector.broadcast %cst_110 : f32 to vector<16x384xf32>
    %386 = arith.select %384, %357, %385 : vector<16x384xi1>, vector<16x384xf32>
    %cst_111 = arith.constant dense<0xFF800000> : vector<16xf32>
    %387 = vector.multi_reduction <maximumf>, %386, %cst_111 [1] : vector<16x384xf32> to vector<16xf32>
    %388 = vector.shape_cast %387 : vector<16xf32> to vector<16x1xf32>
    %389 = tpu.concatenate %380, %388 in 0 : vector<16x1xf32>, vector<16x1xf32> -> vector<32x1xf32>
    %390 = tpu.concatenate %373, %389 in 1 : vector<32x1xf32>, vector<32x1xf32> -> vector<32x2xf32>
    %c2_112 = arith.constant 2 : index
    %c0_113 = arith.constant 0 : index
    %c0_114 = arith.constant 0 : index
    %391 = vector.load %arg5[%c2_112, %c0_113, %c0_114] : memref<3x16x32xbf16, #tpu.memory_space<vmem>>, vector<1x16x32xbf16>
    %392 = vector.shape_cast %391 : vector<1x16x32xbf16> to vector<16x32xbf16>
    %393 = arith.truncf %390 : vector<32x2xf32> to vector<32x2xbf16>
    %cst_115 = arith.constant dense<0.000000e+00> : vector<16x2xf32>
    %394 = tpu.matmul %392, %393, %cst_115 {dimension_numbers = #tpu.dot_dimension_numbers<[1], [0], [0], [1], [0, 0, 1, 1], [], []>} : vector<16x32xbf16>, vector<32x2xbf16>, vector<16x2xf32> -> vector<16x2xf32>
    %395 = vector.broadcast %320 : vector<16x1xf32> to vector<16x2xf32>
    %396 = arith.addf %394, %395 : vector<16x2xf32>
    %397 = arith.negf %396 : vector<16x2xf32>
    %398 = math.exp %397 : vector<16x2xf32>
    %cst_116 = arith.constant 1.000000e+00 : f32
    %399 = vector.broadcast %cst_116 : f32 to vector<16x2xf32>
    %400 = arith.addf %399, %398 : vector<16x2xf32>
    %401 = arith.divf %399, %400 : vector<16x2xf32>
    %402 = vector.extract_strided_slice %401 {offsets = [0, 0], sizes = [16, 1], strides = [1, 1]} : vector<16x2xf32> to vector<16x1xf32>
    %403 = vector.extract_strided_slice %11 {offsets = [0, 0], sizes = [1, 384], strides = [1, 1]} : vector<2x384xf32> to vector<1x384xf32>
    %404 = vector.broadcast %402 : vector<16x1xf32> to vector<16x384xf32>
    %405 = vector.broadcast %403 : vector<1x384xf32> to vector<16x384xf32>
    %406 = arith.mulf %404, %405 : vector<16x384xf32>
    %407 = vector.extract_strided_slice %401 {offsets = [0, 1], sizes = [16, 1], strides = [1, 1]} : vector<16x2xf32> to vector<16x1xf32>
    %408 = vector.extract_strided_slice %11 {offsets = [1, 0], sizes = [1, 384], strides = [1, 1]} : vector<2x384xf32> to vector<1x384xf32>
    %409 = vector.broadcast %407 : vector<16x1xf32> to vector<16x384xf32>
    %410 = vector.broadcast %408 : vector<1x384xf32> to vector<16x384xf32>
    %411 = arith.mulf %409, %410 : vector<16x384xf32>
    %412 = arith.addf %406, %411 : vector<16x384xf32>
    %413 = arith.mulf %357, %412 : vector<16x384xf32>
    %cst_117 = arith.constant dense<0.000000e+00> : vector<384xf32>
    %414 = vector.multi_reduction <add>, %413, %cst_117 [0] : vector<16x384xf32> to vector<384xf32>
    %415 = vector.shape_cast %414 : vector<384xf32> to vector<1x384xf32>
    %cst_118 = arith.constant 1.600000e+01 : f32
    %416 = vector.broadcast %cst_118 : f32 to vector<1x384xf32>
    %417 = arith.divf %415, %416 : vector<1x384xf32>
    %cst_119 = arith.constant dense<0xFF800000> : vector<384xf32>
    %418 = vector.multi_reduction <maximumf>, %413, %cst_119 [0] : vector<16x384xf32> to vector<384xf32>
    %419 = vector.shape_cast %418 : vector<384xf32> to vector<1x384xf32>
    %420 = vector.extract_strided_slice %417 {offsets = [0, 0], sizes = [1, 192], strides = [1, 1]} : vector<1x384xf32> to vector<1x192xf32>
    %421 = vector.extract_strided_slice %419 {offsets = [0, 0], sizes = [1, 192], strides = [1, 1]} : vector<1x384xf32> to vector<1x192xf32>
    %422 = tpu.concatenate %420, %421 in 1 : vector<1x192xf32>, vector<1x192xf32> -> vector<1x384xf32>
    %423 = vector.extract_strided_slice %417 {offsets = [0, 192], sizes = [1, 192], strides = [1, 1]} : vector<1x384xf32> to vector<1x192xf32>
    %424 = vector.extract_strided_slice %419 {offsets = [0, 192], sizes = [1, 192], strides = [1, 1]} : vector<1x384xf32> to vector<1x192xf32>
    %425 = tpu.concatenate %423, %424 in 1 : vector<1x192xf32>, vector<1x192xf32> -> vector<1x384xf32>
    %426 = tpu.concatenate %422, %425 in 0 : vector<1x384xf32>, vector<1x384xf32> -> vector<2x384xf32>
    %c2_120 = arith.constant 2 : index
    %c0_121 = arith.constant 0 : index
    %c0_122 = arith.constant 0 : index
    %427 = vector.load %arg6[%c2_120, %c0_121, %c0_122] : memref<3x384x192xbf16, #tpu.memory_space<vmem>>, vector<1x384x192xbf16>
    %428 = vector.shape_cast %427 : vector<1x384x192xbf16> to vector<384x192xbf16>
    %429 = arith.truncf %426 : vector<2x384xf32> to vector<2x384xbf16>
    %cst_123 = arith.constant dense<0.000000e+00> : vector<2x192xf32>
    %430 = tpu.matmul %429, %428, %cst_123 {dimension_numbers = #tpu.dot_dimension_numbers<[1], [0], [0], [1], [0, 0, 1, 1], [], []>} : vector<2x384xbf16>, vector<384x192xbf16>, vector<2x192xf32> -> vector<2x192xf32>
    %431 = vector.extract_strided_slice %430 {offsets = [0, 0], sizes = [1, 192], strides = [1, 1]} : vector<2x192xf32> to vector<1x192xf32>
    %432 = vector.extract_strided_slice %430 {offsets = [1, 0], sizes = [1, 192], strides = [1, 1]} : vector<2x192xf32> to vector<1x192xf32>
    %433 = tpu.concatenate %431, %432 in 1 : vector<1x192xf32>, vector<1x192xf32> -> vector<1x384xf32>
    %434 = arith.addf %433, %10 : vector<1x384xf32>
    %435 = arith.negf %434 : vector<1x384xf32>
    %436 = math.exp %435 : vector<1x384xf32>
    %cst_124 = arith.constant 1.000000e+00 : f32
    %437 = vector.broadcast %cst_124 : f32 to vector<1x384xf32>
    %438 = arith.addf %437, %436 : vector<1x384xf32>
    %439 = arith.divf %437, %438 : vector<1x384xf32>
    %440 = vector.broadcast %439 : vector<1x384xf32> to vector<16x384xf32>
    %441 = arith.mulf %413, %440 : vector<16x384xf32>
    %442 = arith.addf %441, %316 : vector<16x384xf32>
    %443 = arith.truncf %442 : vector<16x384xf32> to vector<16x384xbf16>
    %cst_125 = arith.constant dense<0.000000e+00> : vector<16x24xf32>
    %444 = tpu.matmul %443, %13, %cst_125 {dimension_numbers = #tpu.dot_dimension_numbers<[1], [0], [0], [1], [0, 0, 1, 1], [], []>} : vector<16x384xbf16>, vector<384x24xbf16>, vector<16x24xf32> -> vector<16x24xf32>
    %445 = arith.truncf %444 : vector<16x24xf32> to vector<16x24xbf16>
    %cst_126 = arith.constant dense<0.000000e+00> : vector<16x384xf32>
    %446 = tpu.matmul %445, %14, %cst_126 {dimension_numbers = #tpu.dot_dimension_numbers<[1], [0], [0], [1], [0, 0, 1, 1], [], []>} : vector<16x24xbf16>, vector<24x384xbf16>, vector<16x384xf32> -> vector<16x384xf32>
    %447 = arith.subf %442, %446 : vector<16x384xf32>
    %448 = arith.mulf %447, %447 : vector<16x384xf32>
    %449 = arith.truncf %448 : vector<16x384xf32> to vector<16x384xbf16>
    %cst_127 = arith.constant dense<0.000000e+00> : vector<16x24xf32>
    %450 = tpu.matmul %449, %13, %cst_127 {dimension_numbers = #tpu.dot_dimension_numbers<[1], [0], [0], [1], [0, 0, 1, 1], [], []>} : vector<16x384xbf16>, vector<384x24xbf16>, vector<16x24xf32> -> vector<16x24xf32>
    %cst_128 = arith.constant 9.99999974E-6 : f32
    %451 = vector.broadcast %cst_128 : f32 to vector<16x24xf32>
    %452 = arith.addf %450, %451 : vector<16x24xf32>
    %453 = math.rsqrt %452 : vector<16x24xf32>
    %454 = arith.truncf %453 : vector<16x24xf32> to vector<16x24xbf16>
    %cst_129 = arith.constant dense<0.000000e+00> : vector<16x384xf32>
    %455 = tpu.matmul %454, %14, %cst_129 {dimension_numbers = #tpu.dot_dimension_numbers<[1], [0], [0], [1], [0, 0, 1, 1], [], []>} : vector<16x24xbf16>, vector<24x384xbf16>, vector<16x384xf32> -> vector<16x384xf32>
    %456 = arith.mulf %447, %455 : vector<16x384xf32>
    %457 = vector.broadcast %6 : vector<1x384xf32> to vector<16x384xf32>
    %458 = arith.mulf %456, %457 : vector<16x384xf32>
    %459 = vector.broadcast %7 : vector<1x384xf32> to vector<16x384xf32>
    %460 = arith.addf %458, %459 : vector<16x384xf32>
    %c0_130 = arith.constant 0 : index
    %c0_131 = arith.constant 0 : index
    %461 = vector.load %arg11[%c0_130, %c0_131] : memref<16x16xbf16, #tpu.memory_space<vmem>>, vector<16x16xbf16>
    %462 = arith.truncf %460 : vector<16x384xf32> to vector<16x384xbf16>
    %cst_132 = arith.constant dense<0.000000e+00> : vector<16x384xf32>
    %463 = tpu.matmul %461, %462, %cst_132 {dimension_numbers = #tpu.dot_dimension_numbers<[1], [0], [0], [1], [0, 0, 1, 1], [], []>} : vector<16x16xbf16>, vector<16x384xbf16>, vector<16x384xf32> -> vector<16x384xf32>
    %464 = vector.extract_strided_slice %12 {offsets = [0, 14], sizes = [16, 1], strides = [1, 1]} : vector<16x15xf32> to vector<16x1xf32>
    %465 = vector.broadcast %464 : vector<16x1xf32> to vector<16x384xf32>
    %466 = arith.addf %463, %465 : vector<16x384xf32>
    %c0_133 = arith.constant 0 : index
    %c0_134 = arith.constant 0 : index
    %467 = vector.load %arg12[%c0_133, %c0_134] : memref<16x384xf32, #tpu.memory_space<vmem>>, vector<16x384xf32>
    tpu.vector_store %arg12[%c0_133, %c0_134], %466 {strides = array<i32>} : memref<16x384xf32, #tpu.memory_space<vmem>>, vector<16x384xf32>,
    return
  }
  func.func @transform_0(%arg0: i32) -> (i32, i32) {
    %c0_i32 = arith.constant 0 : i32
    %c0_i32_0 = arith.constant 0 : i32
    %c0_i32_1 = arith.constant 0 : i32
    return %c0_i32, %c0_i32_0 : i32, i32
  }
  func.func @transform_1(%arg0: i32) -> (i32, i32) {
    %c0_i32 = arith.constant 0 : i32
    %c0_i32_0 = arith.constant 0 : i32
    %c0_i32_1 = arith.constant 0 : i32
    return %c0_i32, %c0_i32_0 : i32, i32
  }
  func.func @transform_2(%arg0: i32) -> (i32, i32) {
    %c0_i32 = arith.constant 0 : i32
    %c0_i32_0 = arith.constant 0 : i32
    %c0_i32_1 = arith.constant 0 : i32
    return %c0_i32, %c0_i32_0 : i32, i32
  }
  func.func @transform_3(%arg0: i32) -> (i32, i32, i32) {
    %c0_i32 = arith.constant 0 : i32
    %c0_i32_0 = arith.constant 0 : i32
    %c0_i32_1 = arith.constant 0 : i32
    %c0_i32_2 = arith.constant 0 : i32
    return %c0_i32, %c0_i32_0, %c0_i32_1 : i32, i32, i32
  }
  func.func @transform_4(%arg0: i32) -> (i32, i32, i32) {
    %c0_i32 = arith.constant 0 : i32
    %c0_i32_0 = arith.constant 0 : i32
    %c0_i32_1 = arith.constant 0 : i32
    %c0_i32_2 = arith.constant 0 : i32
    return %c0_i32, %c0_i32_0, %c0_i32_1 : i32, i32, i32
  }
  func.func @transform_5(%arg0: i32) -> (i32, i32, i32) {
    %c0_i32 = arith.constant 0 : i32
    %c0_i32_0 = arith.constant 0 : i32
    %c0_i32_1 = arith.constant 0 : i32
    %c0_i32_2 = arith.constant 0 : i32
    return %c0_i32, %c0_i32_0, %c0_i32_1 : i32, i32, i32
  }
  func.func @transform_6(%arg0: i32) -> (i32, i32) {
    %c0_i32 = arith.constant 0 : i32
    %c0_i32_0 = arith.constant 0 : i32
    %c0_i32_1 = arith.constant 0 : i32
    return %c0_i32, %c0_i32_0 : i32, i32
  }
  func.func @transform_7(%arg0: i32) -> (i32, i32) {
    %c0_i32 = arith.constant 0 : i32
    %c0_i32_0 = arith.constant 0 : i32
    %c0_i32_1 = arith.constant 0 : i32
    return %c0_i32, %c0_i32_0 : i32, i32
  }
  func.func @transform_8(%arg0: i32) -> (i32, i32) {
    %c0_i32 = arith.constant 0 : i32
    %c0_i32_0 = arith.constant 0 : i32
    %c0_i32_1 = arith.constant 0 : i32
    return %c0_i32, %c0_i32_0 : i32, i32
  }
  func.func @transform_9(%arg0: i32) -> (i32, i32) {
    %c0_i32 = arith.constant 0 : i32
    %c0_i32_0 = arith.constant 0 : i32
    %c0_i32_1 = arith.constant 0 : i32
    return %c0_i32, %c0_i32_0 : i32, i32
  }
  func.func @transform_10(%arg0: i32) -> (i32, i32) {
    %c0_i32 = arith.constant 0 : i32
    %c0_i32_0 = arith.constant 0 : i32
    %c0_i32_1 = arith.constant 0 : i32
    return %c0_i32, %c0_i32_0 : i32, i32
  }
  func.func @transform_11(%arg0: i32) -> (i32, i32) {
    %c0_i32 = arith.constant 0 : i32
    %c0_i32_0 = arith.constant 0 : i32
    %c0_i32_1 = arith.constant 0 : i32
    return %c0_i32, %c0_i32_0 : i32, i32
  }
}

</mosaic_0001>

<llo_original>
// kernel: tile.40
$region0: #{tile.40}
  #allocation0 [shape = 's32[1]{0}', space=sflag, size = 0x4, scoped, tag = 'scoped memory for tile.40']
  %s0 = inlined_call_operand.vmem [shape: f32[16], index: 0, kind: input, shape index: {}]
  %s1 = inlined_call_operand.vmem [shape: f32[24,16], index: 1, kind: output, shape index: {}]
  // Predicated region
  $region2: #{tile.40} parent=0 // pred_check
    _
  $region3: #{tile.40} parent=0 // pred_check_branch
    %3 = sbr.rel (0) target = $region5
  $region4: #{tile.40} parent=0 // pred_region
    _
  $region5: #{tile.40} parent=0 // pred_fallthru
    _
  %v4 = vld [vmem:[%s0] ss:$0 sm:$0xff]
  %5 = vst [vmem:[%s1] sm:$0xff] %v4
  %s6 = scalar_lea.vmem %s1, 8
  %7 = vst [vmem:[%s6] sm:$0xff] %v4
  %s8 = scalar_lea.vmem %s1, 16
  %9 = vst [vmem:[%s8] sm:$0xff] %v4

// kernel: tile.41
$region0: #{tile.41}
  %s0 = inlined_call_operand.vmem [shape: f32[24,16], index: 0, kind: input, shape index: {}]
  %s1 = inlined_call_operand.vmem [shape: f32[1,384], index: 1, kind: output, shape index: {}]
  $region1: #{tile.41} parent=0
    #allocation0 [shape = 'u8[12288]{0}', space=vmem, size = 0x3000, scoped, tag = 'scoped mem for output reshape']
    %v2 = vld [vmem:[%s0] ss:$8 sm:$0x7]
    %vm3 = vcmask 130048
    %4 = vst.msk [vmem:[#allocation0] ss:$8 sm:$0x7] %vm3, %v2
    %s5 = scalar_lea.vmem %s0, 7
    %v6 = vld [vmem:[%s5] ss:$8 sm:$0x7]
    %7 = vrot.lane.b32.xlu0 %v6, 112
    %v8 = vpop.permute.xlu0 %7
    %vm9 = vcmask 1048448
    %10 = vst.msk [vmem:[#allocation0] ss:$8 sm:$0x7] %vm9, %v8
    %s11 = scalar_lea.vmem %s0, 6
    %v12 = vld [vmem:[%s11] ss:$8 sm:$0x7]
    %13 = vrot.lane.b32.xlu0 %v12, 96
    %v14 = vpop.permute.xlu0 %13
    %vm15 = vcmask 917248
    %16 = vst.msk [vmem:[#allocation0] ss:$8 sm:$0x7] %vm15, %v14
    %s17 = scalar_lea.vmem %s0, 5
    %v18 = vld [vmem:[%s17] ss:$8 sm:$0x7]
    %19 = vrot.lane.b32.xlu0 %v18, 80
    %v20 = vpop.permute.xlu0 %19
    %vm21 = vcmask 786048
    %22 = vst.msk [vmem:[#allocation0] ss:$8 sm:$0x7] %vm21, %v20
    %s23 = scalar_lea.vmem %s0, 4
    %v24 = vld [vmem:[%s23] ss:$8 sm:$0x7]
    %25 = vrot.lane.b32.xlu0 %v24, 64
    %v26 = vpop.permute.xlu0 %25
    %vm27 = vcmask 654848
    %28 = vst.msk [vmem:[#allocation0] ss:$8 sm:$0x7] %vm27, %v26
    %s29 = scalar_lea.vmem %s0, 3
    %v30 = vld [vmem:[%s29] ss:$8 sm:$0x7]
    %31 = vrot.lane.b32.xlu0 %v30, 48
    %v32 = vpop.permute.xlu0 %31
    %vm33 = vcmask 523648
    %34 = vst.msk [vmem:[#allocation0] ss:$8 sm:$0x7] %vm33, %v32
    %s35 = scalar_lea.vmem %s0, 2
    %v36 = vld [vmem:[%s35] ss:$8 sm:$0x7]
    %37 = vrot.lane.b32.xlu0 %v36, 32
    %v38 = vpop.permute.xlu0 %37
    %vm39 = vcmask 392448
    %40 = vst.msk [vmem:[#allocation0] ss:$8 sm:$0x7] %vm39, %v38
    %s41 = scalar_lea.vmem %s0, 1
    %v42 = vld [vmem:[%s41] ss:$8 sm:$0x7]
    %43 = vrot.lane.b32.xlu0 %v42, 16
    %v44 = vpop.permute.xlu0 %43
    %vm45 = vcmask 261248
    %46 = vst.msk [vmem:[#allocation0] ss:$8 sm:$0x7] %vm45, %v44
    %s48 = sshllo.u32 0, 1
    %v50 = vld [vmem:[#allocation0] sm:%s48]
    %s51 = sshllo.u32 0, 1
    %52 = vst [vmem:[%s1] sm:%s51] %v50
    %s53 = scalar_lea.vmem [#allocation0], 8
    %v54 = vld [vmem:[%s53] sm:%s48]
    %s55 = sshllo.u32 0, 1
    %s56 = scalar_lea.vmem %s1, 1
    %57 = vst [vmem:[%s56] sm:%s55] %v54
    %s58 = scalar_lea.vmem [#allocation0], 16
    %v59 = vld [vmem:[%s58] sm:%s48]
    %s60 = sshllo.u32 0, 1
    %s61 = smul.addr 1, 2
    %s62 = scalar_lea.vmem %s1, %s61
    %63 = vst [vmem:[%s62] sm:%s60] %v59

// kernel: tile.63
$region0: #{tile.63}
  %s0 = inlined_call_operand.vmem [shape: f32[12,16], index: 0, kind: input, shape index: {}]
  %s1 = inlined_call_operand.vmem [shape: f32[192], index: 1, kind: output, shape index: {}]
  $region1: #{tile.63} parent=0
    #allocation0 [shape = 'u8[4096]{0}', space=vmem, size = 0x1000, scoped, tag = 'scoped mem for output reshape']
    %s2 = smov 3
    %v3 = vld [vmem:[%s0] ss:$8 sm:%s2]
    %vm4 = vcmask 130048
    %5 = vst.msk [vmem:[#allocation0] sm:$0x3] %vm4, %v3
    %s6 = scalar_lea.vmem %s0, 7
    %v7 = vld [vmem:[%s6] sm:$0x1]
    %8 = vrot.lane.b32.xlu0 %v7, 112
    %v9 = vpop.permute.xlu0 %8
    %vm10 = vcmask 1048448
    %11 = vst.msk [vmem:[#allocation0] sm:$0x1] %vm10, %v9
    %s12 = scalar_lea.vmem %s0, 6
    %v13 = vld [vmem:[%s12] sm:$0x1]
    %14 = vrot.lane.b32.xlu0 %v13, 96
    %v15 = vpop.permute.xlu0 %14
    %vm16 = vcmask 917248
    %17 = vst.msk [vmem:[#allocation0] sm:$0x1] %vm16, %v15
    %s18 = scalar_lea.vmem %s0, 5
    %v19 = vld [vmem:[%s18] sm:$0x1]
    %20 = vrot.lane.b32.xlu0 %v19, 80
    %v21 = vpop.permute.xlu0 %20
    %vm22 = vcmask 786048
    %23 = vst.msk [vmem:[#allocation0] sm:$0x1] %vm22, %v21
    %s24 = scalar_lea.vmem %s0, 4
    %v25 = vld [vmem:[%s24] sm:$0x1]
    %26 = vrot.lane.b32.xlu0 %v25, 64
    %v27 = vpop.permute.xlu0 %26
    %vm28 = vcmask 654848
    %29 = vst.msk [vmem:[#allocation0] sm:$0x1] %vm28, %v27
    %s30 = scalar_lea.vmem %s0, 3
    %s31 = smov 3
    %v32 = vld [vmem:[%s30] ss:$8 sm:%s31]
    %33 = vrot.lane.b32.xlu0 %v32, 48
    %v34 = vpop.permute.xlu0 %33
    %vm35 = vcmask 523648
    %36 = vst.msk [vmem:[#allocation0] sm:$0x3] %vm35, %v34
    %s37 = scalar_lea.vmem %s0, 2
    %s38 = smov 3
    %v39 = vld [vmem:[%s37] ss:$8 sm:%s38]
    %40 = vrot.lane.b32.xlu0 %v39, 32
    %v41 = vpop.permute.xlu0 %40
    %vm42 = vcmask 392448
    %43 = vst.msk [vmem:[#allocation0] sm:$0x3] %vm42, %v41
    %s44 = scalar_lea.vmem %s0, 1
    %s45 = smov 3
    %v46 = vld [vmem:[%s44] ss:$8 sm:%s45]
    %47 = vrot.lane.b32.xlu0 %v46, 16
    %v48 = vpop.permute.xlu0 %47
    %vm49 = vcmask 261248
    %50 = vst.msk [vmem:[#allocation0] sm:$0x3] %vm49, %v48
    %s52 = sshllo.u32 0, 2
    %v54 = vld [vmem:[#allocation0] sm:%s52]
    %s55 = sshllo.u32 0, 2
    %56 = vst [vmem:[%s1] sm:%s55] %v54

// kernel: tile.64
$region0: #{tile.64}
  #allocation0 [shape = 's32[1]{0}', space=sflag, size = 0x4, scoped, tag = 'scoped memory for tile.64']
  %s0 = inlined_call_operand.vmem [shape: f32[192], index: 0, kind: input, shape index: {}]
  %s1 = inlined_call_operand.vmem [shape: f32[2,192], index: 1, kind: output, shape index: {}]
  // Predicated region
  $region2: #{tile.64} parent=0 // pred_check
    _
  $region3: #{tile.64} parent=0 // pred_check_branch
    %3 = sbr.rel (0) target = $region5
  $region4: #{tile.64} parent=0 // pred_region
    _
  $region5: #{tile.64} parent=0 // pred_fallthru
    _
  %v4 = vld [vmem:[%s0] ss:$0 sm:$0xff]
  %5 = vst [vmem:[%s1] sm:$0x3] %v4
  %s6 = scalar_lea.vmem %s0, 1
  %v7 = vld [vmem:[%s6] ss:$0 sm:$0xff]
  %s8 = scalar_lea.vmem %s1, 2
  %9 = vst [vmem:[%s8] sm:$0x3] %v7

// kernel: tile.65
$region0: #{tile.65}
  %s0 = inlined_call_operand.vmem [shape: f32[2,192], index: 0, kind: input, shape index: {}]
  %s1 = inlined_call_operand.vmem [shape: f32[1,384], index: 1, kind: output, shape index: {}]
  $region1: #{tile.65} parent=0
    #allocation0 [shape = 'u8[12288]{0}', space=vmem, size = 0x3000, scoped, tag = 'scoped mem for output reshape']
    #allocation1 [shape = 'u8[8192]{0}', space=vmem, size = 0x2000, scoped, tag = 'scoped mem for input reshape']
    %s3 = sshllo.u32 0, 2
    %s4 = scalar_lea.vmem %s0, 2
    %v5 = vld [vmem:[%s4] sm:%s3]
    %s6 = scalar_lea.vmem [#allocation1], 8
    %7 = vst [vmem:[%s6] sm:%s3] %v5
    %v8 = vld [vmem:[%s0] sm:%s3]
    %9 = vst [vmem:[#allocation1] sm:%s3] %v8
    %s10 = scalar_lea.vmem [#allocation1], 8
    %v11 = vld [vmem:[%s10] sm:$0x1]
    %vm12 = vcmask 523264
    %s13 = scalar_lea.vmem [#allocation0], 8
    %14 = vst.msk [vmem:[%s13] sm:$0x1] %vm12, %v11
    %v15 = vld [vmem:[#allocation1] sm:$0x1]
    %16 = vst [vmem:[#allocation0] sm:$0x1] %v15
    %s17 = scalar_lea.vmem [#allocation1], 1
    %v18 = vld [vmem:[%s17] sm:$0x1]
    %s19 = scalar_lea.vmem [#allocation1], 1
    %s20 = smov 3
    %v21 = vld [vmem:[%s19] ss:$8 sm:%s20]
    %vm22 = vcmask 523264
    %v23 = vsel %vm22, %v21, %v18
    %24 = vrot.lane.b32.xlu0 %v23, 64
    %v25 = vpop.permute.xlu0 %24
    %vm26 = vcmask 523264
    %s27 = scalar_lea.vmem [#allocation0], 16
    %28 = vst.msk [vmem:[%s27] sm:$0x1] %vm26, %v25
    %vm29 = vcmask 1048064
    %s30 = scalar_lea.vmem [#allocation0], 8
    %31 = vst.msk [vmem:[%s30] ss:$8 sm:$0x3] %vm29, %v25
    %s33 = sshllo.u32 0, 1
    %v35 = vld [vmem:[#allocation0] sm:%s33]
    %s36 = sshllo.u32 0, 1
    %37 = vst [vmem:[%s1] sm:%s36] %v35
    %s38 = scalar_lea.vmem [#allocation0], 8
    %v39 = vld [vmem:[%s38] sm:%s33]
    %s40 = sshllo.u32 0, 1
    %s41 = scalar_lea.vmem %s1, 1
    %42 = vst [vmem:[%s41] sm:%s40] %v39
    %s43 = scalar_lea.vmem [#allocation0], 16
    %v44 = vld [vmem:[%s43] sm:%s33]
    %s45 = sshllo.u32 0, 1
    %s46 = smul.addr 1, 2
    %s47 = scalar_lea.vmem %s1, %s46
    %48 = vst [vmem:[%s47] sm:%s45] %v44

// kernel: mp_d_forward.1
$region0: #{mp_d_forward.1}
  #allocation0 [shape = 'u32[]', space=smem, size = 0x4, offset = 0x4, fixed_abs, tag = 'smem constant byte address 0x4 - core index']
  #allocation1 [shape = 'u32[144,128]{1,0:T(1,128)}', space=vmem, size = 0x12000, scoped, tag = 'internal scratch']
  %s0 = inlined_call_operand.vmem [shape: f32[16,384], index: 0, kind: input, shape index: {}]
  %s1 = inlined_call_operand.vmem [shape: f32[12,384], index: 1, kind: input, shape index: {}]
  %s2 = inlined_call_operand.vmem [shape: f32[16,15], index: 2, kind: input, shape index: {}]
  %s3 = inlined_call_operand.vmem [shape: bf16[3,16,48], index: 3, kind: input, shape index: {}]
  %s4 = inlined_call_operand.vmem [shape: bf16[3,16,32], index: 4, kind: input, shape index: {}]
  %s5 = inlined_call_operand.vmem [shape: bf16[3,384,192], index: 5, kind: input, shape index: {}]
  %s6 = inlined_call_operand.vmem [shape: bf16[16,16], index: 6, kind: input, shape index: {}]
  %s7 = inlined_call_operand.vmem [shape: bf16[384,384], index: 7, kind: input, shape index: {}]
  %s8 = inlined_call_operand.vmem [shape: bf16[384,24], index: 8, kind: input, shape index: {}]
  %s9 = inlined_call_operand.vmem [shape: bf16[24,384], index: 9, kind: input, shape index: {}]
  %s10 = inlined_call_operand.vmem [shape: bf16[16,16], index: 10, kind: input, shape index: {}]
  %s11 = inlined_call_operand.vmem [shape: f32[16,384], index: 11, kind: output, shape index: {}]
  %s12 = sld [smem:[#allocation0]]
  $region54: #{mp_d_forward.1} parent=0
    _
  %s14 = ssub.s32 1, %s12
  %s15 = scalar_select 0, %s14, %s12
  // Predicated region
  $region2: #{mp_d_forward.1} parent=0 // pred_check
    _
  $region3: #{mp_d_forward.1} parent=0 // pred_check_branch
    %17 = sbr.rel (0) target = $region5
  $region4: #{mp_d_forward.1} parent=0 // pred_region
    _
  $region5: #{mp_d_forward.1} parent=0 // pred_fallthru
    _
  // Predicated region
  $region6: #{mp_d_forward.1} parent=0 // pred_check
    _
  $region7: #{mp_d_forward.1} parent=0 // pred_check_branch
    %19 = sbr.rel (0) target = $region9
  $region8: #{mp_d_forward.1} parent=0 // pred_region
    _
  $region9: #{mp_d_forward.1} parent=0 // pred_fallthru
    _
  // Predicated region
  $region10: #{mp_d_forward.1} parent=0 // pred_check
    _
  $region11: #{mp_d_forward.1} parent=0 // pred_check_branch
    %21 = sbr.rel (0) target = $region13
  $region12: #{mp_d_forward.1} parent=0 // pred_region
    _
  $region13: #{mp_d_forward.1} parent=0 // pred_fallthru
    _
  // Predicated region
  $region14: #{mp_d_forward.1} parent=0 // pred_check
    _
  $region15: #{mp_d_forward.1} parent=0 // pred_check_branch
    %23 = sbr.rel (0) target = $region17
  $region16: #{mp_d_forward.1} parent=0 // pred_region
    _
  $region17: #{mp_d_forward.1} parent=0 // pred_fallthru
    _
  // Predicated region
  $region18: #{mp_d_forward.1} parent=0 // pred_check
    _
  $region19: #{mp_d_forward.1} parent=0 // pred_check_branch
    %25 = sbr.rel (0) target = $region21
  $region20: #{mp_d_forward.1} parent=0 // pred_region
    _
  $region21: #{mp_d_forward.1} parent=0 // pred_fallthru
    _
  // Predicated region
  $region22: #{mp_d_forward.1} parent=0 // pred_check
    _
  $region23: #{mp_d_forward.1} parent=0 // pred_check_branch
    %27 = sbr.rel (0) target = $region25
  $region24: #{mp_d_forward.1} parent=0 // pred_region
    _
  $region25: #{mp_d_forward.1} parent=0 // pred_fallthru
    _
  // Predicated region
  $region26: #{mp_d_forward.1} parent=0 // pred_check
    _
  $region27: #{mp_d_forward.1} parent=0 // pred_check_branch
    %29 = sbr.rel (0) target = $region29
  $region28: #{mp_d_forward.1} parent=0 // pred_region
    _
  $region29: #{mp_d_forward.1} parent=0 // pred_fallthru
    _
  // Predicated region
  $region30: #{mp_d_forward.1} parent=0 // pred_check
    _
  $region31: #{mp_d_forward.1} parent=0 // pred_check_branch
    %31 = sbr.rel (0) target = $region33
  $region32: #{mp_d_forward.1} parent=0 // pred_region
    _
  $region33: #{mp_d_forward.1} parent=0 // pred_fallthru
    _
  // Predicated region
  $region34: #{mp_d_forward.1} parent=0 // pred_check
    _
  $region35: #{mp_d_forward.1} parent=0 // pred_check_branch
    %33 = sbr.rel (0) target = $region37
  $region36: #{mp_d_forward.1} parent=0 // pred_region
    _
  $region37: #{mp_d_forward.1} parent=0 // pred_fallthru
    _
  // Predicated region
  $region38: #{mp_d_forward.1} parent=0 // pred_check
    _
  $region39: #{mp_d_forward.1} parent=0 // pred_check_branch
    %35 = sbr.rel (0) target = $region41
  $region40: #{mp_d_forward.1} parent=0 // pred_region
    _
  $region41: #{mp_d_forward.1} parent=0 // pred_fallthru
    _
  // Predicated region
  $region42: #{mp_d_forward.1} parent=0 // pred_check
    _
  $region43: #{mp_d_forward.1} parent=0 // pred_check_branch
    %37 = sbr.rel (0) target = $region45
  $region44: #{mp_d_forward.1} parent=0 // pred_region
    _
  $region45: #{mp_d_forward.1} parent=0 // pred_fallthru
    _
  %v39 = vld [vmem:[%s1] sm:$0xff]
  %v40 = vld [vmem:[%s1 + $0x8] sm:$0xff]
  %v41 = vld [vmem:[%s1 + $0x10] sm:$0xff]
  %v42 = vld [vmem:[%s1 + $0x18] sm:$0xf]
  %v43 = vld [vmem:[%s1 + $0x20] sm:$0xf]
  %v44 = vld [vmem:[%s1 + $0x28] sm:$0xf]
  %v45 = vld [vmem:[%s2] sm:$0xff]
  %v46 = vld [vmem:[%s2 + $0x8] sm:$0xff]
  %v47 = vld [vmem:[%s8] sm:$0xf]
  %v48 = vld [vmem:[%s8 + $0x4] sm:$0xf]
  %v49 = vld [vmem:[%s8 + $0x8] sm:$0xf]
  %v50 = vld [vmem:[%s8 + $0xc] sm:$0xf]
  %v51 = vld [vmem:[%s8 + $0x10] sm:$0xf]
  %v52 = vld [vmem:[%s8 + $0x14] sm:$0xf]
  %v53 = vld [vmem:[%s8 + $0x18] sm:$0xf]
  %v54 = vld [vmem:[%s8 + $0x1c] sm:$0xf]
  %v55 = vld [vmem:[%s8 + $0x20] sm:$0xf]
  %v56 = vld [vmem:[%s8 + $0x24] sm:$0xf]
  %v57 = vld [vmem:[%s8 + $0x28] sm:$0xf]
  %v58 = vld [vmem:[%s8 + $0x2c] sm:$0xf]
  %v59 = vld [vmem:[%s8 + $0x30] sm:$0xf]
  %v60 = vld [vmem:[%s8 + $0x34] sm:$0xf]
  %v61 = vld [vmem:[%s8 + $0x38] sm:$0xf]
  %v62 = vld [vmem:[%s8 + $0x3c] sm:$0xf]
  %v63 = vld [vmem:[%s8 + $0x40] sm:$0xf]
  %v64 = vld [vmem:[%s8 + $0x44] sm:$0xf]
  %v65 = vld [vmem:[%s8 + $0x48] sm:$0xf]
  %v66 = vld [vmem:[%s8 + $0x4c] sm:$0xf]
  %v67 = vld [vmem:[%s8 + $0x50] sm:$0xf]
  %v68 = vld [vmem:[%s8 + $0x54] sm:$0xf]
  %v69 = vld [vmem:[%s8 + $0x58] sm:$0xf]
  %v70 = vld [vmem:[%s8 + $0x5c] sm:$0xf]
  %v71 = vld [vmem:[%s8 + $0x60] sm:$0xf]
  %v72 = vld [vmem:[%s8 + $0x64] sm:$0xf]
  %v73 = vld [vmem:[%s8 + $0x68] sm:$0xf]
  %v74 = vld [vmem:[%s8 + $0x6c] sm:$0xf]
  %v75 = vld [vmem:[%s8 + $0x70] sm:$0xf]
  %v76 = vld [vmem:[%s8 + $0x74] sm:$0xf]
  %v77 = vld [vmem:[%s8 + $0x78] sm:$0xf]
  %v78 = vld [vmem:[%s8 + $0x7c] sm:$0xf]
  %v79 = vld [vmem:[%s8 + $0x80] sm:$0xf]
  %v80 = vld [vmem:[%s8 + $0x84] sm:$0xf]
  %v81 = vld [vmem:[%s8 + $0x88] sm:$0xf]
  %v82 = vld [vmem:[%s8 + $0x8c] sm:$0xf]
  %v83 = vld [vmem:[%s8 + $0x90] sm:$0xf]
  %v84 = vld [vmem:[%s8 + $0x94] sm:$0xf]
  %v85 = vld [vmem:[%s8 + $0x98] sm:$0xf]
  %v86 = vld [vmem:[%s8 + $0x9c] sm:$0xf]
  %v87 = vld [vmem:[%s8 + $0xa0] sm:$0xf]
  %v88 = vld [vmem:[%s8 + $0xa4] sm:$0xf]
  %v89 = vld [vmem:[%s8 + $0xa8] sm:$0xf]
  %v90 = vld [vmem:[%s8 + $0xac] sm:$0xf]
  %v91 = vld [vmem:[%s8 + $0xb0] sm:$0xf]
  %v92 = vld [vmem:[%s8 + $0xb4] sm:$0xf]
  %v93 = vld [vmem:[%s8 + $0xb8] sm:$0xf]
  %v94 = vld [vmem:[%s8 + $0xbc] sm:$0xf]
  %v95 = vld [vmem:[%s9] sm:$0xff]
  %v96 = vld [vmem:[%s9 + $0x8] sm:$0xf]
  %v97 = vld [vmem:[%s9 + $0xc] sm:$0xff]
  %v98 = vld [vmem:[%s9 + $0x14] sm:$0xf]
  %v99 = vld [vmem:[%s9 + $0x18] sm:$0xff]
  %v100 = vld [vmem:[%s9 + $0x20] sm:$0xf]
  %v101 = vld [vmem:[%s0] sm:$0xff]
  %v102 = vld [vmem:[%s0 + $0x8] sm:$0xff]
  %v103 = vld [vmem:[%s0 + $0x10] sm:$0xff]
  %v104 = vld [vmem:[%s0 + $0x18] sm:$0xff]
  %v105 = vld [vmem:[%s0 + $0x20] sm:$0xff]
  %v106 = vld [vmem:[%s0 + $0x28] sm:$0xff]
  %113 = vrot.lane.b32.xlu0 %v101, 1
  %v114 = vpop.permute.xlu0 %113
  %115 = vrot.lane.b32.xlu0 %v102, 1
  %v116 = vpop.permute.xlu0 %115
  %117 = vrot.lane.b32.xlu0 %v103, 1
  %v118 = vpop.permute.xlu0 %117
  %119 = vrot.lane.b32.xlu0 %v104, 1
  %v120 = vpop.permute.xlu0 %119
  %121 = vrot.lane.b32.xlu0 %v105, 1
  %v122 = vpop.permute.xlu0 %121
  %123 = vrot.lane.b32.xlu0 %v106, 1
  %v124 = vpop.permute.xlu0 %123
  %vm125 = vcmask 7168
  %v126 = vsel %vm125, %v114, %v116
  %v127 = vsel %vm125, %v116, %v118
  %v128 = vsel %vm125, %v120, %v122
  %v129 = vsel %vm125, %v122, %v124
  %v136 = vsel %vm125, 0.0, %v114
  %v137 = vsel %vm125, 0.0, %v120
  %v138 = vlaneseq
  %v139 = vshrl.u32 %v138, 7
  %v140 = vsub.s32 0, %v139
  %v141 = vrot.slane %v39, %v140
  %v142 = vlaneseq
  %v143 = vshrl.u32 %v142, 7
  %v144 = vsub.s32 0, %v143
  %v145 = vrot.slane %v40, %v144
  %v146 = vlaneseq
  %v147 = vshrl.u32 %v146, 7
  %v148 = vsub.s32 0, %v147
  %v149 = vrot.slane %v41, %v148
  %v150 = vmul.f32 %v136, %v141
  %v151 = vmul.f32 %v126, %v145
  %v152 = vmul.f32 %v127, %v149
  %v153 = vmul.f32 %v137, %v141
  %v154 = vmul.f32 %v128, %v145
  %v155 = vmul.f32 %v129, %v149
  %156 = vrot.lane.b32.xlu0 %v101, 127
  %v157 = vpop.permute.xlu0 %156
  %158 = vrot.lane.b32.xlu0 %v102, 127
  %v159 = vpop.permute.xlu0 %158
  %160 = vrot.lane.b32.xlu0 %v103, 127
  %v161 = vpop.permute.xlu0 %160
  %162 = vrot.lane.b32.xlu0 %v104, 127
  %v163 = vpop.permute.xlu0 %162
  %164 = vrot.lane.b32.xlu0 %v105, 127
  %v165 = vpop.permute.xlu0 %164
  %166 = vrot.lane.b32.xlu0 %v106, 127
  %v167 = vpop.permute.xlu0 %166
  %vm168 = vcmask 1039360
  %v169 = vsel %vm168, %v157, %v159
  %v170 = vsel %vm168, %v159, %v161
  %v171 = vsel %vm168, %v163, %v165
  %v172 = vsel %vm168, %v165, %v167
  %v179 = vsel %vm168, %v161, 0.0
  %v180 = vsel %vm168, %v167, 0.0
  %v181 = vlaneseq
  %v182 = vshrl.u32 %v181, 7
  %v183 = vsub.s32 1, %v182
  %v184 = vrot.slane %v39, %v183
  %v185 = vlaneseq
  %v186 = vshrl.u32 %v185, 7
  %v187 = vsub.s32 1, %v186
  %v188 = vrot.slane %v40, %v187
  %v189 = vlaneseq
  %v190 = vshrl.u32 %v189, 7
  %v191 = vsub.s32 1, %v190
  %v192 = vrot.slane %v41, %v191
  %v193 = vmul.f32 %v169, %v184
  %v194 = vmul.f32 %v170, %v188
  %v195 = vmul.f32 %v179, %v192
  %v196 = vmul.f32 %v171, %v184
  %v197 = vmul.f32 %v172, %v188
  %v198 = vmul.f32 %v180, %v192
  %v199 = vld [vmem:[%s3] sm:$0xf]
  %v200 = vld [vmem:[%s3 + $0x4] sm:$0xf]
  %v201 = vpack.c.bf16 %v153, %v150
  %v202 = vpack.c.bf16 %v154, %v151
  %v203 = vpack.c.bf16 %v155, %v152
  %v204 = vpack.c.bf16 %v104, %v101
  %v205 = vpack.c.bf16 %v105, %v102
  %v206 = vpack.c.bf16 %v106, %v103
  %v207 = vpack.c.bf16 %v196, %v193
  %v208 = vpack.c.bf16 %v197, %v194
  %v209 = vpack.c.bf16 %v198, %v195
  %211 = vset.pattern.permute.xlu0 0
  %212 = vperm.xlu0 %211, %v45
  %v213 = vpop.permute.xlu0 %212
  %216 = vset.pattern.permute.xlu0 0
  %217 = vperm.xlu0 %216, %v46
  %v218 = vpop.permute.xlu0 %217
  %v222 = vunpack.c.l.b16 %v199
  %v223 = vunpack.c.l.b16 %v200
  %v224 = vpack.c.b16 %v223, %v222
  %vm225 = vcmask 392192
  %v227 = vsel %vm225, %v224, 0
  %229 = vmatprep.subr.bf16.mxu0 %v202
  %230 = vmatpush1.bf16.msra.mxu0 %v201
  %231 = vmatprep.subr.bf16.mxu0 %v205
  %232 = vmatpush1.bf16.msra.mxu0 %v204
  %233 = vmatprep.subr.bf16.mxu0 %v208
  %234 = vmatpush1.bf16.msra.mxu0 %v207
  %235 = vmatprep.subr.bf16.mxu0 0
  %236 = vmatpush1.bf16.msra.mxu0 0
  %237 = vmatprep.subr.bf16.mxu0 0
  %238 = vmatpush1.bf16.msra.mxu0 0
  %239 = vmatprep.subr.bf16.mxu0 0
  %240 = vmatpush1.bf16.msra.mxu0 0
  %241 = vmatprep.subr.bf16.mxu0 0
  %242 = vmatpush1.bf16.msra.mxu0 0
  %243 = vmatprep.subr.bf16.mxu0 0
  %244 = vmatpush1.bf16.msra.mxu0 0
  %245 = vmatprep.subr.bf16.mxu0 0
  %246 = vmatpush1.bf16.msra.mxu0 0
  %247 = vmatprep.subr.bf16.mxu0 0
  %248 = vmatpush1.bf16.msra.mxu0 0
  %249 = vmatprep.subr.bf16.mxu0 0
  %250 = vmatpush1.bf16.msra.mxu0 0
  %251 = vmatprep.subr.bf16.mxu0 0
  %252 = vmatpush1.bf16.msra.mxu0 0
  %253 = vmatprep.subr.bf16.mxu0 0
  %254 = vmatpush1.bf16.msra.mxu0 0
  %255 = vmatprep.subr.bf16.mxu0 0
  %256 = vmatpush1.bf16.msra.mxu0 0
  %257 = vmatprep.subr.bf16.mxu0 0
  %258 = vmatpush1.bf16.msra.mxu0 0
  %259 = vmatprep.subr.bf16.mxu0 0
  %260 = vmatpush1.bf16.msra.mxu0 0
  %261 = vmatprep.mubr.bf16.mxu0 0
  %262 = vmatmul.mubr.bf16.gmra.mrb[0].mxu0 %v227
  %v263 = vpop.f32.mrb[0].mxu0
  %v264 = vadd.f32 %v213, %v263
  %v265 = vpop.f32.mrb[0].mxu0
  %v266 = vadd.f32 %v213, %v265
  %v267 = vpop.f32.mrb[0].mxu0
  %v268 = vadd.f32 %v218, %v267
  %v269 = vpop.f32.mrb[0].mxu0
  %v270 = vadd.f32 %v218, %v269
  %271 = vdwg.mxu0
  %272 = vmatprep.subr.bf16.mxu0 0
  %273 = vmatpush1.bf16.msra.mxu0 %v203
  %274 = vmatprep.subr.bf16.mxu0 0
  %275 = vmatpush1.bf16.msra.mxu0 %v206
  %276 = vmatprep.subr.bf16.mxu0 0
  %277 = vmatpush1.bf16.msra.mxu0 %v209
  %278 = vmatprep.subr.bf16.mxu0 0
  %279 = vmatpush1.bf16.msra.mxu0 0
  %280 = vmatprep.subr.bf16.mxu0 0
  %281 = vmatpush1.bf16.msra.mxu0 0
  %282 = vmatprep.subr.bf16.mxu0 0
  %283 = vmatpush1.bf16.msra.mxu0 0
  %284 = vmatprep.subr.bf16.mxu0 0
  %285 = vmatpush1.bf16.msra.mxu0 0
  %286 = vmatprep.subr.bf16.mxu0 0
  %287 = vmatpush1.bf16.msra.mxu0 0
  %288 = vmatprep.subr.bf16.mxu0 0
  %289 = vmatpush1.bf16.msra.mxu0 0
  %290 = vmatprep.subr.bf16.mxu0 0
  %291 = vmatpush1.bf16.msra.mxu0 0
  %292 = vmatprep.subr.bf16.mxu0 0
  %293 = vmatpush1.bf16.msra.mxu0 0
  %294 = vmatprep.subr.bf16.mxu0 0
  %295 = vmatpush1.bf16.msra.mxu0 0
  %296 = vmatprep.subr.bf16.mxu0 0
  %297 = vmatpush1.bf16.msra.mxu0 0
  %298 = vmatprep.subr.bf16.mxu0 0
  %299 = vmatpush1.bf16.msra.mxu0 0
  %300 = vmatprep.subr.bf16.mxu0 0
  %301 = vmatpush1.bf16.msra.mxu0 0
  %302 = vmatprep.subr.bf16.mxu0 0
  %303 = vmatpush1.bf16.msra.mxu0 0
  %304 = vmatprep.mubr.bf16.mxu0 0
  %305 = vmatmul.mubr.bf16.gmra.mrb[0].mxu0 %v227
  %v306 = vpop.f32.mrb[0].mxu0
  %v307 = vadd.f32 %v213, %v306
  %v308 = vpop.f32.mrb[0].mxu0
  %v309 = vpop.f32.mrb[0].mxu0
  %v310 = vadd.f32 %v218, %v309
  %v311 = vpop.f32.mrb[0].mxu0
  %312 = vdwg.mxu0
  %v313 = vadd.f32 %v264, %v266
  %v314 = vadd.f32 %v313, %v307
  %315 = vadd.xlane.f32.xlu0 %v314
  %v316 = vpop.xlane.xlu0 %315
  %v317 = vadd.f32 %v268, %v270
  %v318 = vadd.f32 %v317, %v310
  %319 = vadd.xlane.f32.xlu0 %v318
  %v320 = vpop.xlane.xlu0 %319
  %v321 = vmul.f32 %v316, 0.0026041667
  %v322 = vmul.f32 %v320, 0.0026041667
  %v323 = vsub.f32 %v264, %v321
  %v324 = vsub.f32 %v266, %v321
  %v325 = vsub.f32 %v307, %v321
  %v326 = vsub.f32 %v268, %v322
  %v327 = vsub.f32 %v270, %v322
  %v328 = vsub.f32 %v310, %v322
  %v329 = vmul.f32 %v323, %v323
  %v330 = vmul.f32 %v324, %v324
  %v331 = vmul.f32 %v325, %v325
  %v332 = vmul.f32 %v326, %v326
  %v333 = vmul.f32 %v327, %v327
  %v334 = vmul.f32 %v328, %v328
  %v335 = vadd.f32 %v329, %v330
  %v336 = vadd.f32 %v335, %v331
  %337 = vadd.xlane.f32.xlu0 %v336
  %v338 = vpop.xlane.xlu0 %337
  %v339 = vadd.f32 %v332, %v333
  %v340 = vadd.f32 %v339, %v334
  %341 = vadd.xlane.f32.xlu0 %v340
  %v342 = vpop.xlane.xlu0 %341
  %v343 = vmul.f32 %v338, 0.0026041667
  %v344 = vmul.f32 %v342, 0.0026041667
  %v345 = vadd.f32 %v343, 1e-05
  %v346 = vadd.f32 %v344, 1e-05
  %v347 = vrsqrt.pop %v345
  %v348 = vrsqrt.pop %v346
  %v349 = vmul.f32 %v45, %v347
  %v350 = vmul.f32 %v46, %v348
  %352 = vset.pattern.permute.xlu0 1
  %353 = vperm.xlu0 %352, %v349
  %v354 = vpop.permute.xlu0 %353
  %357 = vset.pattern.permute.xlu0 1
  %358 = vperm.xlu0 %357, %v350
  %v359 = vpop.permute.xlu0 %358
  %v361 = vmul.f32 %v323, %v354
  %v362 = vmul.f32 %v324, %v354
  %v363 = vmul.f32 %v325, %v354
  %v364 = vmul.f32 %v326, %v359
  %v365 = vmul.f32 %v327, %v359
  %v366 = vmul.f32 %v328, %v359
  %367 = vset.pattern.permute.xlu0 2
  %368 = vperm.xlu0 %367, %v45
  %v369 = vpop.permute.xlu0 %368
  %371 = vset.pattern.permute.xlu0 2
  %372 = vperm.xlu0 %371, %v46
  %v373 = vpop.permute.xlu0 %372
  %v375 = vadd.f32 %v361, %v369
  %v376 = vadd.f32 %v362, %v369
  %v377 = vadd.f32 %v363, %v369
  %v378 = vadd.f32 %v364, %v373
  %v379 = vadd.f32 %v365, %v373
  %v380 = vadd.f32 %v366, %v373
  %v381 = vmax.f32 %v375, 0.0
  %v382 = vmax.f32 %v376, 0.0
  %v383 = vmax.f32 %v377, 0.0
  %v384 = vmax.f32 %v378, 0.0
  %v385 = vmax.f32 %v379, 0.0
  %v386 = vmax.f32 %v380, 0.0
  %v387 = vlaneseq
  %v388 = vshrl.u32 %v387, 7
  %v389 = vsub.s32 2, %v388
  %v390 = vrot.slane %v42, %v389
  %v391 = vlaneseq
  %v392 = vshrl.u32 %v391, 7
  %v393 = vsub.s32 2, %v392
  %v394 = vrot.slane %v43, %v393
  %v395 = vlaneseq
  %v396 = vshrl.u32 %v395, 7
  %v397 = vsub.s32 2, %v396
  %v398 = vrot.slane %v44, %v397
  %v399 = vmul.f32 %v381, %v390
  %v400 = vmul.f32 %v382, %v394
  %v401 = vmul.f32 %v383, %v398
  %v402 = vmul.f32 %v384, %v390
  %v403 = vmul.f32 %v385, %v394
  %v404 = vmul.f32 %v386, %v398
  %v405 = vadd.f32 %v399, %v400
  %v406 = vadd.f32 %v405, %v401
  %407 = vadd.xlane.f32.xlu0 %v406
  %v408 = vpop.xlane.xlu0 %407
  %v409 = vadd.f32 %v402, %v403
  %v410 = vadd.f32 %v409, %v404
  %411 = vadd.xlane.f32.xlu0 %v410
  %v412 = vpop.xlane.xlu0 %411
  %v413 = vmul.f32 %v408, 0.0052083335
  %v414 = vmul.f32 %v412, 0.0052083335
  %vm415 = vcmp.gt.f32.partialorder %v42, 0.5
  %vm416 = vcmp.gt.f32.partialorder %v43, 0.5
  %vm417 = vcmp.gt.f32.partialorder %v44, 0.5
  %v418 = vsel %vm415, 1, 0
  %v419 = vsel %vm416, 1, 0
  %v420 = vsel %vm417, 1, 0
  %v421 = vlaneseq
  %v422 = vshrl.u32 %v421, 7
  %v423 = vsub.s32 2, %v422
  %v424 = vrot.slane %v418, %v423
  %v425 = vlaneseq
  %v426 = vshrl.u32 %v425, 7
  %v427 = vsub.s32 2, %v426
  %v428 = vrot.slane %v419, %v427
  %v429 = vlaneseq
  %v430 = vshrl.u32 %v429, 7
  %v431 = vsub.s32 2, %v430
  %v432 = vrot.slane %v420, %v431
  %vm433 = vcmp.eq.s32.totalorder %v424, 1
  %vm434 = vcmp.eq.s32.totalorder %v428, 1
  %vm435 = vcmp.eq.s32.totalorder %v432, 1
  %v436 = vsel %vm433, %v381, -1e+30
  %v437 = vsel %vm434, %v382, -1e+30
  %v438 = vsel %vm435, %v383, -1e+30
  %v439 = vsel %vm433, %v384, -1e+30
  %v440 = vsel %vm434, %v385, -1e+30
  %v441 = vsel %vm435, %v386, -1e+30
  %v442 = vmax.f32 %v436, %v438
  %v443 = vmax.f32 %v442, %v437
  %444 = vmax.xlane.f32.xlu0 %v443
  %v445 = vpop.xlane.xlu0 %444
  %v446 = vmax.f32 %v439, %v441
  %v447 = vmax.f32 %v446, %v440
  %448 = vmax.xlane.f32.xlu0 %v447
  %v449 = vpop.xlane.xlu0 %448
  %v450 = vlaneseq
  %v451 = vshrl.u32 %v450, 7
  %v452 = vsub.s32 3, %v451
  %v453 = vrot.slane %v42, %v452
  %v454 = vlaneseq
  %v455 = vshrl.u32 %v454, 7
  %v456 = vsub.s32 3, %v455
  %v457 = vrot.slane %v43, %v456
  %v458 = vlaneseq
  %v459 = vshrl.u32 %v458, 7
  %v460 = vsub.s32 3, %v459
  %v461 = vrot.slane %v44, %v460
  %v462 = vmul.f32 %v381, %v453
  %v463 = vmul.f32 %v382, %v457
  %v464 = vmul.f32 %v383, %v461
  %v465 = vmul.f32 %v384, %v453
  %v466 = vmul.f32 %v385, %v457
  %v467 = vmul.f32 %v386, %v461
  %v468 = vadd.f32 %v462, %v463
  %v469 = vadd.f32 %v468, %v464
  %470 = vadd.xlane.f32.xlu0 %v469
  %v471 = vpop.xlane.xlu0 %470
  %v472 = vadd.f32 %v465, %v466
  %v473 = vadd.f32 %v472, %v467
  %474 = vadd.xlane.f32.xlu0 %v473
  %v475 = vpop.xlane.xlu0 %474
  %v476 = vmul.f32 %v471, 0.0052083335
  %v477 = vmul.f32 %v475, 0.0052083335
  %v478 = vlaneseq
  %v479 = vshrl.u32 %v478, 7
  %v480 = vsub.s32 3, %v479
  %v481 = vrot.slane %v418, %v480
  %v482 = vlaneseq
  %v483 = vshrl.u32 %v482, 7
  %v484 = vsub.s32 3, %v483
  %v485 = vrot.slane %v419, %v484
  %v486 = vlaneseq
  %v487 = vshrl.u32 %v486, 7
  %v488 = vsub.s32 3, %v487
  %v489 = vrot.slane %v420, %v488
  %vm490 = vcmp.eq.s32.totalorder %v481, 1
  %vm491 = vcmp.eq.s32.totalorder %v485, 1
  %vm492 = vcmp.eq.s32.totalorder %v489, 1
  %v493 = vsel %vm490, %v381, -1e+30
  %v494 = vsel %vm491, %v382, -1e+30
  %v495 = vsel %vm492, %v383, -1e+30
  %v496 = vsel %vm490, %v384, -1e+30
  %v497 = vsel %vm491, %v385, -1e+30
  %v498 = vsel %vm492, %v386, -1e+30
  %v499 = vmax.f32 %v493, %v495
  %v500 = vmax.f32 %v499, %v494
  %501 = vmax.xlane.f32.xlu0 %v500
  %v502 = vpop.xlane.xlu0 %501
  %v503 = vmax.f32 %v496, %v498
  %v504 = vmax.f32 %v503, %v497
  %505 = vmax.xlane.f32.xlu0 %v504
  %v506 = vpop.xlane.xlu0 %505
  %511 = vrot.lane.b32.xlu0 %v476, 1
  %v512 = vpop.permute.xlu0 %511
  %513 = vrot.lane.b32.xlu0 %v477, 1
  %v514 = vpop.permute.xlu0 %513
  %515 = vrot.lane.b32.xlu0 %v502, 1
  %v516 = vpop.permute.xlu0 %515
  %517 = vrot.lane.b32.xlu0 %v506, 1
  %v518 = vpop.permute.xlu0 %517
  %v523 = vsel %vm125, %v413, %v512
  %v524 = vsel %vm125, %v414, %v514
  %v525 = vsel %vm125, %v445, %v516
  %v526 = vsel %vm125, %v449, %v518
  %v527 = vld [vmem:[%s4] sm:$0xf]
  %v528 = vld [vmem:[%s4 + $0x4] sm:$0xf]
  %v529 = vpack.c.bf16 %v524, %v523
  %v530 = vpack.c.bf16 %v526, %v525
  %531 = vset.pattern.permute.xlu0 3
  %532 = vperm.xlu0 %531, %v45
  %v533 = vpop.permute.xlu0 %532
  %535 = vset.pattern.permute.xlu0 3
  %536 = vperm.xlu0 %535, %v46
  %v537 = vpop.permute.xlu0 %536
  %v541 = vunpack.c.l.b16 %v527
  %v542 = vunpack.c.l.b16 %v528
  %v543 = vpack.c.b16 %v542, %v541
  %vm544 = vcmask 261120
  %v546 = vsel %vm544, %v543, 0
  %548 = vmatprep.subr.bf16.mxu0 0
  %549 = vmatpush1.bf16.msra.mxu0 %v529
  %550 = vmatprep.subr.bf16.mxu0 0
  %551 = vmatpush1.bf16.msra.mxu0 %v530
  %552 = vmatprep.subr.bf16.mxu0 0
  %553 = vmatpush1.bf16.msra.mxu0 0
  %554 = vmatprep.subr.bf16.mxu0 0
  %555 = vmatpush1.bf16.msra.mxu0 0
  %556 = vmatprep.subr.bf16.mxu0 0
  %557 = vmatpush1.bf16.msra.mxu0 0
  %558 = vmatprep.subr.bf16.mxu0 0
  %559 = vmatpush1.bf16.msra.mxu0 0
  %560 = vmatprep.subr.bf16.mxu0 0
  %561 = vmatpush1.bf16.msra.mxu0 0
  %562 = vmatprep.subr.bf16.mxu0 0
  %563 = vmatpush1.bf16.msra.mxu0 0
  %564 = vmatprep.subr.bf16.mxu0 0
  %565 = vmatpush1.bf16.msra.mxu0 0
  %566 = vmatprep.subr.bf16.mxu0 0
  %567 = vmatpush1.bf16.msra.mxu0 0
  %568 = vmatprep.subr.bf16.mxu0 0
  %569 = vmatpush1.bf16.msra.mxu0 0
  %570 = vmatprep.subr.bf16.mxu0 0
  %571 = vmatpush1.bf16.msra.mxu0 0
  %572 = vmatprep.subr.bf16.mxu0 0
  %573 = vmatpush1.bf16.msra.mxu0 0
  %574 = vmatprep.subr.bf16.mxu0 0
  %575 = vmatpush1.bf16.msra.mxu0 0
  %576 = vmatprep.subr.bf16.mxu0 0
  %577 = vmatpush1.bf16.msra.mxu0 0
  %578 = vmatprep.subr.bf16.mxu0 0
  %579 = vmatpush1.bf16.msra.mxu0 0
  %580 = vmatprep.mubr.bf16.mxu0 0
  %581 = vmatmul.mubr.bf16.gmra.mrb[0].mxu0 %v546
  %v582 = vpop.f32.mrb[0].mxu0
  %v583 = vadd.f32 %v533, %v582
  %v584 = vpop.f32.mrb[0].mxu0
  %v585 = vpop.f32.mrb[0].mxu0
  %v586 = vadd.f32 %v537, %v585
  %v587 = vpop.f32.mrb[0].mxu0
  %588 = vdwg.mxu0
  %v589 = vxor.u32 %v583, 2147483648
  %v590 = vxor.u32 %v586, 2147483648
  %v591 = vmul.f32 %v589, 1.442695
  %v592 = vpow.pop %v591
  %v593 = vmul.f32 %v590, 1.442695
  %v594 = vpow.pop %v593
  %v595 = vadd.f32 %v592, 1.0
  %v596 = vadd.f32 %v594, 1.0
  %v597 = vrcp.pop %v595
  %v598 = vmul.f32 1.0, %v597
  %v599 = vrcp.pop %v596
  %v600 = vmul.f32 1.0, %v599
  %602 = vset.pattern.permute.xlu0 0
  %603 = vperm.xlu0 %602, %v598
  %v604 = vpop.permute.xlu0 %603
  %607 = vset.pattern.permute.xlu0 0
  %608 = vperm.xlu0 %607, %v600
  %v609 = vpop.permute.xlu0 %608
  %v611 = vmul.f32 %v604, %v390
  %v612 = vmul.f32 %v604, %v394
  %v613 = vmul.f32 %v604, %v398
  %v614 = vmul.f32 %v609, %v390
  %v615 = vmul.f32 %v609, %v394
  %v616 = vmul.f32 %v609, %v398
  %617 = vset.pattern.permute.xlu0 1
  %618 = vperm.xlu0 %617, %v598
  %v619 = vpop.permute.xlu0 %618
  %621 = vset.pattern.permute.xlu0 1
  %622 = vperm.xlu0 %621, %v600
  %v623 = vpop.permute.xlu0 %622
  %v625 = vmul.f32 %v619, %v453
  %v626 = vmul.f32 %v619, %v457
  %v627 = vmul.f32 %v619, %v461
  %v628 = vmul.f32 %v623, %v453
  %v629 = vmul.f32 %v623, %v457
  %v630 = vmul.f32 %v623, %v461
  %v631 = vadd.f32 %v611, %v625
  %v632 = vadd.f32 %v612, %v626
  %v633 = vadd.f32 %v613, %v627
  %v634 = vadd.f32 %v614, %v628
  %v635 = vadd.f32 %v615, %v629
  %v636 = vadd.f32 %v616, %v630
  %v637 = vmul.f32 %v381, %v631
  %v638 = vmul.f32 %v382, %v632
  %v639 = vmul.f32 %v383, %v633
  %v640 = vmul.f32 %v384, %v634
  %v641 = vmul.f32 %v385, %v635
  %v642 = vmul.f32 %v386, %v636
  %v643 = vadd.f32 %v637, %v640
  %v644 = vrot.slane %v643, 4
  %v645 = vadd.f32 %v643, %v644
  %v646 = vrot.slane %v645, 2
  %v647 = vadd.f32 %v645, %v646
  %v648 = vrot.slane %v647, 1
  %v649 = vadd.f32 %v647, %v648
  %v650 = vadd.f32 %v638, %v641
  %v651 = vrot.slane %v650, 4
  %v652 = vadd.f32 %v650, %v651
  %v653 = vrot.slane %v652, 2
  %v654 = vadd.f32 %v652, %v653
  %v655 = vrot.slane %v654, 1
  %v656 = vadd.f32 %v654, %v655
  %v657 = vadd.f32 %v639, %v642
  %v658 = vrot.slane %v657, 4
  %v659 = vadd.f32 %v657, %v658
  %v660 = vrot.slane %v659, 2
  %v661 = vadd.f32 %v659, %v660
  %v662 = vrot.slane %v661, 1
  %v663 = vadd.f32 %v661, %v662
  %v664 = vrcp.pop 16.0
  %v665 = vmul.f32 %v649, %v664
  %v666 = vmul.f32 %v656, %v664
  %v667 = vmul.f32 %v663, %v664
  %v668 = vmax.f32 %v637, %v640
  %v669 = vrot.slane %v668, 4
  %v670 = vmax.f32 %v668, %v669
  %v671 = vrot.slane %v670, 2
  %v672 = vmax.f32 %v670, %v671
  %v673 = vrot.slane %v672, 1
  %v674 = vmax.f32 %v672, %v673
  %v675 = vmax.f32 %v638, %v641
  %v676 = vrot.slane %v675, 4
  %v677 = vmax.f32 %v675, %v676
  %v678 = vrot.slane %v677, 2
  %v679 = vmax.f32 %v677, %v678
  %v680 = vrot.slane %v679, 1
  %v681 = vmax.f32 %v679, %v680
  %v682 = vmax.f32 %v639, %v642
  %v683 = vrot.slane %v682, 4
  %v684 = vmax.f32 %v682, %v683
  %v685 = vrot.slane %v684, 2
  %v686 = vmax.f32 %v684, %v685
  %v687 = vrot.slane %v686, 1
  %v688 = vmax.f32 %v686, %v687
  %691 = vrot.lane.b32.xlu0 %v674, 64
  %v692 = vpop.permute.xlu0 %691
  %693 = vrot.lane.b32.xlu0 %v681, 64
  %v694 = vpop.permute.xlu0 %693
  %vm695 = vcmask 523264
  %v696 = vsel %vm695, %v692, %v694
  %v699 = vsel %vm695, %v666, %v692
  %702 = vrot.lane.b32.xlu0 %v666, 64
  %v703 = vpop.permute.xlu0 %702
  %704 = vrot.lane.b32.xlu0 %v667, 64
  %v705 = vpop.permute.xlu0 %704
  %v706 = vsel %vm695, %v703, %v705
  %v708 = vsel %vm695, %v705, %v681
  %v711 = vrot.slane %v706, 7
  %v712 = vrot.slane %v708, 7
  %v713 = vrot.slane %v688, 7
  %vm717 = vcmask 1040384
  %v718 = vsel %vm717, %v665, %v711
  %v719 = vsel %vm717, %v699, %v712
  %v720 = vsel %vm717, %v696, %v713
  %v721 = vld [vmem:[%s5] sm:$0xff]
  %v722 = vld [vmem:[%s5 + $0x8] sm:$0xff]
  %v723 = vld [vmem:[%s5 + $0x10] sm:$0xff]
  %v724 = vld [vmem:[%s5 + $0x18] sm:$0xff]
  %v725 = vld [vmem:[%s5 + $0x20] sm:$0xff]
  %v726 = vld [vmem:[%s5 + $0x28] sm:$0xff]
  %v727 = vld [vmem:[%s5 + $0x30] sm:$0xff]
  %v728 = vld [vmem:[%s5 + $0x38] sm:$0xff]
  %v729 = vld [vmem:[%s5 + $0x40] sm:$0xff]
  %v730 = vld [vmem:[%s5 + $0x48] sm:$0xff]
  %v731 = vld [vmem:[%s5 + $0x50] sm:$0xff]
  %v732 = vld [vmem:[%s5 + $0x58] sm:$0xff]
  %v733 = vld [vmem:[%s5 + $0x60] sm:$0xff]
  %v734 = vld [vmem:[%s5 + $0x68] sm:$0xff]
  %v735 = vld [vmem:[%s5 + $0x70] sm:$0xff]
  %v736 = vld [vmem:[%s5 + $0x78] sm:$0xff]
  %v737 = vld [vmem:[%s5 + $0x80] sm:$0xff]
  %v738 = vld [vmem:[%s5 + $0x88] sm:$0xff]
  %v739 = vld [vmem:[%s5 + $0x90] sm:$0xff]
  %v740 = vld [vmem:[%s5 + $0x98] sm:$0xff]
  %v741 = vld [vmem:[%s5 + $0xa0] sm:$0xff]
  %v742 = vld [vmem:[%s5 + $0xa8] sm:$0xff]
  %v743 = vld [vmem:[%s5 + $0xb0] sm:$0xff]
  %v744 = vld [vmem:[%s5 + $0xb8] sm:$0xff]
  %v745 = vld [vmem:[%s5 + $0xc0] sm:$0xff]
  %v746 = vld [vmem:[%s5 + $0xc8] sm:$0xff]
  %v747 = vld [vmem:[%s5 + $0xd0] sm:$0xff]
  %v748 = vld [vmem:[%s5 + $0xd8] sm:$0xff]
  %v749 = vld [vmem:[%s5 + $0xe0] sm:$0xff]
  %v750 = vld [vmem:[%s5 + $0xe8] sm:$0xff]
  %v751 = vld [vmem:[%s5 + $0xf0] sm:$0xff]
  %v752 = vld [vmem:[%s5 + $0xf8] sm:$0xff]
  %v753 = vld [vmem:[%s5 + $0x100] sm:$0xff]
  %v754 = vld [vmem:[%s5 + $0x108] sm:$0xff]
  %v755 = vld [vmem:[%s5 + $0x110] sm:$0xff]
  %v756 = vld [vmem:[%s5 + $0x118] sm:$0xff]
  %v757 = vld [vmem:[%s5 + $0x120] sm:$0xff]
  %v758 = vld [vmem:[%s5 + $0x128] sm:$0xff]
  %v759 = vld [vmem:[%s5 + $0x130] sm:$0xff]
  %v760 = vld [vmem:[%s5 + $0x138] sm:$0xff]
  %v761 = vld [vmem:[%s5 + $0x140] sm:$0xff]
  %v762 = vld [vmem:[%s5 + $0x148] sm:$0xff]
  %v763 = vld [vmem:[%s5 + $0x150] sm:$0xff]
  %v764 = vld [vmem:[%s5 + $0x158] sm:$0xff]
  %v765 = vld [vmem:[%s5 + $0x160] sm:$0xff]
  %v766 = vld [vmem:[%s5 + $0x168] sm:$0xff]
  %v767 = vld [vmem:[%s5 + $0x170] sm:$0xff]
  %v768 = vld [vmem:[%s5 + $0x178] sm:$0xff]
  %v769 = vpack.c.bf16 %v718, %v718
  %v770 = vpack.c.bf16 %v719, %v719
  %v771 = vpack.c.bf16 %v720, %v720
  %v820 = vunpack.c.l.b16 %v721
  %v821 = vunpack.c.h.b16 %v721
  %v822 = vunpack.c.l.b16 %v722
  %v823 = vunpack.c.h.b16 %v722
  %v824 = vunpack.c.l.b16 %v723
  %v825 = vunpack.c.h.b16 %v723
  %v826 = vunpack.c.l.b16 %v724
  %v827 = vunpack.c.h.b16 %v724
  %v828 = vunpack.c.l.b16 %v725
  %v829 = vunpack.c.h.b16 %v725
  %v830 = vunpack.c.l.b16 %v726
  %v831 = vunpack.c.h.b16 %v726
  %v832 = vunpack.c.l.b16 %v727
  %v833 = vunpack.c.h.b16 %v727
  %v834 = vunpack.c.l.b16 %v728
  %v835 = vunpack.c.h.b16 %v728
  %v836 = vunpack.c.l.b16 %v729
  %v837 = vunpack.c.h.b16 %v729
  %v838 = vunpack.c.l.b16 %v730
  %v839 = vunpack.c.h.b16 %v730
  %v840 = vunpack.c.l.b16 %v731
  %v841 = vunpack.c.h.b16 %v731
  %v842 = vunpack.c.l.b16 %v732
  %v843 = vunpack.c.h.b16 %v732
  %v844 = vunpack.c.l.b16 %v733
  %v845 = vunpack.c.h.b16 %v733
  %v846 = vunpack.c.l.b16 %v734
  %v847 = vunpack.c.h.b16 %v734
  %v848 = vunpack.c.l.b16 %v735
  %v849 = vunpack.c.h.b16 %v735
  %v850 = vunpack.c.l.b16 %v736
  %v851 = vunpack.c.h.b16 %v736
  %v852 = vunpack.c.l.b16 %v737
  %v853 = vunpack.c.h.b16 %v737
  %v854 = vunpack.c.l.b16 %v738
  %v855 = vunpack.c.h.b16 %v738
  %v856 = vunpack.c.l.b16 %v739
  %v857 = vunpack.c.h.b16 %v739
  %v858 = vunpack.c.l.b16 %v740
  %v859 = vunpack.c.h.b16 %v740
  %v860 = vunpack.c.l.b16 %v741
  %v861 = vunpack.c.h.b16 %v741
  %v862 = vunpack.c.l.b16 %v742
  %v863 = vunpack.c.h.b16 %v742
  %v864 = vunpack.c.l.b16 %v743
  %v865 = vunpack.c.h.b16 %v743
  %v866 = vunpack.c.l.b16 %v744
  %v867 = vunpack.c.h.b16 %v744
  %v868 = vunpack.c.l.b16 %v745
  %v869 = vunpack.c.h.b16 %v745
  %v870 = vunpack.c.l.b16 %v746
  %v871 = vunpack.c.h.b16 %v746
  %v872 = vunpack.c.l.b16 %v747
  %v873 = vunpack.c.h.b16 %v747
  %v874 = vunpack.c.l.b16 %v748
  %v875 = vunpack.c.h.b16 %v748
  %v876 = vunpack.c.l.b16 %v749
  %v877 = vunpack.c.h.b16 %v749
  %v878 = vunpack.c.l.b16 %v750
  %v879 = vunpack.c.h.b16 %v750
  %v880 = vunpack.c.l.b16 %v751
  %v881 = vunpack.c.h.b16 %v751
  %v882 = vunpack.c.l.b16 %v752
  %v883 = vunpack.c.h.b16 %v752
  %v884 = vunpack.c.l.b16 %v753
  %v885 = vunpack.c.h.b16 %v753
  %v886 = vunpack.c.l.b16 %v754
  %v887 = vunpack.c.h.b16 %v754
  %v888 = vunpack.c.l.b16 %v755
  %v889 = vunpack.c.h.b16 %v755
  %v890 = vunpack.c.l.b16 %v756
  %v891 = vunpack.c.h.b16 %v756
  %v892 = vunpack.c.l.b16 %v757
  %v893 = vunpack.c.h.b16 %v757
  %v894 = vunpack.c.l.b16 %v758
  %v895 = vunpack.c.h.b16 %v758
  %v896 = vunpack.c.l.b16 %v759
  %v897 = vunpack.c.h.b16 %v759
  %v898 = vunpack.c.l.b16 %v760
  %v899 = vunpack.c.h.b16 %v760
  %v900 = vunpack.c.l.b16 %v761
  %v901 = vunpack.c.h.b16 %v761
  %v902 = vunpack.c.l.b16 %v762
  %v903 = vunpack.c.h.b16 %v762
  %v904 = vunpack.c.l.b16 %v763
  %v905 = vunpack.c.h.b16 %v763
  %v906 = vunpack.c.l.b16 %v764
  %v907 = vunpack.c.h.b16 %v764
  %v908 = vunpack.c.l.b16 %v765
  %v909 = vunpack.c.h.b16 %v765
  %v910 = vunpack.c.l.b16 %v766
  %v911 = vunpack.c.h.b16 %v766
  %v912 = vunpack.c.l.b16 %v767
  %v913 = vunpack.c.h.b16 %v767
  %v914 = vunpack.c.l.b16 %v768
  %v915 = vunpack.c.h.b16 %v768
  %v916 = vpack.c.b16 %v822, %v820
  %v917 = vpack.c.b16 %v823, %v821
  %v918 = vpack.c.b16 %v826, %v824
  %v919 = vpack.c.b16 %v827, %v825
  %v920 = vpack.c.b16 %v830, %v828
  %v921 = vpack.c.b16 %v831, %v829
  %v922 = vpack.c.b16 %v834, %v832
  %v923 = vpack.c.b16 %v835, %v833
  %v924 = vpack.c.b16 %v838, %v836
  %v925 = vpack.c.b16 %v839, %v837
  %v926 = vpack.c.b16 %v842, %v840
  %v927 = vpack.c.b16 %v843, %v841
  %v928 = vpack.c.b16 %v846, %v844
  %v929 = vpack.c.b16 %v847, %v845
  %v930 = vpack.c.b16 %v850, %v848
  %v931 = vpack.c.b16 %v851, %v849
  %v932 = vpack.c.b16 %v854, %v852
  %v933 = vpack.c.b16 %v855, %v853
  %v934 = vpack.c.b16 %v858, %v856
  %v935 = vpack.c.b16 %v859, %v857
  %v936 = vpack.c.b16 %v862, %v860
  %v937 = vpack.c.b16 %v863, %v861
  %v938 = vpack.c.b16 %v866, %v864
  %v939 = vpack.c.b16 %v867, %v865
  %v940 = vpack.c.b16 %v870, %v868
  %v941 = vpack.c.b16 %v871, %v869
  %v942 = vpack.c.b16 %v874, %v872
  %v943 = vpack.c.b16 %v875, %v873
  %v944 = vpack.c.b16 %v878, %v876
  %v945 = vpack.c.b16 %v879, %v877
  %v946 = vpack.c.b16 %v882, %v880
  %v947 = vpack.c.b16 %v883, %v881
  %v948 = vpack.c.b16 %v886, %v884
  %v949 = vpack.c.b16 %v887, %v885
  %v950 = vpack.c.b16 %v890, %v888
  %v951 = vpack.c.b16 %v891, %v889
  %v952 = vpack.c.b16 %v894, %v892
  %v953 = vpack.c.b16 %v895, %v893
  %v954 = vpack.c.b16 %v898, %v896
  %v955 = vpack.c.b16 %v899, %v897
  %v956 = vpack.c.b16 %v902, %v900
  %v957 = vpack.c.b16 %v903, %v901
  %v958 = vpack.c.b16 %v906, %v904
  %v959 = vpack.c.b16 %v907, %v905
  %v960 = vpack.c.b16 %v910, %v908
  %v961 = vpack.c.b16 %v911, %v909
  %v962 = vpack.c.b16 %v914, %v912
  %v963 = vpack.c.b16 %v915, %v913
  %1012 = vmatprep.subr.bf16.mxu0 %v917
  %1013 = vmatpush1.bf16.msra.mxu0 %v916
  %1014 = vmatprep.subr.bf16.mxu0 %v919
  %1015 = vmatpush1.bf16.msra.mxu0 %v918
  %1016 = vmatprep.subr.bf16.mxu0 %v921
  %1017 = vmatpush1.bf16.msra.mxu0 %v920
  %1018 = vmatprep.subr.bf16.mxu0 %v923
  %1019 = vmatpush1.bf16.msra.mxu0 %v922
  %1020 = vmatprep.subr.bf16.mxu0 %v925
  %1021 = vmatpush1.bf16.msra.mxu0 %v924
  %1022 = vmatprep.subr.bf16.mxu0 %v927
  %1023 = vmatpush1.bf16.msra.mxu0 %v926
  %1024 = vmatprep.subr.bf16.mxu0 %v929
  %1025 = vmatpush1.bf16.msra.mxu0 %v928
  %1026 = vmatprep.subr.bf16.mxu0 %v931
  %1027 = vmatpush1.bf16.msra.mxu0 %v930
  %1028 = vmatprep.subr.bf16.mxu0 %v933
  %1029 = vmatpush1.bf16.msra.mxu0 %v932
  %1030 = vmatprep.subr.bf16.mxu0 %v935
  %1031 = vmatpush1.bf16.msra.mxu0 %v934
  %1032 = vmatprep.subr.bf16.mxu0 %v937
  %1033 = vmatpush1.bf16.msra.mxu0 %v936
  %1034 = vmatprep.subr.bf16.mxu0 %v939
  %1035 = vmatpush1.bf16.msra.mxu0 %v938
  %1036 = vmatprep.subr.bf16.mxu0 %v941
  %1037 = vmatpush1.bf16.msra.mxu0 %v940
  %1038 = vmatprep.subr.bf16.mxu0 %v943
  %1039 = vmatpush1.bf16.msra.mxu0 %v942
  %1040 = vmatprep.subr.bf16.mxu0 %v945
  %1041 = vmatpush1.bf16.msra.mxu0 %v944
  %1042 = vmatprep.subr.bf16.mxu0 %v947
  %1043 = vmatpush1.bf16.msra.mxu0 %v946
  %1044 = vmatprep.mubr.bf16.mxu0 %v770
  %1045 = vmatmul.mubr.bf16.gmra.mrb[0].mxu0 %v769
  %v1046 = vpop.f32.mrb[0].mxu0
  %v1047 = vadd.f32 0.0, %v1046
  %v1048 = vpop.f32.mrb[0].mxu0
  %v1049 = vadd.f32 0.0, %v1048
  %v1050 = vpop.f32.mrb[0].mxu0
  %v1051 = vpop.f32.mrb[0].mxu0
  %1052 = vdwg.mxu0
  %1053 = vmatprep.subr.bf16.mxu0 %v949
  %1054 = vmatpush1.bf16.msra.mxu0 %v948
  %1055 = vmatprep.subr.bf16.mxu0 %v951
  %1056 = vmatpush1.bf16.msra.mxu0 %v950
  %1057 = vmatprep.subr.bf16.mxu0 %v953
  %1058 = vmatpush1.bf16.msra.mxu0 %v952
  %1059 = vmatprep.subr.bf16.mxu0 %v955
  %1060 = vmatpush1.bf16.msra.mxu0 %v954
  %1061 = vmatprep.subr.bf16.mxu0 %v957
  %1062 = vmatpush1.bf16.msra.mxu0 %v956
  %1063 = vmatprep.subr.bf16.mxu0 %v959
  %1064 = vmatpush1.bf16.msra.mxu0 %v958
  %1065 = vmatprep.subr.bf16.mxu0 %v961
  %1066 = vmatpush1.bf16.msra.mxu0 %v960
  %1067 = vmatprep.subr.bf16.mxu0 %v963
  %1068 = vmatpush1.bf16.msra.mxu0 %v962
  %1069 = vmatprep.subr.bf16.mxu0 0
  %1070 = vmatpush1.bf16.msra.mxu0 0
  %1071 = vmatprep.subr.bf16.mxu0 0
  %1072 = vmatpush1.bf16.msra.mxu0 0
  %1073 = vmatprep.subr.bf16.mxu0 0
  %1074 = vmatpush1.bf16.msra.mxu0 0
  %1075 = vmatprep.subr.bf16.mxu0 0
  %1076 = vmatpush1.bf16.msra.mxu0 0
  %1077 = vmatprep.subr.bf16.mxu0 0
  %1078 = vmatpush1.bf16.msra.mxu0 0
  %1079 = vmatprep.subr.bf16.mxu0 0
  %1080 = vmatpush1.bf16.msra.mxu0 0
  %1081 = vmatprep.subr.bf16.mxu0 0
  %1082 = vmatpush1.bf16.msra.mxu0 0
  %1083 = vmatprep.subr.bf16.mxu0 0
  %1084 = vmatpush1.bf16.msra.mxu0 0
  %1085 = vmatprep.mubr.bf16.mxu0 0
  %1086 = vmatmul.mubr.bf16.gmra.mrb[0].mxu0 %v771
  %v1087 = vpop.f32.mrb[0].mxu0
  %v1088 = vadd.f32 %v1047, %v1087
  %v1089 = vpop.f32.mrb[0].mxu0
  %v1090 = vadd.f32 %v1049, %v1089
  %v1091 = vpop.f32.mrb[0].mxu0
  %v1092 = vpop.f32.mrb[0].mxu0
  %1093 = vdwg.mxu0
  %v1096 = vrot.slane %v1088, 1
  %v1097 = vrot.slane %v1090, 1
  %1098 = vrot.lane.b32.xlu0 %v1096, 64
  %v1099 = vpop.permute.xlu0 %1098
  %1100 = vrot.lane.b32.xlu0 %v1097, 64
  %v1101 = vpop.permute.xlu0 %1100
  %v1102 = vsel %vm695, %v1099, %v1101
  %v1105 = vsel %vm695, %v1090, %v1099
  %v1109 = vrot.slane %v39, 7
  %v1110 = vrot.slane %v40, 7
  %v1111 = vrot.slane %v41, 7
  %v1115 = vadd.f32 %v1088, %v1109
  %v1116 = vadd.f32 %v1105, %v1110
  %v1117 = vadd.f32 %v1102, %v1111
  %v1118 = vxor.u32 %v1115, 2147483648
  %v1119 = vxor.u32 %v1116, 2147483648
  %v1120 = vxor.u32 %v1117, 2147483648
  %v1121 = vmul.f32 %v1118, 1.442695
  %v1122 = vpow.pop %v1121
  %v1123 = vmul.f32 %v1119, 1.442695
  %v1124 = vpow.pop %v1123
  %v1125 = vmul.f32 %v1120, 1.442695
  %v1126 = vpow.pop %v1125
  %v1127 = vadd.f32 %v1122, 1.0
  %v1128 = vadd.f32 %v1124, 1.0
  %v1129 = vadd.f32 %v1126, 1.0
  %v1130 = vrcp.pop %v1127
  %v1131 = vmul.f32 1.0, %v1130
  %v1132 = vrcp.pop %v1128
  %v1133 = vmul.f32 1.0, %v1132
  %v1134 = vrcp.pop %v1129
  %v1135 = vmul.f32 1.0, %v1134
  %v1136 = vlaneseq
  %v1137 = vshrl.u32 %v1136, 7
  %v1138 = vsub.s32 0, %v1137
  %v1139 = vrot.slane %v1131, %v1138
  %v1140 = vlaneseq
  %v1141 = vshrl.u32 %v1140, 7
  %v1142 = vsub.s32 0, %v1141
  %v1143 = vrot.slane %v1133, %v1142
  %v1144 = vlaneseq
  %v1145 = vshrl.u32 %v1144, 7
  %v1146 = vsub.s32 0, %v1145
  %v1147 = vrot.slane %v1135, %v1146
  %v1148 = vmul.f32 %v637, %v1139
  %v1149 = vmul.f32 %v638, %v1143
  %v1150 = vmul.f32 %v639, %v1147
  %v1151 = vmul.f32 %v640, %v1139
  %v1152 = vmul.f32 %v641, %v1143
  %v1153 = vmul.f32 %v642, %v1147
  %v1154 = vadd.f32 %v1148, %v101
  %v1155 = vadd.f32 %v1149, %v102
  %v1156 = vadd.f32 %v1150, %v103
  %v1157 = vadd.f32 %v1151, %v104
  %v1158 = vadd.f32 %v1152, %v105
  %v1159 = vadd.f32 %v1153, %v106
  %v1160 = vld [vmem:[%s7] sm:$0xff]
  %v1161 = vld [vmem:[%s7 + $0x8] sm:$0xf]
  %v1162 = vld [vmem:[%s7 + $0xc] sm:$0xff]
  %v1163 = vld [vmem:[%s7 + $0x14] sm:$0xf]
  %v1164 = vld [vmem:[%s7 + $0x18] sm:$0xff]
  %v1165 = vld [vmem:[%s7 + $0x20] sm:$0xf]
  %v1166 = vld [vmem:[%s7 + $0x24] sm:$0xff]
  %v1167 = vld [vmem:[%s7 + $0x2c] sm:$0xf]
  %v1168 = vld [vmem:[%s7 + $0x30] sm:$0xff]
  %v1169 = vld [vmem:[%s7 + $0x38] sm:$0xf]
  %v1170 = vld [vmem:[%s7 + $0x3c] sm:$0xff]
  %v1171 = vld [vmem:[%s7 + $0x44] sm:$0xf]
  %v1172 = vld [vmem:[%s7 + $0x48] sm:$0xff]
  %v1173 = vld [vmem:[%s7 + $0x50] sm:$0xf]
  %v1174 = vld [vmem:[%s7 + $0x54] sm:$0xff]
  %v1175 = vld [vmem:[%s7 + $0x5c] sm:$0xf]
  %v1176 = vld [vmem:[%s7 + $0x60] sm:$0xff]
  %v1177 = vld [vmem:[%s7 + $0x68] sm:$0xf]
  %v1178 = vld [vmem:[%s7 + $0x6c] sm:$0xff]
  %v1179 = vld [vmem:[%s7 + $0x74] sm:$0xf]
  %v1180 = vld [vmem:[%s7 + $0x78] sm:$0xff]
  %v1181 = vld [vmem:[%s7 + $0x80] sm:$0xf]
  %v1182 = vld [vmem:[%s7 + $0x84] sm:$0xff]
  %v1183 = vld [vmem:[%s7 + $0x8c] sm:$0xf]
  %v1184 = vld [vmem:[%s7 + $0x90] sm:$0xff]
  %v1185 = vld [vmem:[%s7 + $0x98] sm:$0xf]
  %v1186 = vld [vmem:[%s7 + $0x9c] sm:$0xff]
  %v1187 = vld [vmem:[%s7 + $0xa4] sm:$0xf]
  %v1188 = vld [vmem:[%s7 + $0xa8] sm:$0xff]
  %v1189 = vld [vmem:[%s7 + $0xb0] sm:$0xf]
  %v1190 = vld [vmem:[%s7 + $0xb4] sm:$0xff]
  %v1191 = vld [vmem:[%s7 + $0xbc] sm:$0xf]
  %v1192 = vld [vmem:[%s7 + $0xc0] sm:$0xff]
  %v1193 = vld [vmem:[%s7 + $0xc8] sm:$0xf]
  %v1194 = vld [vmem:[%s7 + $0xcc] sm:$0xff]
  %v1195 = vld [vmem:[%s7 + $0xd4] sm:$0xf]
  %v1196 = vld [vmem:[%s7 + $0xd8] sm:$0xff]
  %v1197 = vld [vmem:[%s7 + $0xe0] sm:$0xf]
  %v1198 = vld [vmem:[%s7 + $0xe4] sm:$0xff]
  %v1199 = vld [vmem:[%s7 + $0xec] sm:$0xf]
  %v1200 = vld [vmem:[%s7 + $0xf0] sm:$0xff]
  %v1201 = vld [vmem:[%s7 + $0xf8] sm:$0xf]
  %v1202 = vld [vmem:[%s7 + $0xfc] sm:$0xff]
  %v1203 = vld [vmem:[%s7 + $0x104] sm:$0xf]
  %v1204 = vld [vmem:[%s7 + $0x108] sm:$0xff]
  %v1205 = vld [vmem:[%s7 + $0x110] sm:$0xf]
  %v1206 = vld [vmem:[%s7 + $0x114] sm:$0xff]
  %v1207 = vld [vmem:[%s7 + $0x11c] sm:$0xf]
  %v1208 = vld [vmem:[%s7 + $0x120] sm:$0xff]
  %v1209 = vld [vmem:[%s7 + $0x128] sm:$0xf]
  %v1210 = vld [vmem:[%s7 + $0x12c] sm:$0xff]
  %v1211 = vld [vmem:[%s7 + $0x134] sm:$0xf]
  %v1212 = vld [vmem:[%s7 + $0x138] sm:$0xff]
  %v1213 = vld [vmem:[%s7 + $0x140] sm:$0xf]
  %v1214 = vld [vmem:[%s7 + $0x144] sm:$0xff]
  %v1215 = vld [vmem:[%s7 + $0x14c] sm:$0xf]
  %v1216 = vld [vmem:[%s7 + $0x150] sm:$0xff]
  %v1217 = vld [vmem:[%s7 + $0x158] sm:$0xf]
  %v1218 = vld [vmem:[%s7 + $0x15c] sm:$0xff]
  %v1219 = vld [vmem:[%s7 + $0x164] sm:$0xf]
  %v1220 = vld [vmem:[%s7 + $0x168] sm:$0xff]
  %v1221 = vld [vmem:[%s7 + $0x170] sm:$0xf]
  %v1222 = vld [vmem:[%s7 + $0x174] sm:$0xff]
  %v1223 = vld [vmem:[%s7 + $0x17c] sm:$0xf]
  %v1224 = vld [vmem:[%s7 + $0x180] sm:$0xff]
  %v1225 = vld [vmem:[%s7 + $0x188] sm:$0xf]
  %v1226 = vld [vmem:[%s7 + $0x18c] sm:$0xff]
  %v1227 = vld [vmem:[%s7 + $0x194] sm:$0xf]
  %v1228 = vld [vmem:[%s7 + $0x198] sm:$0xff]
  %v1229 = vld [vmem:[%s7 + $0x1a0] sm:$0xf]
  %v1230 = vld [vmem:[%s7 + $0x1a4] sm:$0xff]
  %v1231 = vld [vmem:[%s7 + $0x1ac] sm:$0xf]
  %v1232 = vld [vmem:[%s7 + $0x1b0] sm:$0xff]
  %v1233 = vld [vmem:[%s7 + $0x1b8] sm:$0xf]
  %v1234 = vld [vmem:[%s7 + $0x1bc] sm:$0xff]
  %v1235 = vld [vmem:[%s7 + $0x1c4] sm:$0xf]
  %v1236 = vld [vmem:[%s7 + $0x1c8] sm:$0xff]
  %v1237 = vld [vmem:[%s7 + $0x1d0] sm:$0xf]
  %v1238 = vld [vmem:[%s7 + $0x1d4] sm:$0xff]
  %v1239 = vld [vmem:[%s7 + $0x1dc] sm:$0xf]
  %v1240 = vld [vmem:[%s7 + $0x1e0] sm:$0xff]
  %v1241 = vld [vmem:[%s7 + $0x1e8] sm:$0xf]
  %v1242 = vld [vmem:[%s7 + $0x1ec] sm:$0xff]
  %v1243 = vld [vmem:[%s7 + $0x1f4] sm:$0xf]
  %v1244 = vld [vmem:[%s7 + $0x1f8] sm:$0xff]
  %v1245 = vld [vmem:[%s7 + $0x200] sm:$0xf]
  %v1246 = vld [vmem:[%s7 + $0x204] sm:$0xff]
  %v1247 = vld [vmem:[%s7 + $0x20c] sm:$0xf]
  %v1248 = vld [vmem:[%s7 + $0x210] sm:$0xff]
  %v1249 = vld [vmem:[%s7 + $0x218] sm:$0xf]
  %v1250 = vld [vmem:[%s7 + $0x21c] sm:$0xff]
  %v1251 = vld [vmem:[%s7 + $0x224] sm:$0xf]
  %v1252 = vld [vmem:[%s7 + $0x228] sm:$0xff]
  %v1253 = vld [vmem:[%s7 + $0x230] sm:$0xf]
  %v1254 = vld [vmem:[%s7 + $0x234] sm:$0xff]
  %v1255 = vld [vmem:[%s7 + $0x23c] sm:$0xf]
  %v1256 = vpack.c.bf16 %v1157, %v1154
  %v1257 = vpack.c.bf16 %v1158, %v1155
  %v1258 = vpack.c.bf16 %v1159, %v1156
  %v1355 = vunpack.c.l.b16 %v1160
  %v1356 = vunpack.c.h.b16 %v1160
  %v1357 = vunpack.c.l.b16 %v1161
  %v1358 = vunpack.c.l.b16 %v1162
  %v1359 = vunpack.c.h.b16 %v1162
  %v1360 = vunpack.c.l.b16 %v1163
  %v1361 = vunpack.c.l.b16 %v1164
  %v1362 = vunpack.c.h.b16 %v1164
  %v1363 = vunpack.c.l.b16 %v1165
  %v1364 = vunpack.c.l.b16 %v1166
  %v1365 = vunpack.c.h.b16 %v1166
  %v1366 = vunpack.c.l.b16 %v1167
  %v1367 = vunpack.c.l.b16 %v1168
  %v1368 = vunpack.c.h.b16 %v1168
  %v1369 = vunpack.c.l.b16 %v1169
  %v1370 = vunpack.c.l.b16 %v1170
  %v1371 = vunpack.c.h.b16 %v1170
  %v1372 = vunpack.c.l.b16 %v1171
  %v1373 = vunpack.c.l.b16 %v1172
  %v1374 = vunpack.c.h.b16 %v1172
  %v1375 = vunpack.c.l.b16 %v1173
  %v1376 = vunpack.c.l.b16 %v1174
  %v1377 = vunpack.c.h.b16 %v1174
  %v1378 = vunpack.c.l.b16 %v1175
  %v1379 = vunpack.c.l.b16 %v1176
  %v1380 = vunpack.c.h.b16 %v1176
  %v1381 = vunpack.c.l.b16 %v1177
  %v1382 = vunpack.c.l.b16 %v1178
  %v1383 = vunpack.c.h.b16 %v1178
  %v1384 = vunpack.c.l.b16 %v1179
  %v1385 = vunpack.c.l.b16 %v1180
  %v1386 = vunpack.c.h.b16 %v1180
  %v1387 = vunpack.c.l.b16 %v1181
  %v1388 = vunpack.c.l.b16 %v1182
  %v1389 = vunpack.c.h.b16 %v1182
  %v1390 = vunpack.c.l.b16 %v1183
  %v1391 = vunpack.c.l.b16 %v1184
  %v1392 = vunpack.c.h.b16 %v1184
  %v1393 = vunpack.c.l.b16 %v1185
  %v1394 = vunpack.c.l.b16 %v1186
  %v1395 = vunpack.c.h.b16 %v1186
  %v1396 = vunpack.c.l.b16 %v1187
  %v1397 = vunpack.c.l.b16 %v1188
  %v1398 = vunpack.c.h.b16 %v1188
  %v1399 = vunpack.c.l.b16 %v1189
  %v1400 = vunpack.c.l.b16 %v1190
  %v1401 = vunpack.c.h.b16 %v1190
  %v1402 = vunpack.c.l.b16 %v1191
  %v1403 = vunpack.c.l.b16 %v1192
  %v1404 = vunpack.c.h.b16 %v1192
  %v1405 = vunpack.c.l.b16 %v1193
  %v1406 = vunpack.c.l.b16 %v1194
  %v1407 = vunpack.c.h.b16 %v1194
  %v1408 = vunpack.c.l.b16 %v1195
  %v1409 = vunpack.c.l.b16 %v1196
  %v1410 = vunpack.c.h.b16 %v1196
  %v1411 = vunpack.c.l.b16 %v1197
  %v1412 = vunpack.c.l.b16 %v1198
  %v1413 = vunpack.c.h.b16 %v1198
  %v1414 = vunpack.c.l.b16 %v1199
  %v1415 = vunpack.c.l.b16 %v1200
  %v1416 = vunpack.c.h.b16 %v1200
  %v1417 = vunpack.c.l.b16 %v1201
  %v1418 = vunpack.c.l.b16 %v1202
  %v1419 = vunpack.c.h.b16 %v1202
  %v1420 = vunpack.c.l.b16 %v1203
  %v1421 = vunpack.c.l.b16 %v1204
  %v1422 = vunpack.c.h.b16 %v1204
  %v1423 = vunpack.c.l.b16 %v1205
  %v1424 = vunpack.c.l.b16 %v1206
  %v1425 = vunpack.c.h.b16 %v1206
  %v1426 = vunpack.c.l.b16 %v1207
  %v1427 = vunpack.c.l.b16 %v1208
  %v1428 = vunpack.c.h.b16 %v1208
  %v1429 = vunpack.c.l.b16 %v1209
  %v1430 = vunpack.c.l.b16 %v1210
  %v1431 = vunpack.c.h.b16 %v1210
  %v1432 = vunpack.c.l.b16 %v1211
  %v1433 = vunpack.c.l.b16 %v1212
  %v1434 = vunpack.c.h.b16 %v1212
  %v1435 = vunpack.c.l.b16 %v1213
  %v1436 = vunpack.c.l.b16 %v1214
  %v1437 = vunpack.c.h.b16 %v1214
  %v1438 = vunpack.c.l.b16 %v1215
  %v1439 = vunpack.c.l.b16 %v1216
  %v1440 = vunpack.c.h.b16 %v1216
  %v1441 = vunpack.c.l.b16 %v1217
  %v1442 = vunpack.c.l.b16 %v1218
  %v1443 = vunpack.c.h.b16 %v1218
  %v1444 = vunpack.c.l.b16 %v1219
  %v1445 = vunpack.c.l.b16 %v1220
  %v1446 = vunpack.c.h.b16 %v1220
  %v1447 = vunpack.c.l.b16 %v1221
  %v1448 = vunpack.c.l.b16 %v1222
  %v1449 = vunpack.c.h.b16 %v1222
  %v1450 = vunpack.c.l.b16 %v1223
  %v1451 = vunpack.c.l.b16 %v1224
  %v1452 = vunpack.c.h.b16 %v1224
  %v1453 = vunpack.c.l.b16 %v1225
  %v1454 = vunpack.c.l.b16 %v1226
  %v1455 = vunpack.c.h.b16 %v1226
  %v1456 = vunpack.c.l.b16 %v1227
  %v1457 = vunpack.c.l.b16 %v1228
  %v1458 = vunpack.c.h.b16 %v1228
  %v1459 = vunpack.c.l.b16 %v1229
  %v1460 = vunpack.c.l.b16 %v1230
  %v1461 = vunpack.c.h.b16 %v1230
  %v1462 = vunpack.c.l.b16 %v1231
  %v1463 = vunpack.c.l.b16 %v1232
  %v1464 = vunpack.c.h.b16 %v1232
  %v1465 = vunpack.c.l.b16 %v1233
  %v1466 = vunpack.c.l.b16 %v1234
  %v1467 = vunpack.c.h.b16 %v1234
  %v1468 = vunpack.c.l.b16 %v1235
  %v1469 = vunpack.c.l.b16 %v1236
  %v1470 = vunpack.c.h.b16 %v1236
  %v1471 = vunpack.c.l.b16 %v1237
  %v1472 = vunpack.c.l.b16 %v1238
  %v1473 = vunpack.c.h.b16 %v1238
  %v1474 = vunpack.c.l.b16 %v1239
  %v1475 = vunpack.c.l.b16 %v1240
  %v1476 = vunpack.c.h.b16 %v1240
  %v1477 = vunpack.c.l.b16 %v1241
  %v1478 = vunpack.c.l.b16 %v1242
  %v1479 = vunpack.c.h.b16 %v1242
  %v1480 = vunpack.c.l.b16 %v1243
  %v1481 = vunpack.c.l.b16 %v1244
  %v1482 = vunpack.c.h.b16 %v1244
  %v1483 = vunpack.c.l.b16 %v1245
  %v1484 = vunpack.c.l.b16 %v1246
  %v1485 = vunpack.c.h.b16 %v1246
  %v1486 = vunpack.c.l.b16 %v1247
  %v1487 = vunpack.c.l.b16 %v1248
  %v1488 = vunpack.c.h.b16 %v1248
  %v1489 = vunpack.c.l.b16 %v1249
  %v1490 = vunpack.c.l.b16 %v1250
  %v1491 = vunpack.c.h.b16 %v1250
  %v1492 = vunpack.c.l.b16 %v1251
  %v1493 = vunpack.c.l.b16 %v1252
  %v1494 = vunpack.c.h.b16 %v1252
  %v1495 = vunpack.c.l.b16 %v1253
  %v1496 = vunpack.c.l.b16 %v1254
  %v1497 = vunpack.c.h.b16 %v1254
  %v1498 = vunpack.c.l.b16 %v1255
  %v1499 = vpack.c.b16 %v1358, %v1355
  %v1500 = vpack.c.b16 %v1359, %v1356
  %v1501 = vpack.c.b16 %v1360, %v1357
  %v1502 = vpack.c.b16 %v1364, %v1361
  %v1503 = vpack.c.b16 %v1365, %v1362
  %v1504 = vpack.c.b16 %v1366, %v1363
  %v1505 = vpack.c.b16 %v1370, %v1367
  %v1506 = vpack.c.b16 %v1371, %v1368
  %v1507 = vpack.c.b16 %v1372, %v1369
  %v1508 = vpack.c.b16 %v1376, %v1373
  %v1509 = vpack.c.b16 %v1377, %v1374
  %v1510 = vpack.c.b16 %v1378, %v1375
  %v1511 = vpack.c.b16 %v1382, %v1379
  %v1512 = vpack.c.b16 %v1383, %v1380
  %v1513 = vpack.c.b16 %v1384, %v1381
  %v1514 = vpack.c.b16 %v1388, %v1385
  %v1515 = vpack.c.b16 %v1389, %v1386
  %v1516 = vpack.c.b16 %v1390, %v1387
  %v1517 = vpack.c.b16 %v1394, %v1391
  %v1518 = vpack.c.b16 %v1395, %v1392
  %v1519 = vpack.c.b16 %v1396, %v1393
  %v1520 = vpack.c.b16 %v1400, %v1397
  %v1521 = vpack.c.b16 %v1401, %v1398
  %v1522 = vpack.c.b16 %v1402, %v1399
  %v1523 = vpack.c.b16 %v1406, %v1403
  %v1524 = vpack.c.b16 %v1407, %v1404
  %v1525 = vpack.c.b16 %v1408, %v1405
  %v1526 = vpack.c.b16 %v1412, %v1409
  %v1527 = vpack.c.b16 %v1413, %v1410
  %v1528 = vpack.c.b16 %v1414, %v1411
  %v1529 = vpack.c.b16 %v1418, %v1415
  %v1530 = vpack.c.b16 %v1419, %v1416
  %v1531 = vpack.c.b16 %v1420, %v1417
  %v1532 = vpack.c.b16 %v1424, %v1421
  %v1533 = vpack.c.b16 %v1425, %v1422
  %v1534 = vpack.c.b16 %v1426, %v1423
  %v1535 = vpack.c.b16 %v1430, %v1427
  %v1536 = vpack.c.b16 %v1431, %v1428
  %v1537 = vpack.c.b16 %v1432, %v1429
  %v1538 = vpack.c.b16 %v1436, %v1433
  %v1539 = vpack.c.b16 %v1437, %v1434
  %v1540 = vpack.c.b16 %v1438, %v1435
  %v1541 = vpack.c.b16 %v1442, %v1439
  %v1542 = vpack.c.b16 %v1443, %v1440
  %v1543 = vpack.c.b16 %v1444, %v1441
  %v1544 = vpack.c.b16 %v1448, %v1445
  %v1545 = vpack.c.b16 %v1449, %v1446
  %v1546 = vpack.c.b16 %v1450, %v1447
  %v1547 = vpack.c.b16 %v1454, %v1451
  %v1548 = vpack.c.b16 %v1455, %v1452
  %v1549 = vpack.c.b16 %v1456, %v1453
  %v1550 = vpack.c.b16 %v1460, %v1457
  %v1551 = vpack.c.b16 %v1461, %v1458
  %v1552 = vpack.c.b16 %v1462, %v1459
  %v1553 = vpack.c.b16 %v1466, %v1463
  %v1554 = vpack.c.b16 %v1467, %v1464
  %v1555 = vpack.c.b16 %v1468, %v1465
  %v1556 = vpack.c.b16 %v1472, %v1469
  %v1557 = vpack.c.b16 %v1473, %v1470
  %v1558 = vpack.c.b16 %v1474, %v1471
  %v1559 = vpack.c.b16 %v1478, %v1475
  %v1560 = vpack.c.b16 %v1479, %v1476
  %v1561 = vpack.c.b16 %v1480, %v1477
  %v1562 = vpack.c.b16 %v1484, %v1481
  %v1563 = vpack.c.b16 %v1485, %v1482
  %v1564 = vpack.c.b16 %v1486, %v1483
  %v1565 = vpack.c.b16 %v1490, %v1487
  %v1566 = vpack.c.b16 %v1491, %v1488
  %v1567 = vpack.c.b16 %v1492, %v1489
  %v1568 = vpack.c.b16 %v1496, %v1493
  %v1569 = vpack.c.b16 %v1497, %v1494
  %v1570 = vpack.c.b16 %v1498, %v1495
  %1643 = vmatprep.subr.bf16.mxu0 %v1500
  %1644 = vmatpush1.bf16.msra.mxu0 %v1499
  %1645 = vmatprep.subr.bf16.mxu0 %v1503
  %1646 = vmatpush1.bf16.msra.mxu0 %v1502
  %1647 = vmatprep.subr.bf16.mxu0 %v1506
  %1648 = vmatpush1.bf16.msra.mxu0 %v1505
  %1649 = vmatprep.subr.bf16.mxu0 %v1509
  %1650 = vmatpush1.bf16.msra.mxu0 %v1508
  %1651 = vmatprep.subr.bf16.mxu0 %v1512
  %1652 = vmatpush1.bf16.msra.mxu0 %v1511
  %1653 = vmatprep.subr.bf16.mxu0 %v1515
  %1654 = vmatpush1.bf16.msra.mxu0 %v1514
  %1655 = vmatprep.subr.bf16.mxu0 %v1518
  %1656 = vmatpush1.bf16.msra.mxu0 %v1517
  %1657 = vmatprep.subr.bf16.mxu0 %v1521
  %1658 = vmatpush1.bf16.msra.mxu0 %v1520
  %1659 = vmatprep.subr.bf16.mxu0 %v1524
  %1660 = vmatpush1.bf16.msra.mxu0 %v1523
  %1661 = vmatprep.subr.bf16.mxu0 %v1527
  %1662 = vmatpush1.bf16.msra.mxu0 %v1526
  %1663 = vmatprep.subr.bf16.mxu0 %v1530
  %1664 = vmatpush1.bf16.msra.mxu0 %v1529
  %1665 = vmatprep.subr.bf16.mxu0 %v1533
  %1666 = vmatpush1.bf16.msra.mxu0 %v1532
  %1667 = vmatprep.subr.bf16.mxu0 %v1536
  %1668 = vmatpush1.bf16.msra.mxu0 %v1535
  %1669 = vmatprep.subr.bf16.mxu0 %v1539
  %1670 = vmatpush1.bf16.msra.mxu0 %v1538
  %1671 = vmatprep.subr.bf16.mxu0 %v1542
  %1672 = vmatpush1.bf16.msra.mxu0 %v1541
  %1673 = vmatprep.subr.bf16.mxu0 %v1545
  %1674 = vmatpush1.bf16.msra.mxu0 %v1544
  %1675 = vmatprep.mubr.bf16.mxu0 %v1257
  %1676 = vmatmul.mubr.bf16.gmra.mrb[0].mxu0 %v1256
  %v1677 = vpop.f32.mrb[0].mxu0
  %v1678 = vadd.f32 0.0, %v1677
  %v1679 = vpop.f32.mrb[0].mxu0
  %v1680 = vadd.f32 0.0, %v1679
  %v1681 = vpop.f32.mrb[0].mxu0
  %v1682 = vadd.f32 0.0, %v1681
  %v1683 = vpop.f32.mrb[0].mxu0
  %v1684 = vadd.f32 0.0, %v1683
  %1685 = vdwg.mxu0
  %1686 = vmatprep.subr.bf16.mxu0 %v1548
  %1687 = vmatpush1.bf16.msra.mxu0 %v1547
  %1688 = vmatprep.subr.bf16.mxu0 %v1551
  %1689 = vmatpush1.bf16.msra.mxu0 %v1550
  %1690 = vmatprep.subr.bf16.mxu0 %v1554
  %1691 = vmatpush1.bf16.msra.mxu0 %v1553
  %1692 = vmatprep.subr.bf16.mxu0 %v1557
  %1693 = vmatpush1.bf16.msra.mxu0 %v1556
  %1694 = vmatprep.subr.bf16.mxu0 %v1560
  %1695 = vmatpush1.bf16.msra.mxu0 %v1559
  %1696 = vmatprep.subr.bf16.mxu0 %v1563
  %1697 = vmatpush1.bf16.msra.mxu0 %v1562
  %1698 = vmatprep.subr.bf16.mxu0 %v1566
  %1699 = vmatpush1.bf16.msra.mxu0 %v1565
  %1700 = vmatprep.subr.bf16.mxu0 %v1569
  %1701 = vmatpush1.bf16.msra.mxu0 %v1568
  %1702 = vmatprep.subr.bf16.mxu0 0
  %1703 = vmatpush1.bf16.msra.mxu0 0
  %1704 = vmatprep.subr.bf16.mxu0 0
  %1705 = vmatpush1.bf16.msra.mxu0 0
  %1706 = vmatprep.subr.bf16.mxu0 0
  %1707 = vmatpush1.bf16.msra.mxu0 0
  %1708 = vmatprep.subr.bf16.mxu0 0
  %1709 = vmatpush1.bf16.msra.mxu0 0
  %1710 = vmatprep.subr.bf16.mxu0 0
  %1711 = vmatpush1.bf16.msra.mxu0 0
  %1712 = vmatprep.subr.bf16.mxu0 0
  %1713 = vmatpush1.bf16.msra.mxu0 0
  %1714 = vmatprep.subr.bf16.mxu0 0
  %1715 = vmatpush1.bf16.msra.mxu0 0
  %1716 = vmatprep.subr.bf16.mxu0 0
  %1717 = vmatpush1.bf16.msra.mxu0 0
  %1718 = vmatprep.mubr.bf16.mxu0 0
  %1719 = vmatmul.mubr.bf16.gmra.mrb[0].mxu0 %v1258
  %v1720 = vpop.f32.mrb[0].mxu0
  %v1721 = vadd.f32 %v1678, %v1720
  %v1722 = vpop.f32.mrb[0].mxu0
  %v1723 = vadd.f32 %v1680, %v1722
  %v1724 = vpop.f32.mrb[0].mxu0
  %v1725 = vadd.f32 %v1682, %v1724
  %v1726 = vpop.f32.mrb[0].mxu0
  %v1727 = vadd.f32 %v1684, %v1726
  %1728 = vdwg.mxu0
  %1729 = vmatprep.subr.bf16.mxu0 0
  %1730 = vmatpush1.bf16.msra.mxu0 %v1501
  %1731 = vmatprep.subr.bf16.mxu0 0
  %1732 = vmatpush1.bf16.msra.mxu0 %v1504
  %1733 = vmatprep.subr.bf16.mxu0 0
  %1734 = vmatpush1.bf16.msra.mxu0 %v1507
  %1735 = vmatprep.subr.bf16.mxu0 0
  %1736 = vmatpush1.bf16.msra.mxu0 %v1510
  %1737 = vmatprep.subr.bf16.mxu0 0
  %1738 = vmatpush1.bf16.msra.mxu0 %v1513
  %1739 = vmatprep.subr.bf16.mxu0 0
  %1740 = vmatpush1.bf16.msra.mxu0 %v1516
  %1741 = vmatprep.subr.bf16.mxu0 0
  %1742 = vmatpush1.bf16.msra.mxu0 %v1519
  %1743 = vmatprep.subr.bf16.mxu0 0
  %1744 = vmatpush1.bf16.msra.mxu0 %v1522
  %1745 = vmatprep.subr.bf16.mxu0 0
  %1746 = vmatpush1.bf16.msra.mxu0 %v1525
  %1747 = vmatprep.subr.bf16.mxu0 0
  %1748 = vmatpush1.bf16.msra.mxu0 %v1528
  %1749 = vmatprep.subr.bf16.mxu0 0
  %1750 = vmatpush1.bf16.msra.mxu0 %v1531
  %1751 = vmatprep.subr.bf16.mxu0 0
  %1752 = vmatpush1.bf16.msra.mxu0 %v1534
  %1753 = vmatprep.subr.bf16.mxu0 0
  %1754 = vmatpush1.bf16.msra.mxu0 %v1537
  %1755 = vmatprep.subr.bf16.mxu0 0
  %1756 = vmatpush1.bf16.msra.mxu0 %v1540
  %1757 = vmatprep.subr.bf16.mxu0 0
  %1758 = vmatpush1.bf16.msra.mxu0 %v1543
  %1759 = vmatprep.subr.bf16.mxu0 0
  %1760 = vmatpush1.bf16.msra.mxu0 %v1546
  %1761 = vmatprep.mubr.bf16.mxu0 %v1257
  %1762 = vmatmul.mubr.bf16.gmra.mrb[0].mxu0 %v1256
  %v1763 = vpop.f32.mrb[0].mxu0
  %v1764 = vadd.f32 0.0, %v1763
  %v1765 = vpop.f32.mrb[0].mxu0
  %v1766 = vpop.f32.mrb[0].mxu0
  %v1767 = vadd.f32 0.0, %v1766
  %v1768 = vpop.f32.mrb[0].mxu0
  %1769 = vdwg.mxu0
  %1770 = vmatprep.subr.bf16.mxu0 0
  %1771 = vmatpush1.bf16.msra.mxu0 %v1549
  %1772 = vmatprep.subr.bf16.mxu0 0
  %1773 = vmatpush1.bf16.msra.mxu0 %v1552
  %1774 = vmatprep.subr.bf16.mxu0 0
  %1775 = vmatpush1.bf16.msra.mxu0 %v1555
  %1776 = vmatprep.subr.bf16.mxu0 0
  %1777 = vmatpush1.bf16.msra.mxu0 %v1558
  %1778 = vmatprep.subr.bf16.mxu0 0
  %1779 = vmatpush1.bf16.msra.mxu0 %v1561
  %1780 = vmatprep.subr.bf16.mxu0 0
  %1781 = vmatpush1.bf16.msra.mxu0 %v1564
  %1782 = vmatprep.subr.bf16.mxu0 0
  %1783 = vmatpush1.bf16.msra.mxu0 %v1567
  %1784 = vmatprep.subr.bf16.mxu0 0
  %1785 = vmatpush1.bf16.msra.mxu0 %v1570
  %1786 = vmatprep.subr.bf16.mxu0 0
  %1787 = vmatpush1.bf16.msra.mxu0 0
  %1788 = vmatprep.subr.bf16.mxu0 0
  %1789 = vmatpush1.bf16.msra.mxu0 0
  %1790 = vmatprep.subr.bf16.mxu0 0
  %1791 = vmatpush1.bf16.msra.mxu0 0
  %1792 = vmatprep.subr.bf16.mxu0 0
  %1793 = vmatpush1.bf16.msra.mxu0 0
  %1794 = vmatprep.subr.bf16.mxu0 0
  %1795 = vmatpush1.bf16.msra.mxu0 0
  %1796 = vmatprep.subr.bf16.mxu0 0
  %1797 = vmatpush1.bf16.msra.mxu0 0
  %1798 = vmatprep.subr.bf16.mxu0 0
  %1799 = vmatpush1.bf16.msra.mxu0 0
  %1800 = vmatprep.subr.bf16.mxu0 0
  %1801 = vmatpush1.bf16.msra.mxu0 0
  %1802 = vmatprep.mubr.bf16.mxu0 0
  %1803 = vmatmul.mubr.bf16.gmra.mrb[0].mxu0 %v1258
  %v1804 = vpop.f32.mrb[0].mxu0
  %v1805 = vadd.f32 %v1764, %v1804
  %v1806 = vpop.f32.mrb[0].mxu0
  %v1807 = vpop.f32.mrb[0].mxu0
  %v1808 = vadd.f32 %v1767, %v1807
  %v1809 = vpop.f32.mrb[0].mxu0
  %1810 = vdwg.mxu0
  %v1811 = vld [vmem:[%s6] sm:$0xf]
  %v1812 = vld [vmem:[%s6 + $0x4] sm:$0xf]
  %v1813 = vpack.c.bf16 %v1725, %v1721
  %v1814 = vpack.c.bf16 %v1727, %v1723
  %v1815 = vpack.c.bf16 %v1808, %v1805
  %v1816 = vlaneseq
  %v1817 = vshrl.u32 %v1816, 7
  %v1818 = vsub.s32 2, %v1817
  %v1819 = vrot.slane %v39, %v1818
  %v1820 = vlaneseq
  %v1821 = vshrl.u32 %v1820, 7
  %v1822 = vsub.s32 2, %v1821
  %v1823 = vrot.slane %v40, %v1822
  %v1824 = vlaneseq
  %v1825 = vshrl.u32 %v1824, 7
  %v1826 = vsub.s32 2, %v1825
  %v1827 = vrot.slane %v41, %v1826
  %v1830 = vunpack.c.l.b16 %v1811
  %v1831 = vunpack.c.l.b16 %v1812
  %v1832 = vpack.c.b16 %v1831, %v1830
  %vm1833 = vcmask 130048
  %v1835 = vsel %vm1833, %v1832, 0
  %1837 = vmatprep.subr.bf16.mxu0 %v1814
  %1838 = vmatpush1.bf16.msra.mxu0 %v1813
  %1839 = vmatprep.subr.bf16.mxu0 0
  %1840 = vmatpush1.bf16.msra.mxu0 0
  %1841 = vmatprep.subr.bf16.mxu0 0
  %1842 = vmatpush1.bf16.msra.mxu0 0
  %1843 = vmatprep.subr.bf16.mxu0 0
  %1844 = vmatpush1.bf16.msra.mxu0 0
  %1845 = vmatprep.subr.bf16.mxu0 0
  %1846 = vmatpush1.bf16.msra.mxu0 0
  %1847 = vmatprep.subr.bf16.mxu0 0
  %1848 = vmatpush1.bf16.msra.mxu0 0
  %1849 = vmatprep.subr.bf16.mxu0 0
  %1850 = vmatpush1.bf16.msra.mxu0 0
  %1851 = vmatprep.subr.bf16.mxu0 0
  %1852 = vmatpush1.bf16.msra.mxu0 0
  %1853 = vmatprep.subr.bf16.mxu0 0
  %1854 = vmatpush1.bf16.msra.mxu0 0
  %1855 = vmatprep.subr.bf16.mxu0 0
  %1856 = vmatpush1.bf16.msra.mxu0 0
  %1857 = vmatprep.subr.bf16.mxu0 0
  %1858 = vmatpush1.bf16.msra.mxu0 0
  %1859 = vmatprep.subr.bf16.mxu0 0
  %1860 = vmatpush1.bf16.msra.mxu0 0
  %1861 = vmatprep.subr.bf16.mxu0 0
  %1862 = vmatpush1.bf16.msra.mxu0 0
  %1863 = vmatprep.subr.bf16.mxu0 0
  %1864 = vmatpush1.bf16.msra.mxu0 0
  %1865 = vmatprep.subr.bf16.mxu0 0
  %1866 = vmatpush1.bf16.msra.mxu0 0
  %1867 = vmatprep.subr.bf16.mxu0 0
  %1868 = vmatpush1.bf16.msra.mxu0 0
  %1869 = vmatprep.mubr.bf16.mxu0 0
  %1870 = vmatmul.mubr.bf16.gmra.mrb[0].mxu0 %v1835
  %v1871 = vpop.f32.mrb[0].mxu0
  %v1872 = vadd.f32 %v1819, %v1871
  %v1873 = vpop.f32.mrb[0].mxu0
  %v1874 = vadd.f32 %v1823, %v1873
  %v1875 = vpop.f32.mrb[0].mxu0
  %v1876 = vadd.f32 %v1819, %v1875
  %v1877 = vpop.f32.mrb[0].mxu0
  %v1878 = vadd.f32 %v1823, %v1877
  %1879 = vdwg.mxu0
  %1880 = vmatprep.subr.bf16.mxu0 0
  %1881 = vmatpush1.bf16.msra.mxu0 %v1815
  %1882 = vmatprep.subr.bf16.mxu0 0
  %1883 = vmatpush1.bf16.msra.mxu0 0
  %1884 = vmatprep.subr.bf16.mxu0 0
  %1885 = vmatpush1.bf16.msra.mxu0 0
  %1886 = vmatprep.subr.bf16.mxu0 0
  %1887 = vmatpush1.bf16.msra.mxu0 0
  %1888 = vmatprep.subr.bf16.mxu0 0
  %1889 = vmatpush1.bf16.msra.mxu0 0
  %1890 = vmatprep.subr.bf16.mxu0 0
  %1891 = vmatpush1.bf16.msra.mxu0 0
  %1892 = vmatprep.subr.bf16.mxu0 0
  %1893 = vmatpush1.bf16.msra.mxu0 0
  %1894 = vmatprep.subr.bf16.mxu0 0
  %1895 = vmatpush1.bf16.msra.mxu0 0
  %1896 = vmatprep.subr.bf16.mxu0 0
  %1897 = vmatpush1.bf16.msra.mxu0 0
  %1898 = vmatprep.subr.bf16.mxu0 0
  %1899 = vmatpush1.bf16.msra.mxu0 0
  %1900 = vmatprep.subr.bf16.mxu0 0
  %1901 = vmatpush1.bf16.msra.mxu0 0
  %1902 = vmatprep.subr.bf16.mxu0 0
  %1903 = vmatpush1.bf16.msra.mxu0 0
  %1904 = vmatprep.subr.bf16.mxu0 0
  %1905 = vmatpush1.bf16.msra.mxu0 0
  %1906 = vmatprep.subr.bf16.mxu0 0
  %1907 = vmatpush1.bf16.msra.mxu0 0
  %1908 = vmatprep.subr.bf16.mxu0 0
  %1909 = vmatpush1.bf16.msra.mxu0 0
  %1910 = vmatprep.subr.bf16.mxu0 0
  %1911 = vmatpush1.bf16.msra.mxu0 0
  %1912 = vmatprep.mubr.bf16.mxu0 0
  %1913 = vmatmul.mubr.bf16.gmra.mrb[0].mxu0 %v1835
  %v1914 = vpop.f32.mrb[0].mxu0
  %v1915 = vadd.f32 %v1827, %v1914
  %v1916 = vpop.f32.mrb[0].mxu0
  %v1917 = vpop.f32.mrb[0].mxu0
  %v1918 = vadd.f32 %v1827, %v1917
  %v1919 = vpop.f32.mrb[0].mxu0
  %1920 = vdwg.mxu0
  %v1921 = vadd.f32 %v1872, %v1874
  %v1922 = vadd.f32 %v1921, %v1915
  %1923 = vadd.xlane.f32.xlu0 %v1922
  %v1924 = vpop.xlane.xlu0 %1923
  %v1925 = vadd.f32 %v1876, %v1878
  %v1926 = vadd.f32 %v1925, %v1918
  %1927 = vadd.xlane.f32.xlu0 %v1926
  %v1928 = vpop.xlane.xlu0 %1927
  %v1929 = vmul.f32 %v1924, 0.0026041667
  %v1930 = vmul.f32 %v1928, 0.0026041667
  %v1931 = vsub.f32 %v1872, %v1929
  %v1932 = vsub.f32 %v1874, %v1929
  %v1933 = vsub.f32 %v1915, %v1929
  %v1934 = vsub.f32 %v1876, %v1930
  %v1935 = vsub.f32 %v1878, %v1930
  %v1936 = vsub.f32 %v1918, %v1930
  %v1937 = vmul.f32 %v1931, %v1931
  %v1938 = vmul.f32 %v1932, %v1932
  %v1939 = vmul.f32 %v1933, %v1933
  %v1940 = vmul.f32 %v1934, %v1934
  %v1941 = vmul.f32 %v1935, %v1935
  %v1942 = vmul.f32 %v1936, %v1936
  %v1943 = vadd.f32 %v1937, %v1938
  %v1944 = vadd.f32 %v1943, %v1939
  %1945 = vadd.xlane.f32.xlu0 %v1944
  %v1946 = vpop.xlane.xlu0 %1945
  %v1947 = vadd.f32 %v1940, %v1941
  %v1948 = vadd.f32 %v1947, %v1942
  %1949 = vadd.xlane.f32.xlu0 %v1948
  %v1950 = vpop.xlane.xlu0 %1949
  %v1951 = vmul.f32 %v1946, 0.0026041667
  %v1952 = vmul.f32 %v1950, 0.0026041667
  %v1953 = vadd.f32 %v1951, 1e-05
  %v1954 = vadd.f32 %v1952, 1e-05
  %v1955 = vrsqrt.pop %v1953
  %v1956 = vrsqrt.pop %v1954
  %v1957 = vmul.f32 %v45, %v1955
  %v1958 = vmul.f32 %v46, %v1956
  %1960 = vset.pattern.permute.xlu0 12
  %1961 = vperm.xlu0 %1960, %v1957
  %v1962 = vpop.permute.xlu0 %1961
  %1965 = vset.pattern.permute.xlu0 12
  %1966 = vperm.xlu0 %1965, %v1958
  %v1967 = vpop.permute.xlu0 %1966
  %v1969 = vmul.f32 %v1931, %v1962
  %v1970 = vmul.f32 %v1932, %v1962
  %v1971 = vmul.f32 %v1933, %v1962
  %v1972 = vmul.f32 %v1934, %v1967
  %v1973 = vmul.f32 %v1935, %v1967
  %v1974 = vmul.f32 %v1936, %v1967
  %1975 = vset.pattern.permute.xlu0 13
  %1976 = vperm.xlu0 %1975, %v45
  %v1977 = vpop.permute.xlu0 %1976
  %1979 = vset.pattern.permute.xlu0 13
  %1980 = vperm.xlu0 %1979, %v46
  %v1981 = vpop.permute.xlu0 %1980
  %v1983 = vadd.f32 %v1969, %v1977
  %v1984 = vadd.f32 %v1970, %v1977
  %v1985 = vadd.f32 %v1971, %v1977
  %v1986 = vadd.f32 %v1972, %v1981
  %v1987 = vadd.f32 %v1973, %v1981
  %v1988 = vadd.f32 %v1974, %v1981
  %v1989 = vmax.f32 %v1983, 0.0
  %v1990 = vmax.f32 %v1984, 0.0
  %v1991 = vmax.f32 %v1985, 0.0
  %v1992 = vmax.f32 %v1986, 0.0
  %v1993 = vmax.f32 %v1987, 0.0
  %v1994 = vmax.f32 %v1988, 0.0
  %2001 = vrot.lane.b32.xlu0 %v1989, 1
  %v2002 = vpop.permute.xlu0 %2001
  %2003 = vrot.lane.b32.xlu0 %v1990, 1
  %v2004 = vpop.permute.xlu0 %2003
  %2005 = vrot.lane.b32.xlu0 %v1991, 1
  %v2006 = vpop.permute.xlu0 %2005
  %2007 = vrot.lane.b32.xlu0 %v1992, 1
  %v2008 = vpop.permute.xlu0 %2007
  %2009 = vrot.lane.b32.xlu0 %v1993, 1
  %v2010 = vpop.permute.xlu0 %2009
  %2011 = vrot.lane.b32.xlu0 %v1994, 1
  %v2012 = vpop.permute.xlu0 %2011
  %v2013 = vsel %vm125, %v2002, %v2004
  %v2014 = vsel %vm125, %v2004, %v2006
  %v2015 = vsel %vm125, %v2008, %v2010
  %v2016 = vsel %vm125, %v2010, %v2012
  %v2023 = vsel %vm125, 0.0, %v2002
  %v2024 = vsel %vm125, 0.0, %v2008
  %v2025 = vmul.f32 %v2023, %v141
  %v2026 = vmul.f32 %v2013, %v145
  %v2027 = vmul.f32 %v2014, %v149
  %v2028 = vmul.f32 %v2024, %v141
  %v2029 = vmul.f32 %v2015, %v145
  %v2030 = vmul.f32 %v2016, %v149
  %2031 = vrot.lane.b32.xlu0 %v1989, 127
  %v2032 = vpop.permute.xlu0 %2031
  %2033 = vrot.lane.b32.xlu0 %v1990, 127
  %v2034 = vpop.permute.xlu0 %2033
  %2035 = vrot.lane.b32.xlu0 %v1991, 127
  %v2036 = vpop.permute.xlu0 %2035
  %2037 = vrot.lane.b32.xlu0 %v1992, 127
  %v2038 = vpop.permute.xlu0 %2037
  %2039 = vrot.lane.b32.xlu0 %v1993, 127
  %v2040 = vpop.permute.xlu0 %2039
  %2041 = vrot.lane.b32.xlu0 %v1994, 127
  %v2042 = vpop.permute.xlu0 %2041
  %v2043 = vsel %vm168, %v2032, %v2034
  %v2044 = vsel %vm168, %v2034, %v2036
  %v2045 = vsel %vm168, %v2038, %v2040
  %v2046 = vsel %vm168, %v2040, %v2042
  %v2053 = vsel %vm168, %v2036, 0.0
  %v2054 = vsel %vm168, %v2042, 0.0
  %v2055 = vmul.f32 %v2043, %v184
  %v2056 = vmul.f32 %v2044, %v188
  %v2057 = vmul.f32 %v2053, %v192
  %v2058 = vmul.f32 %v2045, %v184
  %v2059 = vmul.f32 %v2046, %v188
  %v2060 = vmul.f32 %v2054, %v192
  %s2061 = scalar_lea.vmem %s3, 8
  %v2062 = vld [vmem:[%s2061] sm:$0xf]
  %v2063 = vld [vmem:[%s2061 + $0x4] sm:$0xf]
  %v2064 = vpack.c.bf16 %v2028, %v2025
  %v2065 = vpack.c.bf16 %v2029, %v2026
  %v2066 = vpack.c.bf16 %v2030, %v2027
  %v2067 = vpack.c.bf16 %v1992, %v1989
  %v2068 = vpack.c.bf16 %v1993, %v1990
  %v2069 = vpack.c.bf16 %v1994, %v1991
  %v2070 = vpack.c.bf16 %v2058, %v2055
  %v2071 = vpack.c.bf16 %v2059, %v2056
  %v2072 = vpack.c.bf16 %v2060, %v2057
  %2073 = vset.pattern.permute.xlu0 4
  %2074 = vperm.xlu0 %2073, %v45
  %v2075 = vpop.permute.xlu0 %2074
  %2077 = vset.pattern.permute.xlu0 4
  %2078 = vperm.xlu0 %2077, %v46
  %v2079 = vpop.permute.xlu0 %2078
  %v2083 = vunpack.c.l.b16 %v2062
  %v2084 = vunpack.c.l.b16 %v2063
  %v2085 = vpack.c.b16 %v2084, %v2083
  %v2087 = vsel %vm225, %v2085, 0
  %2089 = vmatprep.subr.bf16.mxu0 %v2065
  %2090 = vmatpush1.bf16.msra.mxu0 %v2064
  %2091 = vmatprep.subr.bf16.mxu0 %v2068
  %2092 = vmatpush1.bf16.msra.mxu0 %v2067
  %2093 = vmatprep.subr.bf16.mxu0 %v2071
  %2094 = vmatpush1.bf16.msra.mxu0 %v2070
  %2095 = vmatprep.subr.bf16.mxu0 0
  %2096 = vmatpush1.bf16.msra.mxu0 0
  %2097 = vmatprep.subr.bf16.mxu0 0
  %2098 = vmatpush1.bf16.msra.mxu0 0
  %2099 = vmatprep.subr.bf16.mxu0 0
  %2100 = vmatpush1.bf16.msra.mxu0 0
  %2101 = vmatprep.subr.bf16.mxu0 0
  %2102 = vmatpush1.bf16.msra.mxu0 0
  %2103 = vmatprep.subr.bf16.mxu0 0
  %2104 = vmatpush1.bf16.msra.mxu0 0
  %2105 = vmatprep.subr.bf16.mxu0 0
  %2106 = vmatpush1.bf16.msra.mxu0 0
  %2107 = vmatprep.subr.bf16.mxu0 0
  %2108 = vmatpush1.bf16.msra.mxu0 0
  %2109 = vmatprep.subr.bf16.mxu0 0
  %2110 = vmatpush1.bf16.msra.mxu0 0
  %2111 = vmatprep.subr.bf16.mxu0 0
  %2112 = vmatpush1.bf16.msra.mxu0 0
  %2113 = vmatprep.subr.bf16.mxu0 0
  %2114 = vmatpush1.bf16.msra.mxu0 0
  %2115 = vmatprep.subr.bf16.mxu0 0
  %2116 = vmatpush1.bf16.msra.mxu0 0
  %2117 = vmatprep.subr.bf16.mxu0 0
  %2118 = vmatpush1.bf16.msra.mxu0 0
  %2119 = vmatprep.subr.bf16.mxu0 0
  %2120 = vmatpush1.bf16.msra.mxu0 0
  %2121 = vmatprep.mubr.bf16.mxu0 0
  %2122 = vmatmul.mubr.bf16.gmra.mrb[0].mxu0 %v2087
  %v2123 = vpop.f32.mrb[0].mxu0
  %v2124 = vadd.f32 %v2075, %v2123
  %v2125 = vpop.f32.mrb[0].mxu0
  %v2126 = vadd.f32 %v2075, %v2125
  %v2127 = vpop.f32.mrb[0].mxu0
  %v2128 = vadd.f32 %v2079, %v2127
  %v2129 = vpop.f32.mrb[0].mxu0
  %v2130 = vadd.f32 %v2079, %v2129
  %2131 = vdwg.mxu0
  %2132 = vmatprep.subr.bf16.mxu0 0
  %2133 = vmatpush1.bf16.msra.mxu0 %v2066
  %2134 = vmatprep.subr.bf16.mxu0 0
  %2135 = vmatpush1.bf16.msra.mxu0 %v2069
  %2136 = vmatprep.subr.bf16.mxu0 0
  %2137 = vmatpush1.bf16.msra.mxu0 %v2072
  %2138 = vmatprep.subr.bf16.mxu0 0
  %2139 = vmatpush1.bf16.msra.mxu0 0
  %2140 = vmatprep.subr.bf16.mxu0 0
  %2141 = vmatpush1.bf16.msra.mxu0 0
  %2142 = vmatprep.subr.bf16.mxu0 0
  %2143 = vmatpush1.bf16.msra.mxu0 0
  %2144 = vmatprep.subr.bf16.mxu0 0
  %2145 = vmatpush1.bf16.msra.mxu0 0
  %2146 = vmatprep.subr.bf16.mxu0 0
  %2147 = vmatpush1.bf16.msra.mxu0 0
  %2148 = vmatprep.subr.bf16.mxu0 0
  %2149 = vmatpush1.bf16.msra.mxu0 0
  %2150 = vmatprep.subr.bf16.mxu0 0
  %2151 = vmatpush1.bf16.msra.mxu0 0
  %2152 = vmatprep.subr.bf16.mxu0 0
  %2153 = vmatpush1.bf16.msra.mxu0 0
  %2154 = vmatprep.subr.bf16.mxu0 0
  %2155 = vmatpush1.bf16.msra.mxu0 0
  %2156 = vmatprep.subr.bf16.mxu0 0
  %2157 = vmatpush1.bf16.msra.mxu0 0
  %2158 = vmatprep.subr.bf16.mxu0 0
  %2159 = vmatpush1.bf16.msra.mxu0 0
  %2160 = vmatprep.subr.bf16.mxu0 0
  %2161 = vmatpush1.bf16.msra.mxu0 0
  %2162 = vmatprep.subr.bf16.mxu0 0
  %2163 = vmatpush1.bf16.msra.mxu0 0
  %2164 = vmatprep.mubr.bf16.mxu0 0
  %2165 = vmatmul.mubr.bf16.gmra.mrb[0].mxu0 %v2087
  %v2166 = vpop.f32.mrb[0].mxu0
  %v2167 = vadd.f32 %v2075, %v2166
  %v2168 = vpop.f32.mrb[0].mxu0
  %v2169 = vpop.f32.mrb[0].mxu0
  %v2170 = vadd.f32 %v2079, %v2169
  %v2171 = vpop.f32.mrb[0].mxu0
  %2172 = vdwg.mxu0
  %v2173 = vadd.f32 %v2124, %v2126
  %v2174 = vadd.f32 %v2173, %v2167
  %2175 = vadd.xlane.f32.xlu0 %v2174
  %v2176 = vpop.xlane.xlu0 %2175
  %v2177 = vadd.f32 %v2128, %v2130
  %v2178 = vadd.f32 %v2177, %v2170
  %2179 = vadd.xlane.f32.xlu0 %v2178
  %v2180 = vpop.xlane.xlu0 %2179
  %v2181 = vmul.f32 %v2176, 0.0026041667
  %v2182 = vmul.f32 %v2180, 0.0026041667
  %v2183 = vsub.f32 %v2124, %v2181
  %v2184 = vsub.f32 %v2126, %v2181
  %v2185 = vsub.f32 %v2167, %v2181
  %v2186 = vsub.f32 %v2128, %v2182
  %v2187 = vsub.f32 %v2130, %v2182
  %v2188 = vsub.f32 %v2170, %v2182
  %v2189 = vmul.f32 %v2183, %v2183
  %v2190 = vmul.f32 %v2184, %v2184
  %v2191 = vmul.f32 %v2185, %v2185
  %v2192 = vmul.f32 %v2186, %v2186
  %v2193 = vmul.f32 %v2187, %v2187
  %v2194 = vmul.f32 %v2188, %v2188
  %v2195 = vadd.f32 %v2189, %v2190
  %v2196 = vadd.f32 %v2195, %v2191
  %2197 = vadd.xlane.f32.xlu0 %v2196
  %v2198 = vpop.xlane.xlu0 %2197
  %v2199 = vadd.f32 %v2192, %v2193
  %v2200 = vadd.f32 %v2199, %v2194
  %2201 = vadd.xlane.f32.xlu0 %v2200
  %v2202 = vpop.xlane.xlu0 %2201
  %v2203 = vmul.f32 %v2198, 0.0026041667
  %v2204 = vmul.f32 %v2202, 0.0026041667
  %v2205 = vadd.f32 %v2203, 1e-05
  %v2206 = vadd.f32 %v2204, 1e-05
  %v2207 = vrsqrt.pop %v2205
  %v2208 = vrsqrt.pop %v2206
  %v2209 = vmul.f32 %v45, %v2207
  %v2210 = vmul.f32 %v46, %v2208
  %2212 = vset.pattern.permute.xlu0 5
  %2213 = vperm.xlu0 %2212, %v2209
  %v2214 = vpop.permute.xlu0 %2213
  %2217 = vset.pattern.permute.xlu0 5
  %2218 = vperm.xlu0 %2217, %v2210
  %v2219 = vpop.permute.xlu0 %2218
  %v2221 = vmul.f32 %v2183, %v2214
  %v2222 = vmul.f32 %v2184, %v2214
  %v2223 = vmul.f32 %v2185, %v2214
  %v2224 = vmul.f32 %v2186, %v2219
  %v2225 = vmul.f32 %v2187, %v2219
  %v2226 = vmul.f32 %v2188, %v2219
  %2227 = vset.pattern.permute.xlu0 6
  %2228 = vperm.xlu0 %2227, %v45
  %v2229 = vpop.permute.xlu0 %2228
  %2231 = vset.pattern.permute.xlu0 6
  %2232 = vperm.xlu0 %2231, %v46
  %v2233 = vpop.permute.xlu0 %2232
  %v2235 = vadd.f32 %v2221, %v2229
  %v2236 = vadd.f32 %v2222, %v2229
  %v2237 = vadd.f32 %v2223, %v2229
  %v2238 = vadd.f32 %v2224, %v2233
  %v2239 = vadd.f32 %v2225, %v2233
  %v2240 = vadd.f32 %v2226, %v2233
  %v2241 = vmax.f32 %v2235, 0.0
  %v2242 = vmax.f32 %v2236, 0.0
  %v2243 = vmax.f32 %v2237, 0.0
  %v2244 = vmax.f32 %v2238, 0.0
  %v2245 = vmax.f32 %v2239, 0.0
  %v2246 = vmax.f32 %v2240, 0.0
  %v2247 = vmul.f32 %v2241, %v390
  %v2248 = vmul.f32 %v2242, %v394
  %v2249 = vmul.f32 %v2243, %v398
  %v2250 = vmul.f32 %v2244, %v390
  %v2251 = vmul.f32 %v2245, %v394
  %v2252 = vmul.f32 %v2246, %v398
  %v2253 = vadd.f32 %v2247, %v2248
  %v2254 = vadd.f32 %v2253, %v2249
  %2255 = vadd.xlane.f32.xlu0 %v2254
  %v2256 = vpop.xlane.xlu0 %2255
  %v2257 = vadd.f32 %v2250, %v2251
  %v2258 = vadd.f32 %v2257, %v2252
  %2259 = vadd.xlane.f32.xlu0 %v2258
  %v2260 = vpop.xlane.xlu0 %2259
  %v2261 = vmul.f32 %v2256, 0.0052083335
  %v2262 = vmul.f32 %v2260, 0.0052083335
  %v2263 = vsel %vm433, %v2241, -1e+30
  %v2264 = vsel %vm434, %v2242, -1e+30
  %v2265 = vsel %vm435, %v2243, -1e+30
  %v2266 = vsel %vm433, %v2244, -1e+30
  %v2267 = vsel %vm434, %v2245, -1e+30
  %v2268 = vsel %vm435, %v2246, -1e+30
  %v2269 = vmax.f32 %v2263, %v2265
  %v2270 = vmax.f32 %v2269, %v2264
  %2271 = vmax.xlane.f32.xlu0 %v2270
  %v2272 = vpop.xlane.xlu0 %2271
  %v2273 = vmax.f32 %v2266, %v2268
  %v2274 = vmax.f32 %v2273, %v2267
  %2275 = vmax.xlane.f32.xlu0 %v2274
  %v2276 = vpop.xlane.xlu0 %2275
  %v2277 = vmul.f32 %v2241, %v453
  %v2278 = vmul.f32 %v2242, %v457
  %v2279 = vmul.f32 %v2243, %v461
  %v2280 = vmul.f32 %v2244, %v453
  %v2281 = vmul.f32 %v2245, %v457
  %v2282 = vmul.f32 %v2246, %v461
  %v2283 = vadd.f32 %v2277, %v2278
  %v2284 = vadd.f32 %v2283, %v2279
  %2285 = vadd.xlane.f32.xlu0 %v2284
  %v2286 = vpop.xlane.xlu0 %2285
  %v2287 = vadd.f32 %v2280, %v2281
  %v2288 = vadd.f32 %v2287, %v2282
  %2289 = vadd.xlane.f32.xlu0 %v2288
  %v2290 = vpop.xlane.xlu0 %2289
  %v2291 = vmul.f32 %v2286, 0.0052083335
  %v2292 = vmul.f32 %v2290, 0.0052083335
  %v2293 = vsel %vm490, %v2241, -1e+30
  %v2294 = vsel %vm491, %v2242, -1e+30
  %v2295 = vsel %vm492, %v2243, -1e+30
  %v2296 = vsel %vm490, %v2244, -1e+30
  %v2297 = vsel %vm491, %v2245, -1e+30
  %v2298 = vsel %vm492, %v2246, -1e+30
  %v2299 = vmax.f32 %v2293, %v2295
  %v2300 = vmax.f32 %v2299, %v2294
  %2301 = vmax.xlane.f32.xlu0 %v2300
  %v2302 = vpop.xlane.xlu0 %2301
  %v2303 = vmax.f32 %v2296, %v2298
  %v2304 = vmax.f32 %v2303, %v2297
  %2305 = vmax.xlane.f32.xlu0 %v2304
  %v2306 = vpop.xlane.xlu0 %2305
  %2311 = vrot.lane.b32.xlu0 %v2291, 1
  %v2312 = vpop.permute.xlu0 %2311
  %2313 = vrot.lane.b32.xlu0 %v2292, 1
  %v2314 = vpop.permute.xlu0 %2313
  %2315 = vrot.lane.b32.xlu0 %v2302, 1
  %v2316 = vpop.permute.xlu0 %2315
  %2317 = vrot.lane.b32.xlu0 %v2306, 1
  %v2318 = vpop.permute.xlu0 %2317
  %v2323 = vsel %vm125, %v2261, %v2312
  %v2324 = vsel %vm125, %v2262, %v2314
  %v2325 = vsel %vm125, %v2272, %v2316
  %v2326 = vsel %vm125, %v2276, %v2318
  %s2327 = scalar_lea.vmem %s4, 8
  %v2328 = vld [vmem:[%s2327] sm:$0xf]
  %v2329 = vld [vmem:[%s2327 + $0x4] sm:$0xf]
  %v2330 = vpack.c.bf16 %v2324, %v2323
  %v2331 = vpack.c.bf16 %v2326, %v2325
  %2332 = vset.pattern.permute.xlu0 7
  %2333 = vperm.xlu0 %2332, %v45
  %v2334 = vpop.permute.xlu0 %2333
  %2336 = vset.pattern.permute.xlu0 7
  %2337 = vperm.xlu0 %2336, %v46
  %v2338 = vpop.permute.xlu0 %2337
  %v2342 = vunpack.c.l.b16 %v2328
  %v2343 = vunpack.c.l.b16 %v2329
  %v2344 = vpack.c.b16 %v2343, %v2342
  %v2346 = vsel %vm544, %v2344, 0
  %2348 = vmatprep.subr.bf16.mxu0 0
  %2349 = vmatpush1.bf16.msra.mxu0 %v2330
  %2350 = vmatprep.subr.bf16.mxu0 0
  %2351 = vmatpush1.bf16.msra.mxu0 %v2331
  %2352 = vmatprep.subr.bf16.mxu0 0
  %2353 = vmatpush1.bf16.msra.mxu0 0
  %2354 = vmatprep.subr.bf16.mxu0 0
  %2355 = vmatpush1.bf16.msra.mxu0 0
  %2356 = vmatprep.subr.bf16.mxu0 0
  %2357 = vmatpush1.bf16.msra.mxu0 0
  %2358 = vmatprep.subr.bf16.mxu0 0
  %2359 = vmatpush1.bf16.msra.mxu0 0
  %2360 = vmatprep.subr.bf16.mxu0 0
  %2361 = vmatpush1.bf16.msra.mxu0 0
  %2362 = vmatprep.subr.bf16.mxu0 0
  %2363 = vmatpush1.bf16.msra.mxu0 0
  %2364 = vmatprep.subr.bf16.mxu0 0
  %2365 = vmatpush1.bf16.msra.mxu0 0
  %2366 = vmatprep.subr.bf16.mxu0 0
  %2367 = vmatpush1.bf16.msra.mxu0 0
  %2368 = vmatprep.subr.bf16.mxu0 0
  %2369 = vmatpush1.bf16.msra.mxu0 0
  %2370 = vmatprep.subr.bf16.mxu0 0
  %2371 = vmatpush1.bf16.msra.mxu0 0
  %2372 = vmatprep.subr.bf16.mxu0 0
  %2373 = vmatpush1.bf16.msra.mxu0 0
  %2374 = vmatprep.subr.bf16.mxu0 0
  %2375 = vmatpush1.bf16.msra.mxu0 0
  %2376 = vmatprep.subr.bf16.mxu0 0
  %2377 = vmatpush1.bf16.msra.mxu0 0
  %2378 = vmatprep.subr.bf16.mxu0 0
  %2379 = vmatpush1.bf16.msra.mxu0 0
  %2380 = vmatprep.mubr.bf16.mxu0 0
  %2381 = vmatmul.mubr.bf16.gmra.mrb[0].mxu0 %v2346
  %v2382 = vpop.f32.mrb[0].mxu0
  %v2383 = vadd.f32 %v2334, %v2382
  %v2384 = vpop.f32.mrb[0].mxu0
  %v2385 = vpop.f32.mrb[0].mxu0
  %v2386 = vadd.f32 %v2338, %v2385
  %v2387 = vpop.f32.mrb[0].mxu0
  %2388 = vdwg.mxu0
  %v2389 = vxor.u32 %v2383, 2147483648
  %v2390 = vxor.u32 %v2386, 2147483648
  %v2391 = vmul.f32 %v2389, 1.442695
  %v2392 = vpow.pop %v2391
  %v2393 = vmul.f32 %v2390, 1.442695
  %v2394 = vpow.pop %v2393
  %v2395 = vadd.f32 %v2392, 1.0
  %v2396 = vadd.f32 %v2394, 1.0
  %v2397 = vrcp.pop %v2395
  %v2398 = vmul.f32 1.0, %v2397
  %v2399 = vrcp.pop %v2396
  %v2400 = vmul.f32 1.0, %v2399
  %2402 = vset.pattern.permute.xlu0 0
  %2403 = vperm.xlu0 %2402, %v2398
  %v2404 = vpop.permute.xlu0 %2403
  %2407 = vset.pattern.permute.xlu0 0
  %2408 = vperm.xlu0 %2407, %v2400
  %v2409 = vpop.permute.xlu0 %2408
  %v2411 = vmul.f32 %v2404, %v390
  %v2412 = vmul.f32 %v2404, %v394
  %v2413 = vmul.f32 %v2404, %v398
  %v2414 = vmul.f32 %v2409, %v390
  %v2415 = vmul.f32 %v2409, %v394
  %v2416 = vmul.f32 %v2409, %v398
  %2417 = vset.pattern.permute.xlu0 1
  %2418 = vperm.xlu0 %2417, %v2398
  %v2419 = vpop.permute.xlu0 %2418
  %2421 = vset.pattern.permute.xlu0 1
  %2422 = vperm.xlu0 %2421, %v2400
  %v2423 = vpop.permute.xlu0 %2422
  %v2425 = vmul.f32 %v2419, %v453
  %v2426 = vmul.f32 %v2419, %v457
  %v2427 = vmul.f32 %v2419, %v461
  %v2428 = vmul.f32 %v2423, %v453
  %v2429 = vmul.f32 %v2423, %v457
  %v2430 = vmul.f32 %v2423, %v461
  %v2431 = vadd.f32 %v2411, %v2425
  %v2432 = vadd.f32 %v2412, %v2426
  %v2433 = vadd.f32 %v2413, %v2427
  %v2434 = vadd.f32 %v2414, %v2428
  %v2435 = vadd.f32 %v2415, %v2429
  %v2436 = vadd.f32 %v2416, %v2430
  %v2437 = vmul.f32 %v2241, %v2431
  %v2438 = vmul.f32 %v2242, %v2432
  %v2439 = vmul.f32 %v2243, %v2433
  %v2440 = vmul.f32 %v2244, %v2434
  %v2441 = vmul.f32 %v2245, %v2435
  %v2442 = vmul.f32 %v2246, %v2436
  %v2443 = vadd.f32 %v2437, %v2440
  %v2444 = vrot.slane %v2443, 4
  %v2445 = vadd.f32 %v2443, %v2444
  %v2446 = vrot.slane %v2445, 2
  %v2447 = vadd.f32 %v2445, %v2446
  %v2448 = vrot.slane %v2447, 1
  %v2449 = vadd.f32 %v2447, %v2448
  %v2450 = vadd.f32 %v2438, %v2441
  %v2451 = vrot.slane %v2450, 4
  %v2452 = vadd.f32 %v2450, %v2451
  %v2453 = vrot.slane %v2452, 2
  %v2454 = vadd.f32 %v2452, %v2453
  %v2455 = vrot.slane %v2454, 1
  %v2456 = vadd.f32 %v2454, %v2455
  %v2457 = vadd.f32 %v2439, %v2442
  %v2458 = vrot.slane %v2457, 4
  %v2459 = vadd.f32 %v2457, %v2458
  %v2460 = vrot.slane %v2459, 2
  %v2461 = vadd.f32 %v2459, %v2460
  %v2462 = vrot.slane %v2461, 1
  %v2463 = vadd.f32 %v2461, %v2462
  %v2464 = vmul.f32 %v2449, %v664
  %v2465 = vmul.f32 %v2456, %v664
  %v2466 = vmul.f32 %v2463, %v664
  %v2467 = vmax.f32 %v2437, %v2440
  %v2468 = vrot.slane %v2467, 4
  %v2469 = vmax.f32 %v2467, %v2468
  %v2470 = vrot.slane %v2469, 2
  %v2471 = vmax.f32 %v2469, %v2470
  %v2472 = vrot.slane %v2471, 1
  %v2473 = vmax.f32 %v2471, %v2472
  %v2474 = vmax.f32 %v2438, %v2441
  %v2475 = vrot.slane %v2474, 4
  %v2476 = vmax.f32 %v2474, %v2475
  %v2477 = vrot.slane %v2476, 2
  %v2478 = vmax.f32 %v2476, %v2477
  %v2479 = vrot.slane %v2478, 1
  %v2480 = vmax.f32 %v2478, %v2479
  %v2481 = vmax.f32 %v2439, %v2442
  %v2482 = vrot.slane %v2481, 4
  %v2483 = vmax.f32 %v2481, %v2482
  %v2484 = vrot.slane %v2483, 2
  %v2485 = vmax.f32 %v2483, %v2484
  %v2486 = vrot.slane %v2485, 1
  %v2487 = vmax.f32 %v2485, %v2486
  %2490 = vrot.lane.b32.xlu0 %v2473, 64
  %v2491 = vpop.permute.xlu0 %2490
  %2492 = vrot.lane.b32.xlu0 %v2480, 64
  %v2493 = vpop.permute.xlu0 %2492
  %v2494 = vsel %vm695, %v2491, %v2493
  %v2497 = vsel %vm695, %v2465, %v2491
  %2500 = vrot.lane.b32.xlu0 %v2465, 64
  %v2501 = vpop.permute.xlu0 %2500
  %2502 = vrot.lane.b32.xlu0 %v2466, 64
  %v2503 = vpop.permute.xlu0 %2502
  %v2504 = vsel %vm695, %v2501, %v2503
  %v2506 = vsel %vm695, %v2503, %v2480
  %v2509 = vrot.slane %v2504, 7
  %v2510 = vrot.slane %v2506, 7
  %v2511 = vrot.slane %v2487, 7
  %v2515 = vsel %vm717, %v2464, %v2509
  %v2516 = vsel %vm717, %v2497, %v2510
  %v2517 = vsel %vm717, %v2494, %v2511
  %s2518 = scalar_lea.vmem %s5, 384
  %v2519 = vld [vmem:[%s2518] sm:$0xff]
  %v2520 = vld [vmem:[%s2518 + $0x8] sm:$0xff]
  %v2521 = vld [vmem:[%s2518 + $0x10] sm:$0xff]
  %v2522 = vld [vmem:[%s2518 + $0x18] sm:$0xff]
  %v2523 = vld [vmem:[%s2518 + $0x20] sm:$0xff]
  %v2524 = vld [vmem:[%s2518 + $0x28] sm:$0xff]
  %v2525 = vld [vmem:[%s2518 + $0x30] sm:$0xff]
  %v2526 = vld [vmem:[%s2518 + $0x38] sm:$0xff]
  %v2527 = vld [vmem:[%s2518 + $0x40] sm:$0xff]
  %v2528 = vld [vmem:[%s2518 + $0x48] sm:$0xff]
  %v2529 = vld [vmem:[%s2518 + $0x50] sm:$0xff]
  %v2530 = vld [vmem:[%s2518 + $0x58] sm:$0xff]
  %v2531 = vld [vmem:[%s2518 + $0x60] sm:$0xff]
  %v2532 = vld [vmem:[%s2518 + $0x68] sm:$0xff]
  %v2533 = vld [vmem:[%s2518 + $0x70] sm:$0xff]
  %v2534 = vld [vmem:[%s2518 + $0x78] sm:$0xff]
  %v2535 = vld [vmem:[%s2518 + $0x80] sm:$0xff]
  %v2536 = vld [vmem:[%s2518 + $0x88] sm:$0xff]
  %v2537 = vld [vmem:[%s2518 + $0x90] sm:$0xff]
  %v2538 = vld [vmem:[%s2518 + $0x98] sm:$0xff]
  %v2539 = vld [vmem:[%s2518 + $0xa0] sm:$0xff]
  %v2540 = vld [vmem:[%s2518 + $0xa8] sm:$0xff]
  %v2541 = vld [vmem:[%s2518 + $0xb0] sm:$0xff]
  %v2542 = vld [vmem:[%s2518 + $0xb8] sm:$0xff]
  %v2543 = vld [vmem:[%s2518 + $0xc0] sm:$0xff]
  %v2544 = vld [vmem:[%s2518 + $0xc8] sm:$0xff]
  %v2545 = vld [vmem:[%s2518 + $0xd0] sm:$0xff]
  %v2546 = vld [vmem:[%s2518 + $0xd8] sm:$0xff]
  %v2547 = vld [vmem:[%s2518 + $0xe0] sm:$0xff]
  %v2548 = vld [vmem:[%s2518 + $0xe8] sm:$0xff]
  %v2549 = vld [vmem:[%s2518 + $0xf0] sm:$0xff]
  %v2550 = vld [vmem:[%s2518 + $0xf8] sm:$0xff]
  %v2551 = vld [vmem:[%s2518 + $0x100] sm:$0xff]
  %v2552 = vld [vmem:[%s2518 + $0x108] sm:$0xff]
  %v2553 = vld [vmem:[%s2518 + $0x110] sm:$0xff]
  %v2554 = vld [vmem:[%s2518 + $0x118] sm:$0xff]
  %v2555 = vld [vmem:[%s2518 + $0x120] sm:$0xff]
  %v2556 = vld [vmem:[%s2518 + $0x128] sm:$0xff]
  %v2557 = vld [vmem:[%s2518 + $0x130] sm:$0xff]
  %v2558 = vld [vmem:[%s2518 + $0x138] sm:$0xff]
  %v2559 = vld [vmem:[%s2518 + $0x140] sm:$0xff]
  %v2560 = vld [vmem:[%s2518 + $0x148] sm:$0xff]
  %v2561 = vld [vmem:[%s2518 + $0x150] sm:$0xff]
  %v2562 = vld [vmem:[%s2518 + $0x158] sm:$0xff]
  %v2563 = vld [vmem:[%s2518 + $0x160] sm:$0xff]
  %v2564 = vld [vmem:[%s2518 + $0x168] sm:$0xff]
  %v2565 = vld [vmem:[%s2518 + $0x170] sm:$0xff]
  %v2566 = vld [vmem:[%s2518 + $0x178] sm:$0xff]
  %v2567 = vpack.c.bf16 %v2515, %v2515
  %v2568 = vpack.c.bf16 %v2516, %v2516
  %v2569 = vpack.c.bf16 %v2517, %v2517
  %v2618 = vunpack.c.l.b16 %v2519
  %v2619 = vunpack.c.h.b16 %v2519
  %v2620 = vunpack.c.l.b16 %v2520
  %v2621 = vunpack.c.h.b16 %v2520
  %v2622 = vunpack.c.l.b16 %v2521
  %v2623 = vunpack.c.h.b16 %v2521
  %v2624 = vunpack.c.l.b16 %v2522
  %v2625 = vunpack.c.h.b16 %v2522
  %v2626 = vunpack.c.l.b16 %v2523
  %v2627 = vunpack.c.h.b16 %v2523
  %v2628 = vunpack.c.l.b16 %v2524
  %v2629 = vunpack.c.h.b16 %v2524
  %v2630 = vunpack.c.l.b16 %v2525
  %v2631 = vunpack.c.h.b16 %v2525
  %v2632 = vunpack.c.l.b16 %v2526
  %v2633 = vunpack.c.h.b16 %v2526
  %v2634 = vunpack.c.l.b16 %v2527
  %v2635 = vunpack.c.h.b16 %v2527
  %v2636 = vunpack.c.l.b16 %v2528
  %v2637 = vunpack.c.h.b16 %v2528
  %v2638 = vunpack.c.l.b16 %v2529
  %v2639 = vunpack.c.h.b16 %v2529
  %v2640 = vunpack.c.l.b16 %v2530
  %v2641 = vunpack.c.h.b16 %v2530
  %v2642 = vunpack.c.l.b16 %v2531
  %v2643 = vunpack.c.h.b16 %v2531
  %v2644 = vunpack.c.l.b16 %v2532
  %v2645 = vunpack.c.h.b16 %v2532
  %v2646 = vunpack.c.l.b16 %v2533
  %v2647 = vunpack.c.h.b16 %v2533
  %v2648 = vunpack.c.l.b16 %v2534
  %v2649 = vunpack.c.h.b16 %v2534
  %v2650 = vunpack.c.l.b16 %v2535
  %v2651 = vunpack.c.h.b16 %v2535
  %v2652 = vunpack.c.l.b16 %v2536
  %v2653 = vunpack.c.h.b16 %v2536
  %v2654 = vunpack.c.l.b16 %v2537
  %v2655 = vunpack.c.h.b16 %v2537
  %v2656 = vunpack.c.l.b16 %v2538
  %v2657 = vunpack.c.h.b16 %v2538
  %v2658 = vunpack.c.l.b16 %v2539
  %v2659 = vunpack.c.h.b16 %v2539
  %v2660 = vunpack.c.l.b16 %v2540
  %v2661 = vunpack.c.h.b16 %v2540
  %v2662 = vunpack.c.l.b16 %v2541
  %v2663 = vunpack.c.h.b16 %v2541
  %v2664 = vunpack.c.l.b16 %v2542
  %v2665 = vunpack.c.h.b16 %v2542
  %v2666 = vunpack.c.l.b16 %v2543
  %v2667 = vunpack.c.h.b16 %v2543
  %v2668 = vunpack.c.l.b16 %v2544
  %v2669 = vunpack.c.h.b16 %v2544
  %v2670 = vunpack.c.l.b16 %v2545
  %v2671 = vunpack.c.h.b16 %v2545
  %v2672 = vunpack.c.l.b16 %v2546
  %v2673 = vunpack.c.h.b16 %v2546
  %v2674 = vunpack.c.l.b16 %v2547
  %v2675 = vunpack.c.h.b16 %v2547
  %v2676 = vunpack.c.l.b16 %v2548
  %v2677 = vunpack.c.h.b16 %v2548
  %v2678 = vunpack.c.l.b16 %v2549
  %v2679 = vunpack.c.h.b16 %v2549
  %v2680 = vunpack.c.l.b16 %v2550
  %v2681 = vunpack.c.h.b16 %v2550
  %v2682 = vunpack.c.l.b16 %v2551
  %v2683 = vunpack.c.h.b16 %v2551
  %v2684 = vunpack.c.l.b16 %v2552
  %v2685 = vunpack.c.h.b16 %v2552
  %v2686 = vunpack.c.l.b16 %v2553
  %v2687 = vunpack.c.h.b16 %v2553
  %v2688 = vunpack.c.l.b16 %v2554
  %v2689 = vunpack.c.h.b16 %v2554
  %v2690 = vunpack.c.l.b16 %v2555
  %v2691 = vunpack.c.h.b16 %v2555
  %v2692 = vunpack.c.l.b16 %v2556
  %v2693 = vunpack.c.h.b16 %v2556
  %v2694 = vunpack.c.l.b16 %v2557
  %v2695 = vunpack.c.h.b16 %v2557
  %v2696 = vunpack.c.l.b16 %v2558
  %v2697 = vunpack.c.h.b16 %v2558
  %v2698 = vunpack.c.l.b16 %v2559
  %v2699 = vunpack.c.h.b16 %v2559
  %v2700 = vunpack.c.l.b16 %v2560
  %v2701 = vunpack.c.h.b16 %v2560
  %v2702 = vunpack.c.l.b16 %v2561
  %v2703 = vunpack.c.h.b16 %v2561
  %v2704 = vunpack.c.l.b16 %v2562
  %v2705 = vunpack.c.h.b16 %v2562
  %v2706 = vunpack.c.l.b16 %v2563
  %v2707 = vunpack.c.h.b16 %v2563
  %v2708 = vunpack.c.l.b16 %v2564
  %v2709 = vunpack.c.h.b16 %v2564
  %v2710 = vunpack.c.l.b16 %v2565
  %v2711 = vunpack.c.h.b16 %v2565
  %v2712 = vunpack.c.l.b16 %v2566
  %v2713 = vunpack.c.h.b16 %v2566
  %v2714 = vpack.c.b16 %v2620, %v2618
  %v2715 = vpack.c.b16 %v2621, %v2619
  %v2716 = vpack.c.b16 %v2624, %v2622
  %v2717 = vpack.c.b16 %v2625, %v2623
  %v2718 = vpack.c.b16 %v2628, %v2626
  %v2719 = vpack.c.b16 %v2629, %v2627
  %v2720 = vpack.c.b16 %v2632, %v2630
  %v2721 = vpack.c.b16 %v2633, %v2631
  %v2722 = vpack.c.b16 %v2636, %v2634
  %v2723 = vpack.c.b16 %v2637, %v2635
  %v2724 = vpack.c.b16 %v2640, %v2638
  %v2725 = vpack.c.b16 %v2641, %v2639
  %v2726 = vpack.c.b16 %v2644, %v2642
  %v2727 = vpack.c.b16 %v2645, %v2643
  %v2728 = vpack.c.b16 %v2648, %v2646
  %v2729 = vpack.c.b16 %v2649, %v2647
  %v2730 = vpack.c.b16 %v2652, %v2650
  %v2731 = vpack.c.b16 %v2653, %v2651
  %v2732 = vpack.c.b16 %v2656, %v2654
  %v2733 = vpack.c.b16 %v2657, %v2655
  %v2734 = vpack.c.b16 %v2660, %v2658
  %v2735 = vpack.c.b16 %v2661, %v2659
  %v2736 = vpack.c.b16 %v2664, %v2662
  %v2737 = vpack.c.b16 %v2665, %v2663
  %v2738 = vpack.c.b16 %v2668, %v2666
  %v2739 = vpack.c.b16 %v2669, %v2667
  %v2740 = vpack.c.b16 %v2672, %v2670
  %v2741 = vpack.c.b16 %v2673, %v2671
  %v2742 = vpack.c.b16 %v2676, %v2674
  %v2743 = vpack.c.b16 %v2677, %v2675
  %v2744 = vpack.c.b16 %v2680, %v2678
  %v2745 = vpack.c.b16 %v2681, %v2679
  %v2746 = vpack.c.b16 %v2684, %v2682
  %v2747 = vpack.c.b16 %v2685, %v2683
  %v2748 = vpack.c.b16 %v2688, %v2686
  %v2749 = vpack.c.b16 %v2689, %v2687
  %v2750 = vpack.c.b16 %v2692, %v2690
  %v2751 = vpack.c.b16 %v2693, %v2691
  %v2752 = vpack.c.b16 %v2696, %v2694
  %v2753 = vpack.c.b16 %v2697, %v2695
  %v2754 = vpack.c.b16 %v2700, %v2698
  %v2755 = vpack.c.b16 %v2701, %v2699
  %v2756 = vpack.c.b16 %v2704, %v2702
  %v2757 = vpack.c.b16 %v2705, %v2703
  %v2758 = vpack.c.b16 %v2708, %v2706
  %v2759 = vpack.c.b16 %v2709, %v2707
  %v2760 = vpack.c.b16 %v2712, %v2710
  %v2761 = vpack.c.b16 %v2713, %v2711
  %2810 = vmatprep.subr.bf16.mxu0 %v2715
  %2811 = vmatpush1.bf16.msra.mxu0 %v2714
  %2812 = vmatprep.subr.bf16.mxu0 %v2717
  %2813 = vmatpush1.bf16.msra.mxu0 %v2716
  %2814 = vmatprep.subr.bf16.mxu0 %v2719
  %2815 = vmatpush1.bf16.msra.mxu0 %v2718
  %2816 = vmatprep.subr.bf16.mxu0 %v2721
  %2817 = vmatpush1.bf16.msra.mxu0 %v2720
  %2818 = vmatprep.subr.bf16.mxu0 %v2723
  %2819 = vmatpush1.bf16.msra.mxu0 %v2722
  %2820 = vmatprep.subr.bf16.mxu0 %v2725
  %2821 = vmatpush1.bf16.msra.mxu0 %v2724
  %2822 = vmatprep.subr.bf16.mxu0 %v2727
  %2823 = vmatpush1.bf16.msra.mxu0 %v2726
  %2824 = vmatprep.subr.bf16.mxu0 %v2729
  %2825 = vmatpush1.bf16.msra.mxu0 %v2728
  %2826 = vmatprep.subr.bf16.mxu0 %v2731
  %2827 = vmatpush1.bf16.msra.mxu0 %v2730
  %2828 = vmatprep.subr.bf16.mxu0 %v2733
  %2829 = vmatpush1.bf16.msra.mxu0 %v2732
  %2830 = vmatprep.subr.bf16.mxu0 %v2735
  %2831 = vmatpush1.bf16.msra.mxu0 %v2734
  %2832 = vmatprep.subr.bf16.mxu0 %v2737
  %2833 = vmatpush1.bf16.msra.mxu0 %v2736
  %2834 = vmatprep.subr.bf16.mxu0 %v2739
  %2835 = vmatpush1.bf16.msra.mxu0 %v2738
  %2836 = vmatprep.subr.bf16.mxu0 %v2741
  %2837 = vmatpush1.bf16.msra.mxu0 %v2740
  %2838 = vmatprep.subr.bf16.mxu0 %v2743
  %2839 = vmatpush1.bf16.msra.mxu0 %v2742
  %2840 = vmatprep.subr.bf16.mxu0 %v2745
  %2841 = vmatpush1.bf16.msra.mxu0 %v2744
  %2842 = vmatprep.mubr.bf16.mxu0 %v2568
  %2843 = vmatmul.mubr.bf16.gmra.mrb[0].mxu0 %v2567
  %v2844 = vpop.f32.mrb[0].mxu0
  %v2845 = vadd.f32 0.0, %v2844
  %v2846 = vpop.f32.mrb[0].mxu0
  %v2847 = vadd.f32 0.0, %v2846
  %v2848 = vpop.f32.mrb[0].mxu0
  %v2849 = vpop.f32.mrb[0].mxu0
  %2850 = vdwg.mxu0
  %2851 = vmatprep.subr.bf16.mxu0 %v2747
  %2852 = vmatpush1.bf16.msra.mxu0 %v2746
  %2853 = vmatprep.subr.bf16.mxu0 %v2749
  %2854 = vmatpush1.bf16.msra.mxu0 %v2748
  %2855 = vmatprep.subr.bf16.mxu0 %v2751
  %2856 = vmatpush1.bf16.msra.mxu0 %v2750
  %2857 = vmatprep.subr.bf16.mxu0 %v2753
  %2858 = vmatpush1.bf16.msra.mxu0 %v2752
  %2859 = vmatprep.subr.bf16.mxu0 %v2755
  %2860 = vmatpush1.bf16.msra.mxu0 %v2754
  %2861 = vmatprep.subr.bf16.mxu0 %v2757
  %2862 = vmatpush1.bf16.msra.mxu0 %v2756
  %2863 = vmatprep.subr.bf16.mxu0 %v2759
  %2864 = vmatpush1.bf16.msra.mxu0 %v2758
  %2865 = vmatprep.subr.bf16.mxu0 %v2761
  %2866 = vmatpush1.bf16.msra.mxu0 %v2760
  %2867 = vmatprep.subr.bf16.mxu0 0
  %2868 = vmatpush1.bf16.msra.mxu0 0
  %2869 = vmatprep.subr.bf16.mxu0 0
  %2870 = vmatpush1.bf16.msra.mxu0 0
  %2871 = vmatprep.subr.bf16.mxu0 0
  %2872 = vmatpush1.bf16.msra.mxu0 0
  %2873 = vmatprep.subr.bf16.mxu0 0
  %2874 = vmatpush1.bf16.msra.mxu0 0
  %2875 = vmatprep.subr.bf16.mxu0 0
  %2876 = vmatpush1.bf16.msra.mxu0 0
  %2877 = vmatprep.subr.bf16.mxu0 0
  %2878 = vmatpush1.bf16.msra.mxu0 0
  %2879 = vmatprep.subr.bf16.mxu0 0
  %2880 = vmatpush1.bf16.msra.mxu0 0
  %2881 = vmatprep.subr.bf16.mxu0 0
  %2882 = vmatpush1.bf16.msra.mxu0 0
  %2883 = vmatprep.mubr.bf16.mxu0 0
  %2884 = vmatmul.mubr.bf16.gmra.mrb[0].mxu0 %v2569
  %v2885 = vpop.f32.mrb[0].mxu0
  %v2886 = vadd.f32 %v2845, %v2885
  %v2887 = vpop.f32.mrb[0].mxu0
  %v2888 = vadd.f32 %v2847, %v2887
  %v2889 = vpop.f32.mrb[0].mxu0
  %v2890 = vpop.f32.mrb[0].mxu0
  %2891 = vdwg.mxu0
  %v2894 = vrot.slane %v2886, 1
  %v2895 = vrot.slane %v2888, 1
  %2896 = vrot.lane.b32.xlu0 %v2894, 64
  %v2897 = vpop.permute.xlu0 %2896
  %2898 = vrot.lane.b32.xlu0 %v2895, 64
  %v2899 = vpop.permute.xlu0 %2898
  %v2900 = vsel %vm695, %v2897, %v2899
  %v2903 = vsel %vm695, %v2888, %v2897
  %v2904 = vadd.f32 %v2886, %v42
  %v2905 = vadd.f32 %v2903, %v43
  %v2906 = vadd.f32 %v2900, %v44
  %v2907 = vxor.u32 %v2904, 2147483648
  %v2908 = vxor.u32 %v2905, 2147483648
  %v2909 = vxor.u32 %v2906, 2147483648
  %v2910 = vmul.f32 %v2907, 1.442695
  %v2911 = vpow.pop %v2910
  %v2912 = vmul.f32 %v2908, 1.442695
  %v2913 = vpow.pop %v2912
  %v2914 = vmul.f32 %v2909, 1.442695
  %v2915 = vpow.pop %v2914
  %v2916 = vadd.f32 %v2911, 1.0
  %v2917 = vadd.f32 %v2913, 1.0
  %v2918 = vadd.f32 %v2915, 1.0
  %v2919 = vrcp.pop %v2916
  %v2920 = vmul.f32 1.0, %v2919
  %v2921 = vrcp.pop %v2917
  %v2922 = vmul.f32 1.0, %v2921
  %v2923 = vrcp.pop %v2918
  %v2924 = vmul.f32 1.0, %v2923
  %v2925 = vlaneseq
  %v2926 = vshrl.u32 %v2925, 7
  %v2927 = vsub.s32 0, %v2926
  %v2928 = vrot.slane %v2920, %v2927
  %v2929 = vlaneseq
  %v2930 = vshrl.u32 %v2929, 7
  %v2931 = vsub.s32 0, %v2930
  %v2932 = vrot.slane %v2922, %v2931
  %v2933 = vlaneseq
  %v2934 = vshrl.u32 %v2933, 7
  %v2935 = vsub.s32 0, %v2934
  %v2936 = vrot.slane %v2924, %v2935
  %v2937 = vmul.f32 %v2437, %v2928
  %v2938 = vmul.f32 %v2438, %v2932
  %v2939 = vmul.f32 %v2439, %v2936
  %v2940 = vmul.f32 %v2440, %v2928
  %v2941 = vmul.f32 %v2441, %v2932
  %v2942 = vmul.f32 %v2442, %v2936
  %v2943 = vadd.f32 %v2937, %v1989
  %v2944 = vadd.f32 %v2938, %v1990
  %v2945 = vadd.f32 %v2939, %v1991
  %v2946 = vadd.f32 %v2940, %v1992
  %v2947 = vadd.f32 %v2941, %v1993
  %v2948 = vadd.f32 %v2942, %v1994
  %v2949 = vpack.c.bf16 %v2946, %v2943
  %v2950 = vpack.c.bf16 %v2947, %v2944
  %v2951 = vpack.c.bf16 %v2948, %v2945
  %v3000 = vunpack.c.l.b16 %v47
  %v3001 = vunpack.c.l.b16 %v48
  %v3002 = vunpack.c.l.b16 %v49
  %v3003 = vunpack.c.l.b16 %v50
  %v3004 = vunpack.c.l.b16 %v51
  %v3005 = vunpack.c.l.b16 %v52
  %v3006 = vunpack.c.l.b16 %v53
  %v3007 = vunpack.c.l.b16 %v54
  %v3008 = vunpack.c.l.b16 %v55
  %v3009 = vunpack.c.l.b16 %v56
  %v3010 = vunpack.c.l.b16 %v57
  %v3011 = vunpack.c.l.b16 %v58
  %v3012 = vunpack.c.l.b16 %v59
  %v3013 = vunpack.c.l.b16 %v60
  %v3014 = vunpack.c.l.b16 %v61
  %v3015 = vunpack.c.l.b16 %v62
  %v3016 = vunpack.c.l.b16 %v63
  %v3017 = vunpack.c.l.b16 %v64
  %v3018 = vunpack.c.l.b16 %v65
  %v3019 = vunpack.c.l.b16 %v66
  %v3020 = vunpack.c.l.b16 %v67
  %v3021 = vunpack.c.l.b16 %v68
  %v3022 = vunpack.c.l.b16 %v69
  %v3023 = vunpack.c.l.b16 %v70
  %v3024 = vunpack.c.l.b16 %v71
  %v3025 = vunpack.c.l.b16 %v72
  %v3026 = vunpack.c.l.b16 %v73
  %v3027 = vunpack.c.l.b16 %v74
  %v3028 = vunpack.c.l.b16 %v75
  %v3029 = vunpack.c.l.b16 %v76
  %v3030 = vunpack.c.l.b16 %v77
  %v3031 = vunpack.c.l.b16 %v78
  %v3032 = vunpack.c.l.b16 %v79
  %v3033 = vunpack.c.l.b16 %v80
  %v3034 = vunpack.c.l.b16 %v81
  %v3035 = vunpack.c.l.b16 %v82
  %v3036 = vunpack.c.l.b16 %v83
  %v3037 = vunpack.c.l.b16 %v84
  %v3038 = vunpack.c.l.b16 %v85
  %v3039 = vunpack.c.l.b16 %v86
  %v3040 = vunpack.c.l.b16 %v87
  %v3041 = vunpack.c.l.b16 %v88
  %v3042 = vunpack.c.l.b16 %v89
  %v3043 = vunpack.c.l.b16 %v90
  %v3044 = vunpack.c.l.b16 %v91
  %v3045 = vunpack.c.l.b16 %v92
  %v3046 = vunpack.c.l.b16 %v93
  %v3047 = vunpack.c.l.b16 %v94
  %v3048 = vpack.c.b16 %v3001, %v3000
  %v3049 = vpack.c.b16 %v3003, %v3002
  %v3050 = vpack.c.b16 %v3005, %v3004
  %v3051 = vpack.c.b16 %v3007, %v3006
  %v3052 = vpack.c.b16 %v3009, %v3008
  %v3053 = vpack.c.b16 %v3011, %v3010
  %v3054 = vpack.c.b16 %v3013, %v3012
  %v3055 = vpack.c.b16 %v3015, %v3014
  %v3056 = vpack.c.b16 %v3017, %v3016
  %v3057 = vpack.c.b16 %v3019, %v3018
  %v3058 = vpack.c.b16 %v3021, %v3020
  %v3059 = vpack.c.b16 %v3023, %v3022
  %v3060 = vpack.c.b16 %v3025, %v3024
  %v3061 = vpack.c.b16 %v3027, %v3026
  %v3062 = vpack.c.b16 %v3029, %v3028
  %v3063 = vpack.c.b16 %v3031, %v3030
  %v3064 = vpack.c.b16 %v3033, %v3032
  %v3065 = vpack.c.b16 %v3035, %v3034
  %v3066 = vpack.c.b16 %v3037, %v3036
  %v3067 = vpack.c.b16 %v3039, %v3038
  %v3068 = vpack.c.b16 %v3041, %v3040
  %v3069 = vpack.c.b16 %v3043, %v3042
  %v3070 = vpack.c.b16 %v3045, %v3044
  %v3071 = vpack.c.b16 %v3047, %v3046
  %3096 = vmatprep.subr.bf16.mxu0 0
  %3097 = vmatpush1.bf16.msra.mxu0 %v3048
  %3098 = vmatprep.subr.bf16.mxu0 0
  %3099 = vmatpush1.bf16.msra.mxu0 %v3049
  %3100 = vmatprep.subr.bf16.mxu0 0
  %3101 = vmatpush1.bf16.msra.mxu0 %v3050
  %3102 = vmatprep.subr.bf16.mxu0 0
  %3103 = vmatpush1.bf16.msra.mxu0 %v3051
  %3104 = vmatprep.subr.bf16.mxu0 0
  %3105 = vmatpush1.bf16.msra.mxu0 %v3052
  %3106 = vmatprep.subr.bf16.mxu0 0
  %3107 = vmatpush1.bf16.msra.mxu0 %v3053
  %3108 = vmatprep.subr.bf16.mxu0 0
  %3109 = vmatpush1.bf16.msra.mxu0 %v3054
  %3110 = vmatprep.subr.bf16.mxu0 0
  %3111 = vmatpush1.bf16.msra.mxu0 %v3055
  %3112 = vmatprep.subr.bf16.mxu0 0
  %3113 = vmatpush1.bf16.msra.mxu0 %v3056
  %3114 = vmatprep.subr.bf16.mxu0 0
  %3115 = vmatpush1.bf16.msra.mxu0 %v3057
  %3116 = vmatprep.subr.bf16.mxu0 0
  %3117 = vmatpush1.bf16.msra.mxu0 %v3058
  %3118 = vmatprep.subr.bf16.mxu0 0
  %3119 = vmatpush1.bf16.msra.mxu0 %v3059
  %3120 = vmatprep.subr.bf16.mxu0 0
  %3121 = vmatpush1.bf16.msra.mxu0 %v3060
  %3122 = vmatprep.subr.bf16.mxu0 0
  %3123 = vmatpush1.bf16.msra.mxu0 %v3061
  %3124 = vmatprep.subr.bf16.mxu0 0
  %3125 = vmatpush1.bf16.msra.mxu0 %v3062
  %3126 = vmatprep.subr.bf16.mxu0 0
  %3127 = vmatpush1.bf16.msra.mxu0 %v3063
  %3128 = vmatprep.mubr.bf16.mxu0 %v2950
  %3129 = vmatmul.mubr.bf16.gmra.mrb[0].mxu0 %v2949
  %v3130 = vpop.f32.mrb[0].mxu0
  %v3131 = vadd.f32 0.0, %v3130
  %v3132 = vpop.f32.mrb[0].mxu0
  %v3133 = vpop.f32.mrb[0].mxu0
  %v3134 = vadd.f32 0.0, %v3133
  %v3135 = vpop.f32.mrb[0].mxu0
  %3136 = vdwg.mxu0
  %3137 = vmatprep.subr.bf16.mxu0 0
  %3138 = vmatpush1.bf16.msra.mxu0 %v3064
  %3139 = vmatprep.subr.bf16.mxu0 0
  %3140 = vmatpush1.bf16.msra.mxu0 %v3065
  %3141 = vmatprep.subr.bf16.mxu0 0
  %3142 = vmatpush1.bf16.msra.mxu0 %v3066
  %3143 = vmatprep.subr.bf16.mxu0 0
  %3144 = vmatpush1.bf16.msra.mxu0 %v3067
  %3145 = vmatprep.subr.bf16.mxu0 0
  %3146 = vmatpush1.bf16.msra.mxu0 %v3068
  %3147 = vmatprep.subr.bf16.mxu0 0
  %3148 = vmatpush1.bf16.msra.mxu0 %v3069
  %3149 = vmatprep.subr.bf16.mxu0 0
  %3150 = vmatpush1.bf16.msra.mxu0 %v3070
  %3151 = vmatprep.subr.bf16.mxu0 0
  %3152 = vmatpush1.bf16.msra.mxu0 %v3071
  %3153 = vmatprep.subr.bf16.mxu0 0
  %3154 = vmatpush1.bf16.msra.mxu0 0
  %3155 = vmatprep.subr.bf16.mxu0 0
  %3156 = vmatpush1.bf16.msra.mxu0 0
  %3157 = vmatprep.subr.bf16.mxu0 0
  %3158 = vmatpush1.bf16.msra.mxu0 0
  %3159 = vmatprep.subr.bf16.mxu0 0
  %3160 = vmatpush1.bf16.msra.mxu0 0
  %3161 = vmatprep.subr.bf16.mxu0 0
  %3162 = vmatpush1.bf16.msra.mxu0 0
  %3163 = vmatprep.subr.bf16.mxu0 0
  %3164 = vmatpush1.bf16.msra.mxu0 0
  %3165 = vmatprep.subr.bf16.mxu0 0
  %3166 = vmatpush1.bf16.msra.mxu0 0
  %3167 = vmatprep.subr.bf16.mxu0 0
  %3168 = vmatpush1.bf16.msra.mxu0 0
  %3169 = vmatprep.mubr.bf16.mxu0 0
  %3170 = vmatmul.mubr.bf16.gmra.mrb[0].mxu0 %v2951
  %v3171 = vpop.f32.mrb[0].mxu0
  %v3172 = vadd.f32 %v3131, %v3171
  %v3173 = vpop.f32.mrb[0].mxu0
  %v3174 = vpop.f32.mrb[0].mxu0
  %v3175 = vadd.f32 %v3134, %v3174
  %v3176 = vpop.f32.mrb[0].mxu0
  %3177 = vdwg.mxu0
  %v3178 = vpack.c.bf16 %v3175, %v3172
  %v3185 = vunpack.c.l.b16 %v95
  %v3186 = vunpack.c.h.b16 %v95
  %v3187 = vunpack.c.l.b16 %v96
  %v3188 = vunpack.c.l.b16 %v97
  %v3189 = vunpack.c.h.b16 %v97
  %v3190 = vunpack.c.l.b16 %v98
  %v3191 = vunpack.c.l.b16 %v99
  %v3192 = vunpack.c.h.b16 %v99
  %v3193 = vunpack.c.l.b16 %v100
  %v3194 = vpack.c.b16 %v3188, %v3185
  %v3195 = vpack.c.b16 %v3189, %v3186
  %v3196 = vpack.c.b16 %v3190, %v3187
  %v3197 = vpack.c.b16 %v3191, %v3191
  %v3198 = vpack.c.b16 %v3192, %v3192
  %v3199 = vpack.c.b16 %v3193, %v3193
  %vm3203 = vcmask 195584
  %v3205 = vsel %vm3203, %v3178, 0
  %vm3207 = vcmask 1043456
  %v3209 = vsel %vm3207, %v3197, 0
  %v3212 = vsel %vm3207, %v3198, 0
  %v3215 = vsel %vm3207, %v3199, 0
  %3217 = vmatprep.subr.bf16.mxu0 %v3195
  %3218 = vmatpush1.bf16.msra.mxu0 %v3194
  %3219 = vmatprep.subr.bf16.mxu0 %v3212
  %3220 = vmatpush1.bf16.msra.mxu0 %v3209
  %3221 = vmatprep.subr.bf16.mxu0 0
  %3222 = vmatpush1.bf16.msra.mxu0 0
  %3223 = vmatprep.subr.bf16.mxu0 0
  %3224 = vmatpush1.bf16.msra.mxu0 0
  %3225 = vmatprep.subr.bf16.mxu0 0
  %3226 = vmatpush1.bf16.msra.mxu0 0
  %3227 = vmatprep.subr.bf16.mxu0 0
  %3228 = vmatpush1.bf16.msra.mxu0 0
  %3229 = vmatprep.subr.bf16.mxu0 0
  %3230 = vmatpush1.bf16.msra.mxu0 0
  %3231 = vmatprep.subr.bf16.mxu0 0
  %3232 = vmatpush1.bf16.msra.mxu0 0
  %3233 = vmatprep.subr.bf16.mxu0 0
  %3234 = vmatpush1.bf16.msra.mxu0 0
  %3235 = vmatprep.subr.bf16.mxu0 0
  %3236 = vmatpush1.bf16.msra.mxu0 0
  %3237 = vmatprep.subr.bf16.mxu0 0
  %3238 = vmatpush1.bf16.msra.mxu0 0
  %3239 = vmatprep.subr.bf16.mxu0 0
  %3240 = vmatpush1.bf16.msra.mxu0 0
  %3241 = vmatprep.subr.bf16.mxu0 0
  %3242 = vmatpush1.bf16.msra.mxu0 0
  %3243 = vmatprep.subr.bf16.mxu0 0
  %3244 = vmatpush1.bf16.msra.mxu0 0
  %3245 = vmatprep.subr.bf16.mxu0 0
  %3246 = vmatpush1.bf16.msra.mxu0 0
  %3247 = vmatprep.subr.bf16.mxu0 0
  %3248 = vmatpush1.bf16.msra.mxu0 0
  %3249 = vmatprep.mubr.bf16.mxu0 0
  %3250 = vmatmul.mubr.bf16.gmra.mrb[0].mxu0 %v3205
  %v3251 = vpop.f32.mrb[0].mxu0
  %v3252 = vadd.f32 0.0, %v3251
  %v3253 = vpop.f32.mrb[0].mxu0
  %v3254 = vadd.f32 0.0, %v3253
  %v3255 = vpop.f32.mrb[0].mxu0
  %v3256 = vadd.f32 0.0, %v3255
  %v3257 = vpop.f32.mrb[0].mxu0
  %v3258 = vadd.f32 0.0, %v3257
  %3259 = vdwg.mxu0
  %3260 = vmatprep.subr.bf16.mxu0 0
  %3261 = vmatpush1.bf16.msra.mxu0 %v3196
  %3262 = vmatprep.subr.bf16.mxu0 0
  %3263 = vmatpush1.bf16.msra.mxu0 %v3215
  %3264 = vmatprep.subr.bf16.mxu0 0
  %3265 = vmatpush1.bf16.msra.mxu0 0
  %3266 = vmatprep.subr.bf16.mxu0 0
  %3267 = vmatpush1.bf16.msra.mxu0 0
  %3268 = vmatprep.subr.bf16.mxu0 0
  %3269 = vmatpush1.bf16.msra.mxu0 0
  %3270 = vmatprep.subr.bf16.mxu0 0
  %3271 = vmatpush1.bf16.msra.mxu0 0
  %3272 = vmatprep.subr.bf16.mxu0 0
  %3273 = vmatpush1.bf16.msra.mxu0 0
  %3274 = vmatprep.subr.bf16.mxu0 0
  %3275 = vmatpush1.bf16.msra.mxu0 0
  %3276 = vmatprep.subr.bf16.mxu0 0
  %3277 = vmatpush1.bf16.msra.mxu0 0
  %3278 = vmatprep.subr.bf16.mxu0 0
  %3279 = vmatpush1.bf16.msra.mxu0 0
  %3280 = vmatprep.subr.bf16.mxu0 0
  %3281 = vmatpush1.bf16.msra.mxu0 0
  %3282 = vmatprep.subr.bf16.mxu0 0
  %3283 = vmatpush1.bf16.msra.mxu0 0
  %3284 = vmatprep.subr.bf16.mxu0 0
  %3285 = vmatpush1.bf16.msra.mxu0 0
  %3286 = vmatprep.subr.bf16.mxu0 0
  %3287 = vmatpush1.bf16.msra.mxu0 0
  %3288 = vmatprep.subr.bf16.mxu0 0
  %3289 = vmatpush1.bf16.msra.mxu0 0
  %3290 = vmatprep.subr.bf16.mxu0 0
  %3291 = vmatpush1.bf16.msra.mxu0 0
  %3292 = vmatprep.mubr.bf16.mxu0 0
  %3293 = vmatmul.mubr.bf16.gmra.mrb[0].mxu0 %v3205
  %v3294 = vpop.f32.mrb[0].mxu0
  %v3295 = vadd.f32 0.0, %v3294
  %v3296 = vpop.f32.mrb[0].mxu0
  %v3297 = vpop.f32.mrb[0].mxu0
  %v3298 = vadd.f32 0.0, %v3297
  %v3299 = vpop.f32.mrb[0].mxu0
  %3300 = vdwg.mxu0
  %v3301 = vsub.f32 %v2943, %v3252
  %v3302 = vsub.f32 %v2944, %v3254
  %v3303 = vsub.f32 %v2945, %v3295
  %v3304 = vsub.f32 %v2946, %v3256
  %v3305 = vsub.f32 %v2947, %v3258
  %v3306 = vsub.f32 %v2948, %v3298
  %v3307 = vmul.f32 %v3301, %v3301
  %v3308 = vmul.f32 %v3302, %v3302
  %v3309 = vmul.f32 %v3303, %v3303
  %v3310 = vmul.f32 %v3304, %v3304
  %v3311 = vmul.f32 %v3305, %v3305
  %v3312 = vmul.f32 %v3306, %v3306
  %v3313 = vpack.c.bf16 %v3310, %v3307
  %v3314 = vpack.c.bf16 %v3311, %v3308
  %v3315 = vpack.c.bf16 %v3312, %v3309
  %3316 = vmatprep.subr.bf16.mxu0 0
  %3317 = vmatpush1.bf16.msra.mxu0 %v3048
  %3318 = vmatprep.subr.bf16.mxu0 0
  %3319 = vmatpush1.bf16.msra.mxu0 %v3049
  %3320 = vmatprep.subr.bf16.mxu0 0
  %3321 = vmatpush1.bf16.msra.mxu0 %v3050
  %3322 = vmatprep.subr.bf16.mxu0 0
  %3323 = vmatpush1.bf16.msra.mxu0 %v3051
  %3324 = vmatprep.subr.bf16.mxu0 0
  %3325 = vmatpush1.bf16.msra.mxu0 %v3052
  %3326 = vmatprep.subr.bf16.mxu0 0
  %3327 = vmatpush1.bf16.msra.mxu0 %v3053
  %3328 = vmatprep.subr.bf16.mxu0 0
  %3329 = vmatpush1.bf16.msra.mxu0 %v3054
  %3330 = vmatprep.subr.bf16.mxu0 0
  %3331 = vmatpush1.bf16.msra.mxu0 %v3055
  %3332 = vmatprep.subr.bf16.mxu0 0
  %3333 = vmatpush1.bf16.msra.mxu0 %v3056
  %3334 = vmatprep.subr.bf16.mxu0 0
  %3335 = vmatpush1.bf16.msra.mxu0 %v3057
  %3336 = vmatprep.subr.bf16.mxu0 0
  %3337 = vmatpush1.bf16.msra.mxu0 %v3058
  %3338 = vmatprep.subr.bf16.mxu0 0
  %3339 = vmatpush1.bf16.msra.mxu0 %v3059
  %3340 = vmatprep.subr.bf16.mxu0 0
  %3341 = vmatpush1.bf16.msra.mxu0 %v3060
  %3342 = vmatprep.subr.bf16.mxu0 0
  %3343 = vmatpush1.bf16.msra.mxu0 %v3061
  %3344 = vmatprep.subr.bf16.mxu0 0
  %3345 = vmatpush1.bf16.msra.mxu0 %v3062
  %3346 = vmatprep.subr.bf16.mxu0 0
  %3347 = vmatpush1.bf16.msra.mxu0 %v3063
  %3348 = vmatprep.mubr.bf16.mxu0 %v3314
  %3349 = vmatmul.mubr.bf16.gmra.mrb[0].mxu0 %v3313
  %v3350 = vpop.f32.mrb[0].mxu0
  %v3351 = vadd.f32 1e-05, %v3350
  %v3352 = vpop.f32.mrb[0].mxu0
  %v3353 = vpop.f32.mrb[0].mxu0
  %v3354 = vadd.f32 1e-05, %v3353
  %v3355 = vpop.f32.mrb[0].mxu0
  %3356 = vdwg.mxu0
  %3357 = vmatprep.subr.bf16.mxu0 0
  %3358 = vmatpush1.bf16.msra.mxu0 %v3064
  %3359 = vmatprep.subr.bf16.mxu0 0
  %3360 = vmatpush1.bf16.msra.mxu0 %v3065
  %3361 = vmatprep.subr.bf16.mxu0 0
  %3362 = vmatpush1.bf16.msra.mxu0 %v3066
  %3363 = vmatprep.subr.bf16.mxu0 0
  %3364 = vmatpush1.bf16.msra.mxu0 %v3067
  %3365 = vmatprep.subr.bf16.mxu0 0
  %3366 = vmatpush1.bf16.msra.mxu0 %v3068
  %3367 = vmatprep.subr.bf16.mxu0 0
  %3368 = vmatpush1.bf16.msra.mxu0 %v3069
  %3369 = vmatprep.subr.bf16.mxu0 0
  %3370 = vmatpush1.bf16.msra.mxu0 %v3070
  %3371 = vmatprep.subr.bf16.mxu0 0
  %3372 = vmatpush1.bf16.msra.mxu0 %v3071
  %3373 = vmatprep.subr.bf16.mxu0 0
  %3374 = vmatpush1.bf16.msra.mxu0 0
  %3375 = vmatprep.subr.bf16.mxu0 0
  %3376 = vmatpush1.bf16.msra.mxu0 0
  %3377 = vmatprep.subr.bf16.mxu0 0
  %3378 = vmatpush1.bf16.msra.mxu0 0
  %3379 = vmatprep.subr.bf16.mxu0 0
  %3380 = vmatpush1.bf16.msra.mxu0 0
  %3381 = vmatprep.subr.bf16.mxu0 0
  %3382 = vmatpush1.bf16.msra.mxu0 0
  %3383 = vmatprep.subr.bf16.mxu0 0
  %3384 = vmatpush1.bf16.msra.mxu0 0
  %3385 = vmatprep.subr.bf16.mxu0 0
  %3386 = vmatpush1.bf16.msra.mxu0 0
  %3387 = vmatprep.subr.bf16.mxu0 0
  %3388 = vmatpush1.bf16.msra.mxu0 0
  %3389 = vmatprep.mubr.bf16.mxu0 0
  %3390 = vmatmul.mubr.bf16.gmra.mrb[0].mxu0 %v3315
  %v3391 = vpop.f32.mrb[0].mxu0
  %v3392 = vadd.f32 %v3351, %v3391
  %v3393 = vpop.f32.mrb[0].mxu0
  %v3394 = vpop.f32.mrb[0].mxu0
  %v3395 = vadd.f32 %v3354, %v3394
  %v3396 = vpop.f32.mrb[0].mxu0
  %3397 = vdwg.mxu0
  %v3398 = vrsqrt.pop %v3392
  %v3399 = vrsqrt.pop %v3395
  %v3400 = vpack.c.bf16 %v3399, %v3398
  %v3402 = vsel %vm3203, %v3400, 0
  %3404 = vmatprep.subr.bf16.mxu0 %v3195
  %3405 = vmatpush1.bf16.msra.mxu0 %v3194
  %3406 = vmatprep.subr.bf16.mxu0 %v3212
  %3407 = vmatpush1.bf16.msra.mxu0 %v3209
  %3408 = vmatprep.subr.bf16.mxu0 0
  %3409 = vmatpush1.bf16.msra.mxu0 0
  %3410 = vmatprep.subr.bf16.mxu0 0
  %3411 = vmatpush1.bf16.msra.mxu0 0
  %3412 = vmatprep.subr.bf16.mxu0 0
  %3413 = vmatpush1.bf16.msra.mxu0 0
  %3414 = vmatprep.subr.bf16.mxu0 0
  %3415 = vmatpush1.bf16.msra.mxu0 0
  %3416 = vmatprep.subr.bf16.mxu0 0
  %3417 = vmatpush1.bf16.msra.mxu0 0
  %3418 = vmatprep.subr.bf16.mxu0 0
  %3419 = vmatpush1.bf16.msra.mxu0 0
  %3420 = vmatprep.subr.bf16.mxu0 0
  %3421 = vmatpush1.bf16.msra.mxu0 0
  %3422 = vmatprep.subr.bf16.mxu0 0
  %3423 = vmatpush1.bf16.msra.mxu0 0
  %3424 = vmatprep.subr.bf16.mxu0 0
  %3425 = vmatpush1.bf16.msra.mxu0 0
  %3426 = vmatprep.subr.bf16.mxu0 0
  %3427 = vmatpush1.bf16.msra.mxu0 0
  %3428 = vmatprep.subr.bf16.mxu0 0
  %3429 = vmatpush1.bf16.msra.mxu0 0
  %3430 = vmatprep.subr.bf16.mxu0 0
  %3431 = vmatpush1.bf16.msra.mxu0 0
  %3432 = vmatprep.subr.bf16.mxu0 0
  %3433 = vmatpush1.bf16.msra.mxu0 0
  %3434 = vmatprep.subr.bf16.mxu0 0
  %3435 = vmatpush1.bf16.msra.mxu0 0
  %3436 = vmatprep.mubr.bf16.mxu0 0
  %3437 = vmatmul.mubr.bf16.gmra.mrb[0].mxu0 %v3402
  %v3438 = vpop.f32.mrb[0].mxu0
  %v3439 = vadd.f32 0.0, %v3438
  %v3440 = vpop.f32.mrb[0].mxu0
  %v3441 = vadd.f32 0.0, %v3440
  %v3442 = vpop.f32.mrb[0].mxu0
  %v3443 = vadd.f32 0.0, %v3442
  %v3444 = vpop.f32.mrb[0].mxu0
  %v3445 = vadd.f32 0.0, %v3444
  %3446 = vdwg.mxu0
  %3447 = vmatprep.subr.bf16.mxu0 0
  %3448 = vmatpush1.bf16.msra.mxu0 %v3196
  %3449 = vmatprep.subr.bf16.mxu0 0
  %3450 = vmatpush1.bf16.msra.mxu0 %v3215
  %3451 = vmatprep.subr.bf16.mxu0 0
  %3452 = vmatpush1.bf16.msra.mxu0 0
  %3453 = vmatprep.subr.bf16.mxu0 0
  %3454 = vmatpush1.bf16.msra.mxu0 0
  %3455 = vmatprep.subr.bf16.mxu0 0
  %3456 = vmatpush1.bf16.msra.mxu0 0
  %3457 = vmatprep.subr.bf16.mxu0 0
  %3458 = vmatpush1.bf16.msra.mxu0 0
  %3459 = vmatprep.subr.bf16.mxu0 0
  %3460 = vmatpush1.bf16.msra.mxu0 0
  %3461 = vmatprep.subr.bf16.mxu0 0
  %3462 = vmatpush1.bf16.msra.mxu0 0
  %3463 = vmatprep.subr.bf16.mxu0 0
  %3464 = vmatpush1.bf16.msra.mxu0 0
  %3465 = vmatprep.subr.bf16.mxu0 0
  %3466 = vmatpush1.bf16.msra.mxu0 0
  %3467 = vmatprep.subr.bf16.mxu0 0
  %3468 = vmatpush1.bf16.msra.mxu0 0
  %3469 = vmatprep.subr.bf16.mxu0 0
  %3470 = vmatpush1.bf16.msra.mxu0 0
  %3471 = vmatprep.subr.bf16.mxu0 0
  %3472 = vmatpush1.bf16.msra.mxu0 0
  %3473 = vmatprep.subr.bf16.mxu0 0
  %3474 = vmatpush1.bf16.msra.mxu0 0
  %3475 = vmatprep.subr.bf16.mxu0 0
  %3476 = vmatpush1.bf16.msra.mxu0 0
  %3477 = vmatprep.subr.bf16.mxu0 0
  %3478 = vmatpush1.bf16.msra.mxu0 0
  %3479 = vmatprep.mubr.bf16.mxu0 0
  %3480 = vmatmul.mubr.bf16.gmra.mrb[0].mxu0 %v3402
  %v3481 = vpop.f32.mrb[0].mxu0
  %v3482 = vadd.f32 0.0, %v3481
  %v3483 = vpop.f32.mrb[0].mxu0
  %v3484 = vpop.f32.mrb[0].mxu0
  %v3485 = vadd.f32 0.0, %v3484
  %v3486 = vpop.f32.mrb[0].mxu0
  %3487 = vdwg.mxu0
  %v3488 = vmul.f32 %v3301, %v3439
  %v3489 = vmul.f32 %v3302, %v3441
  %v3490 = vmul.f32 %v3303, %v3482
  %v3491 = vmul.f32 %v3304, %v3443
  %v3492 = vmul.f32 %v3305, %v3445
  %v3493 = vmul.f32 %v3306, %v3485
  %v3494 = vlaneseq
  %v3495 = vshrl.u32 %v3494, 7
  %v3496 = vsub.s32 3, %v3495
  %v3497 = vrot.slane %v39, %v3496
  %v3498 = vlaneseq
  %v3499 = vshrl.u32 %v3498, 7
  %v3500 = vsub.s32 3, %v3499
  %v3501 = vrot.slane %v40, %v3500
  %v3502 = vlaneseq
  %v3503 = vshrl.u32 %v3502, 7
  %v3504 = vsub.s32 3, %v3503
  %v3505 = vrot.slane %v41, %v3504
  %v3506 = vmul.f32 %v3488, %v3497
  %v3507 = vmul.f32 %v3489, %v3501
  %v3508 = vmul.f32 %v3490, %v3505
  %v3509 = vmul.f32 %v3491, %v3497
  %v3510 = vmul.f32 %v3492, %v3501
  %v3511 = vmul.f32 %v3493, %v3505
  %v3512 = vlaneseq
  %v3513 = vshrl.u32 %v3512, 7
  %v3514 = vsub.s32 4, %v3513
  %v3515 = vrot.slane %v39, %v3514
  %v3516 = vlaneseq
  %v3517 = vshrl.u32 %v3516, 7
  %v3518 = vsub.s32 4, %v3517
  %v3519 = vrot.slane %v40, %v3518
  %v3520 = vlaneseq
  %v3521 = vshrl.u32 %v3520, 7
  %v3522 = vsub.s32 4, %v3521
  %v3523 = vrot.slane %v41, %v3522
  %v3524 = vadd.f32 %v3506, %v3515
  %v3525 = vadd.f32 %v3507, %v3519
  %v3526 = vadd.f32 %v3508, %v3523
  %v3527 = vadd.f32 %v3509, %v3515
  %v3528 = vadd.f32 %v3510, %v3519
  %v3529 = vadd.f32 %v3511, %v3523
  %3536 = vrot.lane.b32.xlu0 %v3524, 1
  %v3537 = vpop.permute.xlu0 %3536
  %3538 = vrot.lane.b32.xlu0 %v3525, 1
  %v3539 = vpop.permute.xlu0 %3538
  %3540 = vrot.lane.b32.xlu0 %v3526, 1
  %v3541 = vpop.permute.xlu0 %3540
  %3542 = vrot.lane.b32.xlu0 %v3527, 1
  %v3543 = vpop.permute.xlu0 %3542
  %3544 = vrot.lane.b32.xlu0 %v3528, 1
  %v3545 = vpop.permute.xlu0 %3544
  %3546 = vrot.lane.b32.xlu0 %v3529, 1
  %v3547 = vpop.permute.xlu0 %3546
  %v3548 = vsel %vm125, %v3537, %v3539
  %v3549 = vsel %vm125, %v3539, %v3541
  %v3550 = vsel %vm125, %v3543, %v3545
  %v3551 = vsel %vm125, %v3545, %v3547
  %v3558 = vsel %vm125, 0.0, %v3537
  %v3559 = vsel %vm125, 0.0, %v3543
  %v3560 = vmul.f32 %v3558, %v141
  %v3561 = vmul.f32 %v3548, %v145
  %v3562 = vmul.f32 %v3549, %v149
  %v3563 = vmul.f32 %v3559, %v141
  %v3564 = vmul.f32 %v3550, %v145
  %v3565 = vmul.f32 %v3551, %v149
  %3566 = vrot.lane.b32.xlu0 %v3524, 127
  %v3567 = vpop.permute.xlu0 %3566
  %3568 = vrot.lane.b32.xlu0 %v3525, 127
  %v3569 = vpop.permute.xlu0 %3568
  %3570 = vrot.lane.b32.xlu0 %v3526, 127
  %v3571 = vpop.permute.xlu0 %3570
  %3572 = vrot.lane.b32.xlu0 %v3527, 127
  %v3573 = vpop.permute.xlu0 %3572
  %3574 = vrot.lane.b32.xlu0 %v3528, 127
  %v3575 = vpop.permute.xlu0 %3574
  %3576 = vrot.lane.b32.xlu0 %v3529, 127
  %v3577 = vpop.permute.xlu0 %3576
  %v3578 = vsel %vm168, %v3567, %v3569
  %v3579 = vsel %vm168, %v3569, %v3571
  %v3580 = vsel %vm168, %v3573, %v3575
  %v3581 = vsel %vm168, %v3575, %v3577
  %v3588 = vsel %vm168, %v3571, 0.0
  %v3589 = vsel %vm168, %v3577, 0.0
  %v3590 = vmul.f32 %v3578, %v184
  %v3591 = vmul.f32 %v3579, %v188
  %v3592 = vmul.f32 %v3588, %v192
  %v3593 = vmul.f32 %v3580, %v184
  %v3594 = vmul.f32 %v3581, %v188
  %v3595 = vmul.f32 %v3589, %v192
  %s3596 = scalar_lea.vmem %s3, 16
  %v3597 = vld [vmem:[%s3596] sm:$0xf]
  %v3598 = vld [vmem:[%s3596 + $0x4] sm:$0xf]
  %v3599 = vpack.c.bf16 %v3563, %v3560
  %v3600 = vpack.c.bf16 %v3564, %v3561
  %v3601 = vpack.c.bf16 %v3565, %v3562
  %v3602 = vpack.c.bf16 %v3527, %v3524
  %v3603 = vpack.c.bf16 %v3528, %v3525
  %v3604 = vpack.c.bf16 %v3529, %v3526
  %v3605 = vpack.c.bf16 %v3593, %v3590
  %v3606 = vpack.c.bf16 %v3594, %v3591
  %v3607 = vpack.c.bf16 %v3595, %v3592
  %3608 = vset.pattern.permute.xlu0 8
  %3609 = vperm.xlu0 %3608, %v45
  %v3610 = vpop.permute.xlu0 %3609
  %3612 = vset.pattern.permute.xlu0 8
  %3613 = vperm.xlu0 %3612, %v46
  %v3614 = vpop.permute.xlu0 %3613
  %v3618 = vunpack.c.l.b16 %v3597
  %v3619 = vunpack.c.l.b16 %v3598
  %v3620 = vpack.c.b16 %v3619, %v3618
  %v3622 = vsel %vm225, %v3620, 0
  %3624 = vmatprep.subr.bf16.mxu0 %v3600
  %3625 = vmatpush1.bf16.msra.mxu0 %v3599
  %3626 = vmatprep.subr.bf16.mxu0 %v3603
  %3627 = vmatpush1.bf16.msra.mxu0 %v3602
  %3628 = vmatprep.subr.bf16.mxu0 %v3606
  %3629 = vmatpush1.bf16.msra.mxu0 %v3605
  %3630 = vmatprep.subr.bf16.mxu0 0
  %3631 = vmatpush1.bf16.msra.mxu0 0
  %3632 = vmatprep.subr.bf16.mxu0 0
  %3633 = vmatpush1.bf16.msra.mxu0 0
  %3634 = vmatprep.subr.bf16.mxu0 0
  %3635 = vmatpush1.bf16.msra.mxu0 0
  %3636 = vmatprep.subr.bf16.mxu0 0
  %3637 = vmatpush1.bf16.msra.mxu0 0
  %3638 = vmatprep.subr.bf16.mxu0 0
  %3639 = vmatpush1.bf16.msra.mxu0 0
  %3640 = vmatprep.subr.bf16.mxu0 0
  %3641 = vmatpush1.bf16.msra.mxu0 0
  %3642 = vmatprep.subr.bf16.mxu0 0
  %3643 = vmatpush1.bf16.msra.mxu0 0
  %3644 = vmatprep.subr.bf16.mxu0 0
  %3645 = vmatpush1.bf16.msra.mxu0 0
  %3646 = vmatprep.subr.bf16.mxu0 0
  %3647 = vmatpush1.bf16.msra.mxu0 0
  %3648 = vmatprep.subr.bf16.mxu0 0
  %3649 = vmatpush1.bf16.msra.mxu0 0
  %3650 = vmatprep.subr.bf16.mxu0 0
  %3651 = vmatpush1.bf16.msra.mxu0 0
  %3652 = vmatprep.subr.bf16.mxu0 0
  %3653 = vmatpush1.bf16.msra.mxu0 0
  %3654 = vmatprep.subr.bf16.mxu0 0
  %3655 = vmatpush1.bf16.msra.mxu0 0
  %3656 = vmatprep.mubr.bf16.mxu0 0
  %3657 = vmatmul.mubr.bf16.gmra.mrb[0].mxu0 %v3622
  %v3658 = vpop.f32.mrb[0].mxu0
  %v3659 = vadd.f32 %v3610, %v3658
  %v3660 = vpop.f32.mrb[0].mxu0
  %v3661 = vadd.f32 %v3610, %v3660
  %v3662 = vpop.f32.mrb[0].mxu0
  %v3663 = vadd.f32 %v3614, %v3662
  %v3664 = vpop.f32.mrb[0].mxu0
  %v3665 = vadd.f32 %v3614, %v3664
  %3666 = vdwg.mxu0
  %3667 = vmatprep.subr.bf16.mxu0 0
  %3668 = vmatpush1.bf16.msra.mxu0 %v3601
  %3669 = vmatprep.subr.bf16.mxu0 0
  %3670 = vmatpush1.bf16.msra.mxu0 %v3604
  %3671 = vmatprep.subr.bf16.mxu0 0
  %3672 = vmatpush1.bf16.msra.mxu0 %v3607
  %3673 = vmatprep.subr.bf16.mxu0 0
  %3674 = vmatpush1.bf16.msra.mxu0 0
  %3675 = vmatprep.subr.bf16.mxu0 0
  %3676 = vmatpush1.bf16.msra.mxu0 0
  %3677 = vmatprep.subr.bf16.mxu0 0
  %3678 = vmatpush1.bf16.msra.mxu0 0
  %3679 = vmatprep.subr.bf16.mxu0 0
  %3680 = vmatpush1.bf16.msra.mxu0 0
  %3681 = vmatprep.subr.bf16.mxu0 0
  %3682 = vmatpush1.bf16.msra.mxu0 0
  %3683 = vmatprep.subr.bf16.mxu0 0
  %3684 = vmatpush1.bf16.msra.mxu0 0
  %3685 = vmatprep.subr.bf16.mxu0 0
  %3686 = vmatpush1.bf16.msra.mxu0 0
  %3687 = vmatprep.subr.bf16.mxu0 0
  %3688 = vmatpush1.bf16.msra.mxu0 0
  %3689 = vmatprep.subr.bf16.mxu0 0
  %3690 = vmatpush1.bf16.msra.mxu0 0
  %3691 = vmatprep.subr.bf16.mxu0 0
  %3692 = vmatpush1.bf16.msra.mxu0 0
  %3693 = vmatprep.subr.bf16.mxu0 0
  %3694 = vmatpush1.bf16.msra.mxu0 0
  %3695 = vmatprep.subr.bf16.mxu0 0
  %3696 = vmatpush1.bf16.msra.mxu0 0
  %3697 = vmatprep.subr.bf16.mxu0 0
  %3698 = vmatpush1.bf16.msra.mxu0 0
  %3699 = vmatprep.mubr.bf16.mxu0 0
  %3700 = vmatmul.mubr.bf16.gmra.mrb[0].mxu0 %v3622
  %v3701 = vpop.f32.mrb[0].mxu0
  %v3702 = vadd.f32 %v3610, %v3701
  %v3703 = vpop.f32.mrb[0].mxu0
  %v3704 = vpop.f32.mrb[0].mxu0
  %v3705 = vadd.f32 %v3614, %v3704
  %v3706 = vpop.f32.mrb[0].mxu0
  %3707 = vdwg.mxu0
  %v3708 = vadd.f32 %v3659, %v3661
  %v3709 = vadd.f32 %v3708, %v3702
  %3710 = vadd.xlane.f32.xlu0 %v3709
  %v3711 = vpop.xlane.xlu0 %3710
  %v3712 = vadd.f32 %v3663, %v3665
  %v3713 = vadd.f32 %v3712, %v3705
  %3714 = vadd.xlane.f32.xlu0 %v3713
  %v3715 = vpop.xlane.xlu0 %3714
  %v3716 = vmul.f32 %v3711, 0.0026041667
  %v3717 = vmul.f32 %v3715, 0.0026041667
  %v3718 = vsub.f32 %v3659, %v3716
  %v3719 = vsub.f32 %v3661, %v3716
  %v3720 = vsub.f32 %v3702, %v3716
  %v3721 = vsub.f32 %v3663, %v3717
  %v3722 = vsub.f32 %v3665, %v3717
  %v3723 = vsub.f32 %v3705, %v3717
  %v3724 = vmul.f32 %v3718, %v3718
  %v3725 = vmul.f32 %v3719, %v3719
  %v3726 = vmul.f32 %v3720, %v3720
  %v3727 = vmul.f32 %v3721, %v3721
  %v3728 = vmul.f32 %v3722, %v3722
  %v3729 = vmul.f32 %v3723, %v3723
  %v3730 = vadd.f32 %v3724, %v3725
  %v3731 = vadd.f32 %v3730, %v3726
  %3732 = vadd.xlane.f32.xlu0 %v3731
  %v3733 = vpop.xlane.xlu0 %3732
  %v3734 = vadd.f32 %v3727, %v3728
  %v3735 = vadd.f32 %v3734, %v3729
  %3736 = vadd.xlane.f32.xlu0 %v3735
  %v3737 = vpop.xlane.xlu0 %3736
  %v3738 = vmul.f32 %v3733, 0.0026041667
  %v3739 = vmul.f32 %v3737, 0.0026041667
  %v3740 = vadd.f32 %v3738, 1e-05
  %v3741 = vadd.f32 %v3739, 1e-05
  %v3742 = vrsqrt.pop %v3740
  %v3743 = vrsqrt.pop %v3741
  %v3744 = vmul.f32 %v45, %v3742
  %v3745 = vmul.f32 %v46, %v3743
  %3747 = vset.pattern.permute.xlu0 9
  %3748 = vperm.xlu0 %3747, %v3744
  %v3749 = vpop.permute.xlu0 %3748
  %3752 = vset.pattern.permute.xlu0 9
  %3753 = vperm.xlu0 %3752, %v3745
  %v3754 = vpop.permute.xlu0 %3753
  %v3756 = vmul.f32 %v3718, %v3749
  %v3757 = vmul.f32 %v3719, %v3749
  %v3758 = vmul.f32 %v3720, %v3749
  %v3759 = vmul.f32 %v3721, %v3754
  %v3760 = vmul.f32 %v3722, %v3754
  %v3761 = vmul.f32 %v3723, %v3754
  %3762 = vset.pattern.permute.xlu0 10
  %3763 = vperm.xlu0 %3762, %v45
  %v3764 = vpop.permute.xlu0 %3763
  %3766 = vset.pattern.permute.xlu0 10
  %3767 = vperm.xlu0 %3766, %v46
  %v3768 = vpop.permute.xlu0 %3767
  %v3770 = vadd.f32 %v3756, %v3764
  %v3771 = vadd.f32 %v3757, %v3764
  %v3772 = vadd.f32 %v3758, %v3764
  %v3773 = vadd.f32 %v3759, %v3768
  %v3774 = vadd.f32 %v3760, %v3768
  %v3775 = vadd.f32 %v3761, %v3768
  %v3776 = vmax.f32 %v3770, 0.0
  %v3777 = vmax.f32 %v3771, 0.0
  %v3778 = vmax.f32 %v3772, 0.0
  %v3779 = vmax.f32 %v3773, 0.0
  %v3780 = vmax.f32 %v3774, 0.0
  %v3781 = vmax.f32 %v3775, 0.0
  %v3782 = vmul.f32 %v3776, %v390
  %v3783 = vmul.f32 %v3777, %v394
  %v3784 = vmul.f32 %v3778, %v398
  %v3785 = vmul.f32 %v3779, %v390
  %v3786 = vmul.f32 %v3780, %v394
  %v3787 = vmul.f32 %v3781, %v398
  %v3788 = vadd.f32 %v3782, %v3783
  %v3789 = vadd.f32 %v3788, %v3784
  %3790 = vadd.xlane.f32.xlu0 %v3789
  %v3791 = vpop.xlane.xlu0 %3790
  %v3792 = vadd.f32 %v3785, %v3786
  %v3793 = vadd.f32 %v3792, %v3787
  %3794 = vadd.xlane.f32.xlu0 %v3793
  %v3795 = vpop.xlane.xlu0 %3794
  %v3796 = vmul.f32 %v3791, 0.0052083335
  %v3797 = vmul.f32 %v3795, 0.0052083335
  %v3798 = vsel %vm433, %v3776, -1e+30
  %v3799 = vsel %vm434, %v3777, -1e+30
  %v3800 = vsel %vm435, %v3778, -1e+30
  %v3801 = vsel %vm433, %v3779, -1e+30
  %v3802 = vsel %vm434, %v3780, -1e+30
  %v3803 = vsel %vm435, %v3781, -1e+30
  %v3804 = vmax.f32 %v3798, %v3800
  %v3805 = vmax.f32 %v3804, %v3799
  %3806 = vmax.xlane.f32.xlu0 %v3805
  %v3807 = vpop.xlane.xlu0 %3806
  %v3808 = vmax.f32 %v3801, %v3803
  %v3809 = vmax.f32 %v3808, %v3802
  %3810 = vmax.xlane.f32.xlu0 %v3809
  %v3811 = vpop.xlane.xlu0 %3810
  %v3812 = vmul.f32 %v3776, %v453
  %v3813 = vmul.f32 %v3777, %v457
  %v3814 = vmul.f32 %v3778, %v461
  %v3815 = vmul.f32 %v3779, %v453
  %v3816 = vmul.f32 %v3780, %v457
  %v3817 = vmul.f32 %v3781, %v461
  %v3818 = vadd.f32 %v3812, %v3813
  %v3819 = vadd.f32 %v3818, %v3814
  %3820 = vadd.xlane.f32.xlu0 %v3819
  %v3821 = vpop.xlane.xlu0 %3820
  %v3822 = vadd.f32 %v3815, %v3816
  %v3823 = vadd.f32 %v3822, %v3817
  %3824 = vadd.xlane.f32.xlu0 %v3823
  %v3825 = vpop.xlane.xlu0 %3824
  %v3826 = vmul.f32 %v3821, 0.0052083335
  %v3827 = vmul.f32 %v3825, 0.0052083335
  %v3828 = vsel %vm490, %v3776, -1e+30
  %v3829 = vsel %vm491, %v3777, -1e+30
  %v3830 = vsel %vm492, %v3778, -1e+30
  %v3831 = vsel %vm490, %v3779, -1e+30
  %v3832 = vsel %vm491, %v3780, -1e+30
  %v3833 = vsel %vm492, %v3781, -1e+30
  %v3834 = vmax.f32 %v3828, %v3830
  %v3835 = vmax.f32 %v3834, %v3829
  %3836 = vmax.xlane.f32.xlu0 %v3835
  %v3837 = vpop.xlane.xlu0 %3836
  %v3838 = vmax.f32 %v3831, %v3833
  %v3839 = vmax.f32 %v3838, %v3832
  %3840 = vmax.xlane.f32.xlu0 %v3839
  %v3841 = vpop.xlane.xlu0 %3840
  %3846 = vrot.lane.b32.xlu0 %v3826, 1
  %v3847 = vpop.permute.xlu0 %3846
  %3848 = vrot.lane.b32.xlu0 %v3827, 1
  %v3849 = vpop.permute.xlu0 %3848
  %3850 = vrot.lane.b32.xlu0 %v3837, 1
  %v3851 = vpop.permute.xlu0 %3850
  %3852 = vrot.lane.b32.xlu0 %v3841, 1
  %v3853 = vpop.permute.xlu0 %3852
  %v3858 = vsel %vm125, %v3796, %v3847
  %v3859 = vsel %vm125, %v3797, %v3849
  %v3860 = vsel %vm125, %v3807, %v3851
  %v3861 = vsel %vm125, %v3811, %v3853
  %s3862 = scalar_lea.vmem %s4, 16
  %v3863 = vld [vmem:[%s3862] sm:$0xf]
  %v3864 = vld [vmem:[%s3862 + $0x4] sm:$0xf]
  %v3865 = vpack.c.bf16 %v3859, %v3858
  %v3866 = vpack.c.bf16 %v3861, %v3860
  %3867 = vset.pattern.permute.xlu0 11
  %3868 = vperm.xlu0 %3867, %v45
  %v3869 = vpop.permute.xlu0 %3868
  %3871 = vset.pattern.permute.xlu0 11
  %3872 = vperm.xlu0 %3871, %v46
  %v3873 = vpop.permute.xlu0 %3872
  %v3877 = vunpack.c.l.b16 %v3863
  %v3878 = vunpack.c.l.b16 %v3864
  %v3879 = vpack.c.b16 %v3878, %v3877
  %v3881 = vsel %vm544, %v3879, 0
  %3883 = vmatprep.subr.bf16.mxu0 0
  %3884 = vmatpush1.bf16.msra.mxu0 %v3865
  %3885 = vmatprep.subr.bf16.mxu0 0
  %3886 = vmatpush1.bf16.msra.mxu0 %v3866
  %3887 = vmatprep.subr.bf16.mxu0 0
  %3888 = vmatpush1.bf16.msra.mxu0 0
  %3889 = vmatprep.subr.bf16.mxu0 0
  %3890 = vmatpush1.bf16.msra.mxu0 0
  %3891 = vmatprep.subr.bf16.mxu0 0
  %3892 = vmatpush1.bf16.msra.mxu0 0
  %3893 = vmatprep.subr.bf16.mxu0 0
  %3894 = vmatpush1.bf16.msra.mxu0 0
  %3895 = vmatprep.subr.bf16.mxu0 0
  %3896 = vmatpush1.bf16.msra.mxu0 0
  %3897 = vmatprep.subr.bf16.mxu0 0
  %3898 = vmatpush1.bf16.msra.mxu0 0
  %3899 = vmatprep.subr.bf16.mxu0 0
  %3900 = vmatpush1.bf16.msra.mxu0 0
  %3901 = vmatprep.subr.bf16.mxu0 0
  %3902 = vmatpush1.bf16.msra.mxu0 0
  %3903 = vmatprep.subr.bf16.mxu0 0
  %3904 = vmatpush1.bf16.msra.mxu0 0
  %3905 = vmatprep.subr.bf16.mxu0 0
  %3906 = vmatpush1.bf16.msra.mxu0 0
  %3907 = vmatprep.subr.bf16.mxu0 0
  %3908 = vmatpush1.bf16.msra.mxu0 0
  %3909 = vmatprep.subr.bf16.mxu0 0
  %3910 = vmatpush1.bf16.msra.mxu0 0
  %3911 = vmatprep.subr.bf16.mxu0 0
  %3912 = vmatpush1.bf16.msra.mxu0 0
  %3913 = vmatprep.subr.bf16.mxu0 0
  %3914 = vmatpush1.bf16.msra.mxu0 0
  %3915 = vmatprep.mubr.bf16.mxu0 0
  %3916 = vmatmul.mubr.bf16.gmra.mrb[0].mxu0 %v3881
  %v3917 = vpop.f32.mrb[0].mxu0
  %v3918 = vadd.f32 %v3869, %v3917
  %v3919 = vpop.f32.mrb[0].mxu0
  %v3920 = vpop.f32.mrb[0].mxu0
  %v3921 = vadd.f32 %v3873, %v3920
  %v3922 = vpop.f32.mrb[0].mxu0
  %3923 = vdwg.mxu0
  %v3924 = vxor.u32 %v3918, 2147483648
  %v3925 = vxor.u32 %v3921, 2147483648
  %v3926 = vmul.f32 %v3924, 1.442695
  %v3927 = vpow.pop %v3926
  %v3928 = vmul.f32 %v3925, 1.442695
  %v3929 = vpow.pop %v3928
  %v3930 = vadd.f32 %v3927, 1.0
  %v3931 = vadd.f32 %v3929, 1.0
  %v3932 = vrcp.pop %v3930
  %v3933 = vmul.f32 1.0, %v3932
  %v3934 = vrcp.pop %v3931
  %v3935 = vmul.f32 1.0, %v3934
  %3937 = vset.pattern.permute.xlu0 0
  %3938 = vperm.xlu0 %3937, %v3933
  %v3939 = vpop.permute.xlu0 %3938
  %3942 = vset.pattern.permute.xlu0 0
  %3943 = vperm.xlu0 %3942, %v3935
  %v3944 = vpop.permute.xlu0 %3943
  %v3946 = vmul.f32 %v3939, %v390
  %v3947 = vmul.f32 %v3939, %v394
  %v3948 = vmul.f32 %v3939, %v398
  %v3949 = vmul.f32 %v3944, %v390
  %v3950 = vmul.f32 %v3944, %v394
  %v3951 = vmul.f32 %v3944, %v398
  %3952 = vset.pattern.permute.xlu0 1
  %3953 = vperm.xlu0 %3952, %v3933
  %v3954 = vpop.permute.xlu0 %3953
  %3956 = vset.pattern.permute.xlu0 1
  %3957 = vperm.xlu0 %3956, %v3935
  %v3958 = vpop.permute.xlu0 %3957
  %v3960 = vmul.f32 %v3954, %v453
  %v3961 = vmul.f32 %v3954, %v457
  %v3962 = vmul.f32 %v3954, %v461
  %v3963 = vmul.f32 %v3958, %v453
  %v3964 = vmul.f32 %v3958, %v457
  %v3965 = vmul.f32 %v3958, %v461
  %v3966 = vadd.f32 %v3946, %v3960
  %v3967 = vadd.f32 %v3947, %v3961
  %v3968 = vadd.f32 %v3948, %v3962
  %v3969 = vadd.f32 %v3949, %v3963
  %v3970 = vadd.f32 %v3950, %v3964
  %v3971 = vadd.f32 %v3951, %v3965
  %v3972 = vmul.f32 %v3776, %v3966
  %v3973 = vmul.f32 %v3777, %v3967
  %v3974 = vmul.f32 %v3778, %v3968
  %v3975 = vmul.f32 %v3779, %v3969
  %v3976 = vmul.f32 %v3780, %v3970
  %v3977 = vmul.f32 %v3781, %v3971
  %v3978 = vadd.f32 %v3972, %v3975
  %v3979 = vrot.slane %v3978, 4
  %v3980 = vadd.f32 %v3978, %v3979
  %v3981 = vrot.slane %v3980, 2
  %v3982 = vadd.f32 %v3980, %v3981
  %v3983 = vrot.slane %v3982, 1
  %v3984 = vadd.f32 %v3982, %v3983
  %v3985 = vadd.f32 %v3973, %v3976
  %v3986 = vrot.slane %v3985, 4
  %v3987 = vadd.f32 %v3985, %v3986
  %v3988 = vrot.slane %v3987, 2
  %v3989 = vadd.f32 %v3987, %v3988
  %v3990 = vrot.slane %v3989, 1
  %v3991 = vadd.f32 %v3989, %v3990
  %v3992 = vadd.f32 %v3974, %v3977
  %v3993 = vrot.slane %v3992, 4
  %v3994 = vadd.f32 %v3992, %v3993
  %v3995 = vrot.slane %v3994, 2
  %v3996 = vadd.f32 %v3994, %v3995
  %v3997 = vrot.slane %v3996, 1
  %v3998 = vadd.f32 %v3996, %v3997
  %v3999 = vmul.f32 %v3984, %v664
  %v4000 = vmul.f32 %v3991, %v664
  %v4001 = vmul.f32 %v3998, %v664
  %v4002 = vmax.f32 %v3972, %v3975
  %v4003 = vrot.slane %v4002, 4
  %v4004 = vmax.f32 %v4002, %v4003
  %v4005 = vrot.slane %v4004, 2
  %v4006 = vmax.f32 %v4004, %v4005
  %v4007 = vrot.slane %v4006, 1
  %v4008 = vmax.f32 %v4006, %v4007
  %v4009 = vmax.f32 %v3973, %v3976
  %v4010 = vrot.slane %v4009, 4
  %v4011 = vmax.f32 %v4009, %v4010
  %v4012 = vrot.slane %v4011, 2
  %v4013 = vmax.f32 %v4011, %v4012
  %v4014 = vrot.slane %v4013, 1
  %v4015 = vmax.f32 %v4013, %v4014
  %v4016 = vmax.f32 %v3974, %v3977
  %v4017 = vrot.slane %v4016, 4
  %v4018 = vmax.f32 %v4016, %v4017
  %v4019 = vrot.slane %v4018, 2
  %v4020 = vmax.f32 %v4018, %v4019
  %v4021 = vrot.slane %v4020, 1
  %v4022 = vmax.f32 %v4020, %v4021
  %4025 = vrot.lane.b32.xlu0 %v4008, 64
  %v4026 = vpop.permute.xlu0 %4025
  %4027 = vrot.lane.b32.xlu0 %v4015, 64
  %v4028 = vpop.permute.xlu0 %4027
  %v4029 = vsel %vm695, %v4026, %v4028
  %v4032 = vsel %vm695, %v4000, %v4026
  %4035 = vrot.lane.b32.xlu0 %v4000, 64
  %v4036 = vpop.permute.xlu0 %4035
  %4037 = vrot.lane.b32.xlu0 %v4001, 64
  %v4038 = vpop.permute.xlu0 %4037
  %v4039 = vsel %vm695, %v4036, %v4038
  %v4041 = vsel %vm695, %v4038, %v4015
  %v4044 = vrot.slane %v4039, 7
  %v4045 = vrot.slane %v4041, 7
  %v4046 = vrot.slane %v4022, 7
  %v4050 = vsel %vm717, %v3999, %v4044
  %v4051 = vsel %vm717, %v4032, %v4045
  %v4052 = vsel %vm717, %v4029, %v4046
  %s4053 = scalar_lea.vmem %s5, 768
  %v4054 = vld [vmem:[%s4053] sm:$0xff]
  %v4055 = vld [vmem:[%s4053 + $0x8] sm:$0xff]
  %v4056 = vld [vmem:[%s4053 + $0x10] sm:$0xff]
  %v4057 = vld [vmem:[%s4053 + $0x18] sm:$0xff]
  %v4058 = vld [vmem:[%s4053 + $0x20] sm:$0xff]
  %v4059 = vld [vmem:[%s4053 + $0x28] sm:$0xff]
  %v4060 = vld [vmem:[%s4053 + $0x30] sm:$0xff]
  %v4061 = vld [vmem:[%s4053 + $0x38] sm:$0xff]
  %v4062 = vld [vmem:[%s4053 + $0x40] sm:$0xff]
  %v4063 = vld [vmem:[%s4053 + $0x48] sm:$0xff]
  %v4064 = vld [vmem:[%s4053 + $0x50] sm:$0xff]
  %v4065 = vld [vmem:[%s4053 + $0x58] sm:$0xff]
  %v4066 = vld [vmem:[%s4053 + $0x60] sm:$0xff]
  %v4067 = vld [vmem:[%s4053 + $0x68] sm:$0xff]
  %v4068 = vld [vmem:[%s4053 + $0x70] sm:$0xff]
  %v4069 = vld [vmem:[%s4053 + $0x78] sm:$0xff]
  %v4070 = vld [vmem:[%s4053 + $0x80] sm:$0xff]
  %v4071 = vld [vmem:[%s4053 + $0x88] sm:$0xff]
  %v4072 = vld [vmem:[%s4053 + $0x90] sm:$0xff]
  %v4073 = vld [vmem:[%s4053 + $0x98] sm:$0xff]
  %v4074 = vld [vmem:[%s4053 + $0xa0] sm:$0xff]
  %v4075 = vld [vmem:[%s4053 + $0xa8] sm:$0xff]
  %v4076 = vld [vmem:[%s4053 + $0xb0] sm:$0xff]
  %v4077 = vld [vmem:[%s4053 + $0xb8] sm:$0xff]
  %v4078 = vld [vmem:[%s4053 + $0xc0] sm:$0xff]
  %v4079 = vld [vmem:[%s4053 + $0xc8] sm:$0xff]
  %v4080 = vld [vmem:[%s4053 + $0xd0] sm:$0xff]
  %v4081 = vld [vmem:[%s4053 + $0xd8] sm:$0xff]
  %v4082 = vld [vmem:[%s4053 + $0xe0] sm:$0xff]
  %v4083 = vld [vmem:[%s4053 + $0xe8] sm:$0xff]
  %v4084 = vld [vmem:[%s4053 + $0xf0] sm:$0xff]
  %v4085 = vld [vmem:[%s4053 + $0xf8] sm:$0xff]
  %v4086 = vld [vmem:[%s4053 + $0x100] sm:$0xff]
  %v4087 = vld [vmem:[%s4053 + $0x108] sm:$0xff]
  %v4088 = vld [vmem:[%s4053 + $0x110] sm:$0xff]
  %v4089 = vld [vmem:[%s4053 + $0x118] sm:$0xff]
  %v4090 = vld [vmem:[%s4053 + $0x120] sm:$0xff]
  %v4091 = vld [vmem:[%s4053 + $0x128] sm:$0xff]
  %v4092 = vld [vmem:[%s4053 + $0x130] sm:$0xff]
  %v4093 = vld [vmem:[%s4053 + $0x138] sm:$0xff]
  %v4094 = vld [vmem:[%s4053 + $0x140] sm:$0xff]
  %v4095 = vld [vmem:[%s4053 + $0x148] sm:$0xff]
  %v4096 = vld [vmem:[%s4053 + $0x150] sm:$0xff]
  %v4097 = vld [vmem:[%s4053 + $0x158] sm:$0xff]
  %v4098 = vld [vmem:[%s4053 + $0x160] sm:$0xff]
  %v4099 = vld [vmem:[%s4053 + $0x168] sm:$0xff]
  %v4100 = vld [vmem:[%s4053 + $0x170] sm:$0xff]
  %v4101 = vld [vmem:[%s4053 + $0x178] sm:$0xff]
  %v4102 = vpack.c.bf16 %v4050, %v4050
  %v4103 = vpack.c.bf16 %v4051, %v4051
  %v4104 = vpack.c.bf16 %v4052, %v4052
  %v4153 = vunpack.c.l.b16 %v4054
  %v4154 = vunpack.c.h.b16 %v4054
  %v4155 = vunpack.c.l.b16 %v4055
  %v4156 = vunpack.c.h.b16 %v4055
  %v4157 = vunpack.c.l.b16 %v4056
  %v4158 = vunpack.c.h.b16 %v4056
  %v4159 = vunpack.c.l.b16 %v4057
  %v4160 = vunpack.c.h.b16 %v4057
  %v4161 = vunpack.c.l.b16 %v4058
  %v4162 = vunpack.c.h.b16 %v4058
  %v4163 = vunpack.c.l.b16 %v4059
  %v4164 = vunpack.c.h.b16 %v4059
  %v4165 = vunpack.c.l.b16 %v4060
  %v4166 = vunpack.c.h.b16 %v4060
  %v4167 = vunpack.c.l.b16 %v4061
  %v4168 = vunpack.c.h.b16 %v4061
  %v4169 = vunpack.c.l.b16 %v4062
  %v4170 = vunpack.c.h.b16 %v4062
  %v4171 = vunpack.c.l.b16 %v4063
  %v4172 = vunpack.c.h.b16 %v4063
  %v4173 = vunpack.c.l.b16 %v4064
  %v4174 = vunpack.c.h.b16 %v4064
  %v4175 = vunpack.c.l.b16 %v4065
  %v4176 = vunpack.c.h.b16 %v4065
  %v4177 = vunpack.c.l.b16 %v4066
  %v4178 = vunpack.c.h.b16 %v4066
  %v4179 = vunpack.c.l.b16 %v4067
  %v4180 = vunpack.c.h.b16 %v4067
  %v4181 = vunpack.c.l.b16 %v4068
  %v4182 = vunpack.c.h.b16 %v4068
  %v4183 = vunpack.c.l.b16 %v4069
  %v4184 = vunpack.c.h.b16 %v4069
  %v4185 = vunpack.c.l.b16 %v4070
  %v4186 = vunpack.c.h.b16 %v4070
  %v4187 = vunpack.c.l.b16 %v4071
  %v4188 = vunpack.c.h.b16 %v4071
  %v4189 = vunpack.c.l.b16 %v4072
  %v4190 = vunpack.c.h.b16 %v4072
  %v4191 = vunpack.c.l.b16 %v4073
  %v4192 = vunpack.c.h.b16 %v4073
  %v4193 = vunpack.c.l.b16 %v4074
  %v4194 = vunpack.c.h.b16 %v4074
  %v4195 = vunpack.c.l.b16 %v4075
  %v4196 = vunpack.c.h.b16 %v4075
  %v4197 = vunpack.c.l.b16 %v4076
  %v4198 = vunpack.c.h.b16 %v4076
  %v4199 = vunpack.c.l.b16 %v4077
  %v4200 = vunpack.c.h.b16 %v4077
  %v4201 = vunpack.c.l.b16 %v4078
  %v4202 = vunpack.c.h.b16 %v4078
  %v4203 = vunpack.c.l.b16 %v4079
  %v4204 = vunpack.c.h.b16 %v4079
  %v4205 = vunpack.c.l.b16 %v4080
  %v4206 = vunpack.c.h.b16 %v4080
  %v4207 = vunpack.c.l.b16 %v4081
  %v4208 = vunpack.c.h.b16 %v4081
  %v4209 = vunpack.c.l.b16 %v4082
  %v4210 = vunpack.c.h.b16 %v4082
  %v4211 = vunpack.c.l.b16 %v4083
  %v4212 = vunpack.c.h.b16 %v4083
  %v4213 = vunpack.c.l.b16 %v4084
  %v4214 = vunpack.c.h.b16 %v4084
  %v4215 = vunpack.c.l.b16 %v4085
  %v4216 = vunpack.c.h.b16 %v4085
  %v4217 = vunpack.c.l.b16 %v4086
  %v4218 = vunpack.c.h.b16 %v4086
  %v4219 = vunpack.c.l.b16 %v4087
  %v4220 = vunpack.c.h.b16 %v4087
  %v4221 = vunpack.c.l.b16 %v4088
  %v4222 = vunpack.c.h.b16 %v4088
  %v4223 = vunpack.c.l.b16 %v4089
  %v4224 = vunpack.c.h.b16 %v4089
  %v4225 = vunpack.c.l.b16 %v4090
  %v4226 = vunpack.c.h.b16 %v4090
  %v4227 = vunpack.c.l.b16 %v4091
  %v4228 = vunpack.c.h.b16 %v4091
  %v4229 = vunpack.c.l.b16 %v4092
  %v4230 = vunpack.c.h.b16 %v4092
  %v4231 = vunpack.c.l.b16 %v4093
  %v4232 = vunpack.c.h.b16 %v4093
  %v4233 = vunpack.c.l.b16 %v4094
  %v4234 = vunpack.c.h.b16 %v4094
  %v4235 = vunpack.c.l.b16 %v4095
  %v4236 = vunpack.c.h.b16 %v4095
  %v4237 = vunpack.c.l.b16 %v4096
  %v4238 = vunpack.c.h.b16 %v4096
  %v4239 = vunpack.c.l.b16 %v4097
  %v4240 = vunpack.c.h.b16 %v4097
  %v4241 = vunpack.c.l.b16 %v4098
  %v4242 = vunpack.c.h.b16 %v4098
  %v4243 = vunpack.c.l.b16 %v4099
  %v4244 = vunpack.c.h.b16 %v4099
  %v4245 = vunpack.c.l.b16 %v4100
  %v4246 = vunpack.c.h.b16 %v4100
  %v4247 = vunpack.c.l.b16 %v4101
  %v4248 = vunpack.c.h.b16 %v4101
  %v4249 = vpack.c.b16 %v4155, %v4153
  %v4250 = vpack.c.b16 %v4156, %v4154
  %v4251 = vpack.c.b16 %v4159, %v4157
  %v4252 = vpack.c.b16 %v4160, %v4158
  %v4253 = vpack.c.b16 %v4163, %v4161
  %v4254 = vpack.c.b16 %v4164, %v4162
  %v4255 = vpack.c.b16 %v4167, %v4165
  %v4256 = vpack.c.b16 %v4168, %v4166
  %v4257 = vpack.c.b16 %v4171, %v4169
  %v4258 = vpack.c.b16 %v4172, %v4170
  %v4259 = vpack.c.b16 %v4175, %v4173
  %v4260 = vpack.c.b16 %v4176, %v4174
  %v4261 = vpack.c.b16 %v4179, %v4177
  %v4262 = vpack.c.b16 %v4180, %v4178
  %v4263 = vpack.c.b16 %v4183, %v4181
  %v4264 = vpack.c.b16 %v4184, %v4182
  %v4265 = vpack.c.b16 %v4187, %v4185
  %v4266 = vpack.c.b16 %v4188, %v4186
  %v4267 = vpack.c.b16 %v4191, %v4189
  %v4268 = vpack.c.b16 %v4192, %v4190
  %v4269 = vpack.c.b16 %v4195, %v4193
  %v4270 = vpack.c.b16 %v4196, %v4194
  %v4271 = vpack.c.b16 %v4199, %v4197
  %v4272 = vpack.c.b16 %v4200, %v4198
  %v4273 = vpack.c.b16 %v4203, %v4201
  %v4274 = vpack.c.b16 %v4204, %v4202
  %v4275 = vpack.c.b16 %v4207, %v4205
  %v4276 = vpack.c.b16 %v4208, %v4206
  %v4277 = vpack.c.b16 %v4211, %v4209
  %v4278 = vpack.c.b16 %v4212, %v4210
  %v4279 = vpack.c.b16 %v4215, %v4213
  %v4280 = vpack.c.b16 %v4216, %v4214
  %v4281 = vpack.c.b16 %v4219, %v4217
  %v4282 = vpack.c.b16 %v4220, %v4218
  %v4283 = vpack.c.b16 %v4223, %v4221
  %v4284 = vpack.c.b16 %v4224, %v4222
  %v4285 = vpack.c.b16 %v4227, %v4225
  %v4286 = vpack.c.b16 %v4228, %v4226
  %v4287 = vpack.c.b16 %v4231, %v4229
  %v4288 = vpack.c.b16 %v4232, %v4230
  %v4289 = vpack.c.b16 %v4235, %v4233
  %v4290 = vpack.c.b16 %v4236, %v4234
  %v4291 = vpack.c.b16 %v4239, %v4237
  %v4292 = vpack.c.b16 %v4240, %v4238
  %v4293 = vpack.c.b16 %v4243, %v4241
  %v4294 = vpack.c.b16 %v4244, %v4242
  %v4295 = vpack.c.b16 %v4247, %v4245
  %v4296 = vpack.c.b16 %v4248, %v4246
  %4345 = vmatprep.subr.bf16.mxu0 %v4250
  %4346 = vmatpush1.bf16.msra.mxu0 %v4249
  %4347 = vmatprep.subr.bf16.mxu0 %v4252
  %4348 = vmatpush1.bf16.msra.mxu0 %v4251
  %4349 = vmatprep.subr.bf16.mxu0 %v4254
  %4350 = vmatpush1.bf16.msra.mxu0 %v4253
  %4351 = vmatprep.subr.bf16.mxu0 %v4256
  %4352 = vmatpush1.bf16.msra.mxu0 %v4255
  %4353 = vmatprep.subr.bf16.mxu0 %v4258
  %4354 = vmatpush1.bf16.msra.mxu0 %v4257
  %4355 = vmatprep.subr.bf16.mxu0 %v4260
  %4356 = vmatpush1.bf16.msra.mxu0 %v4259
  %4357 = vmatprep.subr.bf16.mxu0 %v4262
  %4358 = vmatpush1.bf16.msra.mxu0 %v4261
  %4359 = vmatprep.subr.bf16.mxu0 %v4264
  %4360 = vmatpush1.bf16.msra.mxu0 %v4263
  %4361 = vmatprep.subr.bf16.mxu0 %v4266
  %4362 = vmatpush1.bf16.msra.mxu0 %v4265
  %4363 = vmatprep.subr.bf16.mxu0 %v4268
  %4364 = vmatpush1.bf16.msra.mxu0 %v4267
  %4365 = vmatprep.subr.bf16.mxu0 %v4270
  %4366 = vmatpush1.bf16.msra.mxu0 %v4269
  %4367 = vmatprep.subr.bf16.mxu0 %v4272
  %4368 = vmatpush1.bf16.msra.mxu0 %v4271
  %4369 = vmatprep.subr.bf16.mxu0 %v4274
  %4370 = vmatpush1.bf16.msra.mxu0 %v4273
  %4371 = vmatprep.subr.bf16.mxu0 %v4276
  %4372 = vmatpush1.bf16.msra.mxu0 %v4275
  %4373 = vmatprep.subr.bf16.mxu0 %v4278
  %4374 = vmatpush1.bf16.msra.mxu0 %v4277
  %4375 = vmatprep.subr.bf16.mxu0 %v4280
  %4376 = vmatpush1.bf16.msra.mxu0 %v4279
  %4377 = vmatprep.mubr.bf16.mxu0 %v4103
  %4378 = vmatmul.mubr.bf16.gmra.mrb[0].mxu0 %v4102
  %v4379 = vpop.f32.mrb[0].mxu0
  %v4380 = vadd.f32 0.0, %v4379
  %v4381 = vpop.f32.mrb[0].mxu0
  %v4382 = vadd.f32 0.0, %v4381
  %v4383 = vpop.f32.mrb[0].mxu0
  %v4384 = vpop.f32.mrb[0].mxu0
  %4385 = vdwg.mxu0
  %4386 = vmatprep.subr.bf16.mxu0 %v4282
  %4387 = vmatpush1.bf16.msra.mxu0 %v4281
  %4388 = vmatprep.subr.bf16.mxu0 %v4284
  %4389 = vmatpush1.bf16.msra.mxu0 %v4283
  %4390 = vmatprep.subr.bf16.mxu0 %v4286
  %4391 = vmatpush1.bf16.msra.mxu0 %v4285
  %4392 = vmatprep.subr.bf16.mxu0 %v4288
  %4393 = vmatpush1.bf16.msra.mxu0 %v4287
  %4394 = vmatprep.subr.bf16.mxu0 %v4290
  %4395 = vmatpush1.bf16.msra.mxu0 %v4289
  %4396 = vmatprep.subr.bf16.mxu0 %v4292
  %4397 = vmatpush1.bf16.msra.mxu0 %v4291
  %4398 = vmatprep.subr.bf16.mxu0 %v4294
  %4399 = vmatpush1.bf16.msra.mxu0 %v4293
  %4400 = vmatprep.subr.bf16.mxu0 %v4296
  %4401 = vmatpush1.bf16.msra.mxu0 %v4295
  %4402 = vmatprep.subr.bf16.mxu0 0
  %4403 = vmatpush1.bf16.msra.mxu0 0
  %4404 = vmatprep.subr.bf16.mxu0 0
  %4405 = vmatpush1.bf16.msra.mxu0 0
  %4406 = vmatprep.subr.bf16.mxu0 0
  %4407 = vmatpush1.bf16.msra.mxu0 0
  %4408 = vmatprep.subr.bf16.mxu0 0
  %4409 = vmatpush1.bf16.msra.mxu0 0
  %4410 = vmatprep.subr.bf16.mxu0 0
  %4411 = vmatpush1.bf16.msra.mxu0 0
  %4412 = vmatprep.subr.bf16.mxu0 0
  %4413 = vmatpush1.bf16.msra.mxu0 0
  %4414 = vmatprep.subr.bf16.mxu0 0
  %4415 = vmatpush1.bf16.msra.mxu0 0
  %4416 = vmatprep.subr.bf16.mxu0 0
  %4417 = vmatpush1.bf16.msra.mxu0 0
  %4418 = vmatprep.mubr.bf16.mxu0 0
  %4419 = vmatmul.mubr.bf16.gmra.mrb[0].mxu0 %v4104
  %v4420 = vpop.f32.mrb[0].mxu0
  %v4421 = vadd.f32 %v4380, %v4420
  %v4422 = vpop.f32.mrb[0].mxu0
  %v4423 = vadd.f32 %v4382, %v4422
  %v4424 = vpop.f32.mrb[0].mxu0
  %v4425 = vpop.f32.mrb[0].mxu0
  %4426 = vdwg.mxu0
  %v4429 = vrot.slane %v4421, 1
  %v4430 = vrot.slane %v4423, 1
  %4431 = vrot.lane.b32.xlu0 %v4429, 64
  %v4432 = vpop.permute.xlu0 %4431
  %4433 = vrot.lane.b32.xlu0 %v4430, 64
  %v4434 = vpop.permute.xlu0 %4433
  %v4435 = vsel %vm695, %v4432, %v4434
  %v4438 = vsel %vm695, %v4423, %v4432
  %v4442 = vrot.slane %v42, 1
  %v4443 = vrot.slane %v43, 1
  %v4444 = vrot.slane %v44, 1
  %v4448 = vadd.f32 %v4421, %v4442
  %v4449 = vadd.f32 %v4438, %v4443
  %v4450 = vadd.f32 %v4435, %v4444
  %v4451 = vxor.u32 %v4448, 2147483648
  %v4452 = vxor.u32 %v4449, 2147483648
  %v4453 = vxor.u32 %v4450, 2147483648
  %v4454 = vmul.f32 %v4451, 1.442695
  %v4455 = vpow.pop %v4454
  %v4456 = vmul.f32 %v4452, 1.442695
  %v4457 = vpow.pop %v4456
  %v4458 = vmul.f32 %v4453, 1.442695
  %v4459 = vpow.pop %v4458
  %v4460 = vadd.f32 %v4455, 1.0
  %v4461 = vadd.f32 %v4457, 1.0
  %v4462 = vadd.f32 %v4459, 1.0
  %v4463 = vrcp.pop %v4460
  %v4464 = vmul.f32 1.0, %v4463
  %v4465 = vrcp.pop %v4461
  %v4466 = vmul.f32 1.0, %v4465
  %v4467 = vrcp.pop %v4462
  %v4468 = vmul.f32 1.0, %v4467
  %v4469 = vlaneseq
  %v4470 = vshrl.u32 %v4469, 7
  %v4471 = vsub.s32 0, %v4470
  %v4472 = vrot.slane %v4464, %v4471
  %v4473 = vlaneseq
  %v4474 = vshrl.u32 %v4473, 7
  %v4475 = vsub.s32 0, %v4474
  %v4476 = vrot.slane %v4466, %v4475
  %v4477 = vlaneseq
  %v4478 = vshrl.u32 %v4477, 7
  %v4479 = vsub.s32 0, %v4478
  %v4480 = vrot.slane %v4468, %v4479
  %v4481 = vmul.f32 %v3972, %v4472
  %v4482 = vmul.f32 %v3973, %v4476
  %v4483 = vmul.f32 %v3974, %v4480
  %v4484 = vmul.f32 %v3975, %v4472
  %v4485 = vmul.f32 %v3976, %v4476
  %v4486 = vmul.f32 %v3977, %v4480
  %v4487 = vadd.f32 %v4481, %v3524
  %v4488 = vadd.f32 %v4482, %v3525
  %v4489 = vadd.f32 %v4483, %v3526
  %v4490 = vadd.f32 %v4484, %v3527
  %v4491 = vadd.f32 %v4485, %v3528
  %v4492 = vadd.f32 %v4486, %v3529
  %v4493 = vpack.c.bf16 %v4490, %v4487
  %v4494 = vpack.c.bf16 %v4491, %v4488
  %v4495 = vpack.c.bf16 %v4492, %v4489
  %4496 = vmatprep.subr.bf16.mxu0 0
  %4497 = vmatpush1.bf16.msra.mxu0 %v3048
  %4498 = vmatprep.subr.bf16.mxu0 0
  %4499 = vmatpush1.bf16.msra.mxu0 %v3049
  %4500 = vmatprep.subr.bf16.mxu0 0
  %4501 = vmatpush1.bf16.msra.mxu0 %v3050
  %4502 = vmatprep.subr.bf16.mxu0 0
  %4503 = vmatpush1.bf16.msra.mxu0 %v3051
  %4504 = vmatprep.subr.bf16.mxu0 0
  %4505 = vmatpush1.bf16.msra.mxu0 %v3052
  %4506 = vmatprep.subr.bf16.mxu0 0
  %4507 = vmatpush1.bf16.msra.mxu0 %v3053
  %4508 = vmatprep.subr.bf16.mxu0 0
  %4509 = vmatpush1.bf16.msra.mxu0 %v3054
  %4510 = vmatprep.subr.bf16.mxu0 0
  %4511 = vmatpush1.bf16.msra.mxu0 %v3055
  %4512 = vmatprep.subr.bf16.mxu0 0
  %4513 = vmatpush1.bf16.msra.mxu0 %v3056
  %4514 = vmatprep.subr.bf16.mxu0 0
  %4515 = vmatpush1.bf16.msra.mxu0 %v3057
  %4516 = vmatprep.subr.bf16.mxu0 0
  %4517 = vmatpush1.bf16.msra.mxu0 %v3058
  %4518 = vmatprep.subr.bf16.mxu0 0
  %4519 = vmatpush1.bf16.msra.mxu0 %v3059
  %4520 = vmatprep.subr.bf16.mxu0 0
  %4521 = vmatpush1.bf16.msra.mxu0 %v3060
  %4522 = vmatprep.subr.bf16.mxu0 0
  %4523 = vmatpush1.bf16.msra.mxu0 %v3061
  %4524 = vmatprep.subr.bf16.mxu0 0
  %4525 = vmatpush1.bf16.msra.mxu0 %v3062
  %4526 = vmatprep.subr.bf16.mxu0 0
  %4527 = vmatpush1.bf16.msra.mxu0 %v3063
  %4528 = vmatprep.mubr.bf16.mxu0 %v4494
  %4529 = vmatmul.mubr.bf16.gmra.mrb[0].mxu0 %v4493
  %v4530 = vpop.f32.mrb[0].mxu0
  %v4531 = vadd.f32 0.0, %v4530
  %v4532 = vpop.f32.mrb[0].mxu0
  %v4533 = vpop.f32.mrb[0].mxu0
  %v4534 = vadd.f32 0.0, %v4533
  %v4535 = vpop.f32.mrb[0].mxu0
  %4536 = vdwg.mxu0
  %4537 = vmatprep.subr.bf16.mxu0 0
  %4538 = vmatpush1.bf16.msra.mxu0 %v3064
  %4539 = vmatprep.subr.bf16.mxu0 0
  %4540 = vmatpush1.bf16.msra.mxu0 %v3065
  %4541 = vmatprep.subr.bf16.mxu0 0
  %4542 = vmatpush1.bf16.msra.mxu0 %v3066
  %4543 = vmatprep.subr.bf16.mxu0 0
  %4544 = vmatpush1.bf16.msra.mxu0 %v3067
  %4545 = vmatprep.subr.bf16.mxu0 0
  %4546 = vmatpush1.bf16.msra.mxu0 %v3068
  %4547 = vmatprep.subr.bf16.mxu0 0
  %4548 = vmatpush1.bf16.msra.mxu0 %v3069
  %4549 = vmatprep.subr.bf16.mxu0 0
  %4550 = vmatpush1.bf16.msra.mxu0 %v3070
  %4551 = vmatprep.subr.bf16.mxu0 0
  %4552 = vmatpush1.bf16.msra.mxu0 %v3071
  %4553 = vmatprep.subr.bf16.mxu0 0
  %4554 = vmatpush1.bf16.msra.mxu0 0
  %4555 = vmatprep.subr.bf16.mxu0 0
  %4556 = vmatpush1.bf16.msra.mxu0 0
  %4557 = vmatprep.subr.bf16.mxu0 0
  %4558 = vmatpush1.bf16.msra.mxu0 0
  %4559 = vmatprep.subr.bf16.mxu0 0
  %4560 = vmatpush1.bf16.msra.mxu0 0
  %4561 = vmatprep.subr.bf16.mxu0 0
  %4562 = vmatpush1.bf16.msra.mxu0 0
  %4563 = vmatprep.subr.bf16.mxu0 0
  %4564 = vmatpush1.bf16.msra.mxu0 0
  %4565 = vmatprep.subr.bf16.mxu0 0
  %4566 = vmatpush1.bf16.msra.mxu0 0
  %4567 = vmatprep.subr.bf16.mxu0 0
  %4568 = vmatpush1.bf16.msra.mxu0 0
  %4569 = vmatprep.mubr.bf16.mxu0 0
  %4570 = vmatmul.mubr.bf16.gmra.mrb[0].mxu0 %v4495
  %v4571 = vpop.f32.mrb[0].mxu0
  %v4572 = vadd.f32 %v4531, %v4571
  %v4573 = vpop.f32.mrb[0].mxu0
  %v4574 = vpop.f32.mrb[0].mxu0
  %v4575 = vadd.f32 %v4534, %v4574
  %v4576 = vpop.f32.mrb[0].mxu0
  %4577 = vdwg.mxu0
  %v4578 = vpack.c.bf16 %v4575, %v4572
  %v4580 = vsel %vm3203, %v4578, 0
  %4582 = vmatprep.subr.bf16.mxu0 %v3195
  %4583 = vmatpush1.bf16.msra.mxu0 %v3194
  %4584 = vmatprep.subr.bf16.mxu0 %v3212
  %4585 = vmatpush1.bf16.msra.mxu0 %v3209
  %4586 = vmatprep.subr.bf16.mxu0 0
  %4587 = vmatpush1.bf16.msra.mxu0 0
  %4588 = vmatprep.subr.bf16.mxu0 0
  %4589 = vmatpush1.bf16.msra.mxu0 0
  %4590 = vmatprep.subr.bf16.mxu0 0
  %4591 = vmatpush1.bf16.msra.mxu0 0
  %4592 = vmatprep.subr.bf16.mxu0 0
  %4593 = vmatpush1.bf16.msra.mxu0 0
  %4594 = vmatprep.subr.bf16.mxu0 0
  %4595 = vmatpush1.bf16.msra.mxu0 0
  %4596 = vmatprep.subr.bf16.mxu0 0
  %4597 = vmatpush1.bf16.msra.mxu0 0
  %4598 = vmatprep.subr.bf16.mxu0 0
  %4599 = vmatpush1.bf16.msra.mxu0 0
  %4600 = vmatprep.subr.bf16.mxu0 0
  %4601 = vmatpush1.bf16.msra.mxu0 0
  %4602 = vmatprep.subr.bf16.mxu0 0
  %4603 = vmatpush1.bf16.msra.mxu0 0
  %4604 = vmatprep.subr.bf16.mxu0 0
  %4605 = vmatpush1.bf16.msra.mxu0 0
  %4606 = vmatprep.subr.bf16.mxu0 0
  %4607 = vmatpush1.bf16.msra.mxu0 0
  %4608 = vmatprep.subr.bf16.mxu0 0
  %4609 = vmatpush1.bf16.msra.mxu0 0
  %4610 = vmatprep.subr.bf16.mxu0 0
  %4611 = vmatpush1.bf16.msra.mxu0 0
  %4612 = vmatprep.subr.bf16.mxu0 0
  %4613 = vmatpush1.bf16.msra.mxu0 0
  %4614 = vmatprep.mubr.bf16.mxu0 0
  %4615 = vmatmul.mubr.bf16.gmra.mrb[0].mxu0 %v4580
  %v4616 = vpop.f32.mrb[0].mxu0
  %v4617 = vadd.f32 0.0, %v4616
  %v4618 = vpop.f32.mrb[0].mxu0
  %v4619 = vadd.f32 0.0, %v4618
  %v4620 = vpop.f32.mrb[0].mxu0
  %v4621 = vadd.f32 0.0, %v4620
  %v4622 = vpop.f32.mrb[0].mxu0
  %v4623 = vadd.f32 0.0, %v4622
  %4624 = vdwg.mxu0
  %4625 = vmatprep.subr.bf16.mxu0 0
  %4626 = vmatpush1.bf16.msra.mxu0 %v3196
  %4627 = vmatprep.subr.bf16.mxu0 0
  %4628 = vmatpush1.bf16.msra.mxu0 %v3215
  %4629 = vmatprep.subr.bf16.mxu0 0
  %4630 = vmatpush1.bf16.msra.mxu0 0
  %4631 = vmatprep.subr.bf16.mxu0 0
  %4632 = vmatpush1.bf16.msra.mxu0 0
  %4633 = vmatprep.subr.bf16.mxu0 0
  %4634 = vmatpush1.bf16.msra.mxu0 0
  %4635 = vmatprep.subr.bf16.mxu0 0
  %4636 = vmatpush1.bf16.msra.mxu0 0
  %4637 = vmatprep.subr.bf16.mxu0 0
  %4638 = vmatpush1.bf16.msra.mxu0 0
  %4639 = vmatprep.subr.bf16.mxu0 0
  %4640 = vmatpush1.bf16.msra.mxu0 0
  %4641 = vmatprep.subr.bf16.mxu0 0
  %4642 = vmatpush1.bf16.msra.mxu0 0
  %4643 = vmatprep.subr.bf16.mxu0 0
  %4644 = vmatpush1.bf16.msra.mxu0 0
  %4645 = vmatprep.subr.bf16.mxu0 0
  %4646 = vmatpush1.bf16.msra.mxu0 0
  %4647 = vmatprep.subr.bf16.mxu0 0
  %4648 = vmatpush1.bf16.msra.mxu0 0
  %4649 = vmatprep.subr.bf16.mxu0 0
  %4650 = vmatpush1.bf16.msra.mxu0 0
  %4651 = vmatprep.subr.bf16.mxu0 0
  %4652 = vmatpush1.bf16.msra.mxu0 0
  %4653 = vmatprep.subr.bf16.mxu0 0
  %4654 = vmatpush1.bf16.msra.mxu0 0
  %4655 = vmatprep.subr.bf16.mxu0 0
  %4656 = vmatpush1.bf16.msra.mxu0 0
  %4657 = vmatprep.mubr.bf16.mxu0 0
  %4658 = vmatmul.mubr.bf16.gmra.mrb[0].mxu0 %v4580
  %v4659 = vpop.f32.mrb[0].mxu0
  %v4660 = vadd.f32 0.0, %v4659
  %v4661 = vpop.f32.mrb[0].mxu0
  %v4662 = vpop.f32.mrb[0].mxu0
  %v4663 = vadd.f32 0.0, %v4662
  %v4664 = vpop.f32.mrb[0].mxu0
  %4665 = vdwg.mxu0
  %v4666 = vsub.f32 %v4487, %v4617
  %v4667 = vsub.f32 %v4488, %v4619
  %v4668 = vsub.f32 %v4489, %v4660
  %v4669 = vsub.f32 %v4490, %v4621
  %v4670 = vsub.f32 %v4491, %v4623
  %v4671 = vsub.f32 %v4492, %v4663
  %v4672 = vmul.f32 %v4666, %v4666
  %v4673 = vmul.f32 %v4667, %v4667
  %v4674 = vmul.f32 %v4668, %v4668
  %v4675 = vmul.f32 %v4669, %v4669
  %v4676 = vmul.f32 %v4670, %v4670
  %v4677 = vmul.f32 %v4671, %v4671
  %v4678 = vpack.c.bf16 %v4675, %v4672
  %v4679 = vpack.c.bf16 %v4676, %v4673
  %v4680 = vpack.c.bf16 %v4677, %v4674
  %4681 = vmatprep.subr.bf16.mxu0 0
  %4682 = vmatpush1.bf16.msra.mxu0 %v3048
  %4683 = vmatprep.subr.bf16.mxu0 0
  %4684 = vmatpush1.bf16.msra.mxu0 %v3049
  %4685 = vmatprep.subr.bf16.mxu0 0
  %4686 = vmatpush1.bf16.msra.mxu0 %v3050
  %4687 = vmatprep.subr.bf16.mxu0 0
  %4688 = vmatpush1.bf16.msra.mxu0 %v3051
  %4689 = vmatprep.subr.bf16.mxu0 0
  %4690 = vmatpush1.bf16.msra.mxu0 %v3052
  %4691 = vmatprep.subr.bf16.mxu0 0
  %4692 = vmatpush1.bf16.msra.mxu0 %v3053
  %4693 = vmatprep.subr.bf16.mxu0 0
  %4694 = vmatpush1.bf16.msra.mxu0 %v3054
  %4695 = vmatprep.subr.bf16.mxu0 0
  %4696 = vmatpush1.bf16.msra.mxu0 %v3055
  %4697 = vmatprep.subr.bf16.mxu0 0
  %4698 = vmatpush1.bf16.msra.mxu0 %v3056
  %4699 = vmatprep.subr.bf16.mxu0 0
  %4700 = vmatpush1.bf16.msra.mxu0 %v3057
  %4701 = vmatprep.subr.bf16.mxu0 0
  %4702 = vmatpush1.bf16.msra.mxu0 %v3058
  %4703 = vmatprep.subr.bf16.mxu0 0
  %4704 = vmatpush1.bf16.msra.mxu0 %v3059
  %4705 = vmatprep.subr.bf16.mxu0 0
  %4706 = vmatpush1.bf16.msra.mxu0 %v3060
  %4707 = vmatprep.subr.bf16.mxu0 0
  %4708 = vmatpush1.bf16.msra.mxu0 %v3061
  %4709 = vmatprep.subr.bf16.mxu0 0
  %4710 = vmatpush1.bf16.msra.mxu0 %v3062
  %4711 = vmatprep.subr.bf16.mxu0 0
  %4712 = vmatpush1.bf16.msra.mxu0 %v3063
  %4713 = vmatprep.mubr.bf16.mxu0 %v4679
  %4714 = vmatmul.mubr.bf16.gmra.mrb[0].mxu0 %v4678
  %v4715 = vpop.f32.mrb[0].mxu0
  %v4716 = vadd.f32 1e-05, %v4715
  %v4717 = vpop.f32.mrb[0].mxu0
  %v4718 = vpop.f32.mrb[0].mxu0
  %v4719 = vadd.f32 1e-05, %v4718
  %v4720 = vpop.f32.mrb[0].mxu0
  %4721 = vdwg.mxu0
  %4722 = vmatprep.subr.bf16.mxu0 0
  %4723 = vmatpush1.bf16.msra.mxu0 %v3064
  %4724 = vmatprep.subr.bf16.mxu0 0
  %4725 = vmatpush1.bf16.msra.mxu0 %v3065
  %4726 = vmatprep.subr.bf16.mxu0 0
  %4727 = vmatpush1.bf16.msra.mxu0 %v3066
  %4728 = vmatprep.subr.bf16.mxu0 0
  %4729 = vmatpush1.bf16.msra.mxu0 %v3067
  %4730 = vmatprep.subr.bf16.mxu0 0
  %4731 = vmatpush1.bf16.msra.mxu0 %v3068
  %4732 = vmatprep.subr.bf16.mxu0 0
  %4733 = vmatpush1.bf16.msra.mxu0 %v3069
  %4734 = vmatprep.subr.bf16.mxu0 0
  %4735 = vmatpush1.bf16.msra.mxu0 %v3070
  %4736 = vmatprep.subr.bf16.mxu0 0
  %4737 = vmatpush1.bf16.msra.mxu0 %v3071
  %4738 = vmatprep.subr.bf16.mxu0 0
  %4739 = vmatpush1.bf16.msra.mxu0 0
  %4740 = vmatprep.subr.bf16.mxu0 0
  %4741 = vmatpush1.bf16.msra.mxu0 0
  %4742 = vmatprep.subr.bf16.mxu0 0
  %4743 = vmatpush1.bf16.msra.mxu0 0
  %4744 = vmatprep.subr.bf16.mxu0 0
  %4745 = vmatpush1.bf16.msra.mxu0 0
  %4746 = vmatprep.subr.bf16.mxu0 0
  %4747 = vmatpush1.bf16.msra.mxu0 0
  %4748 = vmatprep.subr.bf16.mxu0 0
  %4749 = vmatpush1.bf16.msra.mxu0 0
  %4750 = vmatprep.subr.bf16.mxu0 0
  %4751 = vmatpush1.bf16.msra.mxu0 0
  %4752 = vmatprep.subr.bf16.mxu0 0
  %4753 = vmatpush1.bf16.msra.mxu0 0
  %4754 = vmatprep.mubr.bf16.mxu0 0
  %4755 = vmatmul.mubr.bf16.gmra.mrb[0].mxu0 %v4680
  %v4756 = vpop.f32.mrb[0].mxu0
  %v4757 = vadd.f32 %v4716, %v4756
  %v4758 = vpop.f32.mrb[0].mxu0
  %v4759 = vpop.f32.mrb[0].mxu0
  %v4760 = vadd.f32 %v4719, %v4759
  %v4761 = vpop.f32.mrb[0].mxu0
  %4762 = vdwg.mxu0
  %v4763 = vrsqrt.pop %v4757
  %v4764 = vrsqrt.pop %v4760
  %v4765 = vpack.c.bf16 %v4764, %v4763
  %v4767 = vsel %vm3203, %v4765, 0
  %4769 = vmatprep.subr.bf16.mxu0 %v3195
  %4770 = vmatpush1.bf16.msra.mxu0 %v3194
  %4771 = vmatprep.subr.bf16.mxu0 %v3212
  %4772 = vmatpush1.bf16.msra.mxu0 %v3209
  %4773 = vmatprep.subr.bf16.mxu0 0
  %4774 = vmatpush1.bf16.msra.mxu0 0
  %4775 = vmatprep.subr.bf16.mxu0 0
  %4776 = vmatpush1.bf16.msra.mxu0 0
  %4777 = vmatprep.subr.bf16.mxu0 0
  %4778 = vmatpush1.bf16.msra.mxu0 0
  %4779 = vmatprep.subr.bf16.mxu0 0
  %4780 = vmatpush1.bf16.msra.mxu0 0
  %4781 = vmatprep.subr.bf16.mxu0 0
  %4782 = vmatpush1.bf16.msra.mxu0 0
  %4783 = vmatprep.subr.bf16.mxu0 0
  %4784 = vmatpush1.bf16.msra.mxu0 0
  %4785 = vmatprep.subr.bf16.mxu0 0
  %4786 = vmatpush1.bf16.msra.mxu0 0
  %4787 = vmatprep.subr.bf16.mxu0 0
  %4788 = vmatpush1.bf16.msra.mxu0 0
  %4789 = vmatprep.subr.bf16.mxu0 0
  %4790 = vmatpush1.bf16.msra.mxu0 0
  %4791 = vmatprep.subr.bf16.mxu0 0
  %4792 = vmatpush1.bf16.msra.mxu0 0
  %4793 = vmatprep.subr.bf16.mxu0 0
  %4794 = vmatpush1.bf16.msra.mxu0 0
  %4795 = vmatprep.subr.bf16.mxu0 0
  %4796 = vmatpush1.bf16.msra.mxu0 0
  %4797 = vmatprep.subr.bf16.mxu0 0
  %4798 = vmatpush1.bf16.msra.mxu0 0
  %4799 = vmatprep.subr.bf16.mxu0 0
  %4800 = vmatpush1.bf16.msra.mxu0 0
  %4801 = vmatprep.mubr.bf16.mxu0 0
  %4802 = vmatmul.mubr.bf16.gmra.mrb[0].mxu0 %v4767
  %v4803 = vpop.f32.mrb[0].mxu0
  %v4804 = vadd.f32 0.0, %v4803
  %v4805 = vpop.f32.mrb[0].mxu0
  %v4806 = vadd.f32 0.0, %v4805
  %v4807 = vpop.f32.mrb[0].mxu0
  %v4808 = vadd.f32 0.0, %v4807
  %v4809 = vpop.f32.mrb[0].mxu0
  %v4810 = vadd.f32 0.0, %v4809
  %4811 = vdwg.mxu0
  %4812 = vmatprep.subr.bf16.mxu0 0
  %4813 = vmatpush1.bf16.msra.mxu0 %v3196
  %4814 = vmatprep.subr.bf16.mxu0 0
  %4815 = vmatpush1.bf16.msra.mxu0 %v3215
  %4816 = vmatprep.subr.bf16.mxu0 0
  %4817 = vmatpush1.bf16.msra.mxu0 0
  %4818 = vmatprep.subr.bf16.mxu0 0
  %4819 = vmatpush1.bf16.msra.mxu0 0
  %4820 = vmatprep.subr.bf16.mxu0 0
  %4821 = vmatpush1.bf16.msra.mxu0 0
  %4822 = vmatprep.subr.bf16.mxu0 0
  %4823 = vmatpush1.bf16.msra.mxu0 0
  %4824 = vmatprep.subr.bf16.mxu0 0
  %4825 = vmatpush1.bf16.msra.mxu0 0
  %4826 = vmatprep.subr.bf16.mxu0 0
  %4827 = vmatpush1.bf16.msra.mxu0 0
  %4828 = vmatprep.subr.bf16.mxu0 0
  %4829 = vmatpush1.bf16.msra.mxu0 0
  %4830 = vmatprep.subr.bf16.mxu0 0
  %4831 = vmatpush1.bf16.msra.mxu0 0
  %4832 = vmatprep.subr.bf16.mxu0 0
  %4833 = vmatpush1.bf16.msra.mxu0 0
  %4834 = vmatprep.subr.bf16.mxu0 0
  %4835 = vmatpush1.bf16.msra.mxu0 0
  %4836 = vmatprep.subr.bf16.mxu0 0
  %4837 = vmatpush1.bf16.msra.mxu0 0
  %4838 = vmatprep.subr.bf16.mxu0 0
  %4839 = vmatpush1.bf16.msra.mxu0 0
  %4840 = vmatprep.subr.bf16.mxu0 0
  %4841 = vmatpush1.bf16.msra.mxu0 0
  %4842 = vmatprep.subr.bf16.mxu0 0
  %4843 = vmatpush1.bf16.msra.mxu0 0
  %4844 = vmatprep.mubr.bf16.mxu0 0
  %4845 = vmatmul.mubr.bf16.gmra.mrb[0].mxu0 %v4767
  %v4846 = vpop.f32.mrb[0].mxu0
  %v4847 = vadd.f32 0.0, %v4846
  %v4848 = vpop.f32.mrb[0].mxu0
  %v4849 = vpop.f32.mrb[0].mxu0
  %v4850 = vadd.f32 0.0, %v4849
  %v4851 = vpop.f32.mrb[0].mxu0
  %4852 = vdwg.mxu0
  %v4853 = vmul.f32 %v4666, %v4804
  %v4854 = vmul.f32 %v4667, %v4806
  %v4855 = vmul.f32 %v4668, %v4847
  %v4856 = vmul.f32 %v4669, %v4808
  %v4857 = vmul.f32 %v4670, %v4810
  %v4858 = vmul.f32 %v4671, %v4850
  %v4859 = vlaneseq
  %v4860 = vshrl.u32 %v4859, 7
  %v4861 = vsub.s32 5, %v4860
  %v4862 = vrot.slane %v39, %v4861
  %v4863 = vlaneseq
  %v4864 = vshrl.u32 %v4863, 7
  %v4865 = vsub.s32 5, %v4864
  %v4866 = vrot.slane %v40, %v4865
  %v4867 = vlaneseq
  %v4868 = vshrl.u32 %v4867, 7
  %v4869 = vsub.s32 5, %v4868
  %v4870 = vrot.slane %v41, %v4869
  %v4871 = vmul.f32 %v4853, %v4862
  %v4872 = vmul.f32 %v4854, %v4866
  %v4873 = vmul.f32 %v4855, %v4870
  %v4874 = vmul.f32 %v4856, %v4862
  %v4875 = vmul.f32 %v4857, %v4866
  %v4876 = vmul.f32 %v4858, %v4870
  %v4877 = vlaneseq
  %v4878 = vshrl.u32 %v4877, 7
  %v4879 = vsub.s32 6, %v4878
  %v4880 = vrot.slane %v39, %v4879
  %v4881 = vlaneseq
  %v4882 = vshrl.u32 %v4881, 7
  %v4883 = vsub.s32 6, %v4882
  %v4884 = vrot.slane %v40, %v4883
  %v4885 = vlaneseq
  %v4886 = vshrl.u32 %v4885, 7
  %v4887 = vsub.s32 6, %v4886
  %v4888 = vrot.slane %v41, %v4887
  %v4889 = vadd.f32 %v4871, %v4880
  %v4890 = vadd.f32 %v4872, %v4884
  %v4891 = vadd.f32 %v4873, %v4888
  %v4892 = vadd.f32 %v4874, %v4880
  %v4893 = vadd.f32 %v4875, %v4884
  %v4894 = vadd.f32 %v4876, %v4888
  %v4895 = vld [vmem:[%s10] sm:$0xf]
  %v4896 = vld [vmem:[%s10 + $0x4] sm:$0xf]
  %v4897 = vpack.c.bf16 %v4892, %v4889
  %v4898 = vpack.c.bf16 %v4893, %v4890
  %v4899 = vpack.c.bf16 %v4894, %v4891
  %4900 = vset.pattern.permute.xlu0 14
  %4901 = vperm.xlu0 %4900, %v45
  %v4902 = vpop.permute.xlu0 %4901
  %4904 = vset.pattern.permute.xlu0 14
  %4905 = vperm.xlu0 %4904, %v46
  %v4906 = vpop.permute.xlu0 %4905
  %v4910 = vunpack.c.l.b16 %v4895
  %v4911 = vunpack.c.l.b16 %v4896
  %v4912 = vpack.c.b16 %v4911, %v4910
  %v4914 = vsel %vm1833, %v4912, 0
  %4916 = vmatprep.subr.bf16.mxu0 %v4898
  %4917 = vmatpush1.bf16.msra.mxu0 %v4897
  %4918 = vmatprep.subr.bf16.mxu0 0
  %4919 = vmatpush1.bf16.msra.mxu0 0
  %4920 = vmatprep.subr.bf16.mxu0 0
  %4921 = vmatpush1.bf16.msra.mxu0 0
  %4922 = vmatprep.subr.bf16.mxu0 0
  %4923 = vmatpush1.bf16.msra.mxu0 0
  %4924 = vmatprep.subr.bf16.mxu0 0
  %4925 = vmatpush1.bf16.msra.mxu0 0
  %4926 = vmatprep.subr.bf16.mxu0 0
  %4927 = vmatpush1.bf16.msra.mxu0 0
  %4928 = vmatprep.subr.bf16.mxu0 0
  %4929 = vmatpush1.bf16.msra.mxu0 0
  %4930 = vmatprep.subr.bf16.mxu0 0
  %4931 = vmatpush1.bf16.msra.mxu0 0
  %4932 = vmatprep.subr.bf16.mxu0 0
  %4933 = vmatpush1.bf16.msra.mxu0 0
  %4934 = vmatprep.subr.bf16.mxu0 0
  %4935 = vmatpush1.bf16.msra.mxu0 0
  %4936 = vmatprep.subr.bf16.mxu0 0
  %4937 = vmatpush1.bf16.msra.mxu0 0
  %4938 = vmatprep.subr.bf16.mxu0 0
  %4939 = vmatpush1.bf16.msra.mxu0 0
  %4940 = vmatprep.subr.bf16.mxu0 0
  %4941 = vmatpush1.bf16.msra.mxu0 0
  %4942 = vmatprep.subr.bf16.mxu0 0
  %4943 = vmatpush1.bf16.msra.mxu0 0
  %4944 = vmatprep.subr.bf16.mxu0 0
  %4945 = vmatpush1.bf16.msra.mxu0 0
  %4946 = vmatprep.subr.bf16.mxu0 0
  %4947 = vmatpush1.bf16.msra.mxu0 0
  %4948 = vmatprep.mubr.bf16.mxu0 0
  %4949 = vmatmul.mubr.bf16.gmra.mrb[0].mxu0 %v4914
  %v4950 = vpop.f32.mrb[0].mxu0
  %v4951 = vadd.f32 %v4902, %v4950
  %v4952 = vpop.f32.mrb[0].mxu0
  %v4953 = vadd.f32 %v4902, %v4952
  %v4954 = vpop.f32.mrb[0].mxu0
  %v4955 = vadd.f32 %v4906, %v4954
  %v4956 = vpop.f32.mrb[0].mxu0
  %v4957 = vadd.f32 %v4906, %v4956
  %4958 = vdwg.mxu0
  %4959 = vmatprep.subr.bf16.mxu0 0
  %4960 = vmatpush1.bf16.msra.mxu0 %v4899
  %4961 = vmatprep.subr.bf16.mxu0 0
  %4962 = vmatpush1.bf16.msra.mxu0 0
  %4963 = vmatprep.subr.bf16.mxu0 0
  %4964 = vmatpush1.bf16.msra.mxu0 0
  %4965 = vmatprep.subr.bf16.mxu0 0
  %4966 = vmatpush1.bf16.msra.mxu0 0
  %4967 = vmatprep.subr.bf16.mxu0 0
  %4968 = vmatpush1.bf16.msra.mxu0 0
  %4969 = vmatprep.subr.bf16.mxu0 0
  %4970 = vmatpush1.bf16.msra.mxu0 0
  %4971 = vmatprep.subr.bf16.mxu0 0
  %4972 = vmatpush1.bf16.msra.mxu0 0
  %4973 = vmatprep.subr.bf16.mxu0 0
  %4974 = vmatpush1.bf16.msra.mxu0 0
  %4975 = vmatprep.subr.bf16.mxu0 0
  %4976 = vmatpush1.bf16.msra.mxu0 0
  %4977 = vmatprep.subr.bf16.mxu0 0
  %4978 = vmatpush1.bf16.msra.mxu0 0
  %4979 = vmatprep.subr.bf16.mxu0 0
  %4980 = vmatpush1.bf16.msra.mxu0 0
  %4981 = vmatprep.subr.bf16.mxu0 0
  %4982 = vmatpush1.bf16.msra.mxu0 0
  %4983 = vmatprep.subr.bf16.mxu0 0
  %4984 = vmatpush1.bf16.msra.mxu0 0
  %4985 = vmatprep.subr.bf16.mxu0 0
  %4986 = vmatpush1.bf16.msra.mxu0 0
  %4987 = vmatprep.subr.bf16.mxu0 0
  %4988 = vmatpush1.bf16.msra.mxu0 0
  %4989 = vmatprep.subr.bf16.mxu0 0
  %4990 = vmatpush1.bf16.msra.mxu0 0
  %4991 = vmatprep.mubr.bf16.mxu0 0
  %4992 = vmatmul.mubr.bf16.gmra.mrb[0].mxu0 %v4914
  %v4993 = vpop.f32.mrb[0].mxu0
  %v4994 = vadd.f32 %v4902, %v4993
  %v4995 = vpop.f32.mrb[0].mxu0
  %v4996 = vpop.f32.mrb[0].mxu0
  %v4997 = vadd.f32 %v4906, %v4996
  %v4998 = vpop.f32.mrb[0].mxu0
  %4999 = vdwg.mxu0
  %5000 = vst [vmem:[%s11] sm:$0xff] %v4951
  %5001 = vst [vmem:[%s11 + $0x8] sm:$0xff] %v4953
  %5002 = vst [vmem:[%s11 + $0x10] sm:$0xff] %v4994
  %5003 = vst [vmem:[%s11 + $0x18] sm:$0xff] %v4955
  %5004 = vst [vmem:[%s11 + $0x20] sm:$0xff] %v4957
  %5005 = vst [vmem:[%s11 + $0x28] sm:$0xff] %v4997
  // Predicated region
  $region46: #{mp_d_forward.1} parent=0 // pred_check
    _
  $region47: #{mp_d_forward.1} parent=0 // pred_check_branch
    %5007 = sbr.rel (0) target = $region49
  $region48: #{mp_d_forward.1} parent=0 // pred_region
    _
  $region49: #{mp_d_forward.1} parent=0 // pred_fallthru
    _
  // Predicated region
  $region50: #{mp_d_forward.1} parent=0 // pred_check
    _
  $region51: #{mp_d_forward.1} parent=0 // pred_check_branch
    %5009 = sbr.rel (0) target = $region53
  $region52: #{mp_d_forward.1} parent=0 // pred_region
    _
  $region53: #{mp_d_forward.1} parent=0 // pred_fallthru
    _

</llo_original>
